<compile_context>
chip_gen: v7x
topology: tpu7x:2x2x1
jax: 0.10.0
libtpu: 0.0.40
codegen_flags: <defaults>
</compile_context>

<pallas_src>
import jax
import jax.numpy as jnp
from jax.experimental import pallas as pl
from jax.experimental.pallas import tpu as pltpu


def _round_up(x, m):
    return ((x + m - 1) // m) * m


def _pad_gate_cols(w, h, hp):
    """Pad each of the 4 gate column blocks (i|f|g|o) from width h to hp."""
    if hp == h:
        return w
    blocks = [jnp.pad(w[:, g * h:(g + 1) * h], ((0, 0), (0, hp - h)))
              for g in range(4)]
    return jnp.concatenate(blocks, axis=-1)


# ---------------------------------------------------------------------------
# Kernel 1: generic tiled matmul + bias   out = A @ W + b   (f32 accumulation)
# Used for (a) the hoisted embedding->gate precompute and (b) the vocab
# projection.  Grid is 2-D (M tiles, N tiles); K stays untiled (it is H or E,
# both small here).
# TODO(synk): add a K grid axis with an f32 accumulator scratch if K ever
# grows beyond a comfortable VMEM-resident size.
# ---------------------------------------------------------------------------
def _matmul_bias_kernel(a_ref, w_ref, b_ref, o_ref):
    o_ref[...] = (jnp.dot(a_ref[...], w_ref[...],
                          preferred_element_type=jnp.float32)
                  + b_ref[...]).astype(o_ref.dtype)


def _tiled_matmul_bias(a, w, bias, *, out_dtype=jnp.float32, tm=256, tn=512):
    """a: [M, K]; w: [K, N] (N a multiple of 128); bias: [1, N]."""
    M, K = a.shape
    N = w.shape[1]
    tm = min(tm, _round_up(M, 8))
    tn = min(tn, N)                       # tn is a multiple of 128 by caller
    Mp = _round_up(M, tm)
    Np = _round_up(N, tn)
    if Mp != M:
        a = jnp.pad(a, ((0, Mp - M), (0, 0)))
    if Np != N:
        w = jnp.pad(w, ((0, 0), (0, Np - N)))
        bias = jnp.pad(bias, ((0, 0), (0, Np - N)))

    cost = pl.CostEstimate(
        flops=2 * Mp * K * Np,
        transcendentals=0,
        bytes_accessed=(Mp * K * a.dtype.itemsize
                        + K * Np * w.dtype.itemsize
                        + Mp * Np * jnp.dtype(out_dtype).itemsize))

    out = pl.pallas_call(
        _matmul_bias_kernel,
        out_shape=jax.ShapeDtypeStruct((Mp, Np), out_dtype),
        grid_spec=pltpu.PrefetchScalarGridSpec(
            num_scalar_prefetch=0,
            grid=(Mp // tm, Np // tn),
            in_specs=[
                pl.BlockSpec((tm, K), lambda i, j: (i, 0)),
                pl.BlockSpec((K, tn), lambda i, j: (0, j)),
                pl.BlockSpec((1, tn), lambda i, j: (0, j)),
            ],
            out_specs=pl.BlockSpec((tm, tn), lambda i, j: (i, j)),
        ),
        compiler_params=pltpu.CompilerParams(
            dimension_semantics=("parallel", "parallel"),
            vmem_limit_bytes=64 * 1024 * 1024),
        cost_estimate=cost,
    )(a, w, bias)
    return out[:M, :N]


# ---------------------------------------------------------------------------
# Kernel 2: serial recurrent part (dot attention + LSTM cell).  Emits h_t.
# Grid = (batch shards ["parallel"], time chunks ["arbitrary"]).
# ---------------------------------------------------------------------------
def _recurrent_kernel(pre_ref, enc_ref, h0_ref, c0_ref, wc_ref, wh_ref,
                      hout_ref, h_sc, c_sc):
    # Re-initialise the recurrent state at the start of each batch shard's
    # time sweep (time is the innermost grid axis).
    @pl.when(pl.program_id(1) == 0)
    def _():
        h_sc[...] = h0_ref[...]
        c_sc[...] = c0_ref[...]

    Tc = pre_ref.shape[0]
    Bs, Hp = h_sc.shape

    def step(t, carry):
        del carry
        h = h_sc[...]                               # [Bs, Hp] f32
        c = c_sc[...]                               # [Bs, Hp] f32
        enc = enc_ref[...]                          # [Bs, S, Hp] bf16

        # ---- dot attention: scores on VPU + XLU lane-reduce (keeps the MXU
        #      free for the matmuls that actually fill it) ----
        scores = jnp.sum(enc.astype(jnp.float32) * h[:, None, :], axis=-1)
        m = jnp.max(scores, axis=-1, keepdims=True)
        p = jnp.exp(scores - m)                     # [Bs, S]
        inv = pl.reciprocal(jnp.sum(p, axis=-1, keepdims=True), approx=True)
        # ctx on the MXU (bf16 operands, f32 accumulation), softmax divide
        # folded in afterwards.
        ctx3 = jnp.einsum('bqs,bsh->bqh',
                          p[:, None, :].astype(jnp.bfloat16), enc,
                          preferred_element_type=jnp.float32)   # [Bs,1,Hp]
        ctx = ctx3.reshape(Bs, Hp) * inv                        # [Bs, Hp] f32

        # ---- LSTM cell: embedding/bias contribution was precomputed outside;
        #      two accumulated MXU dots, no concat ----
        gates = (pre_ref[t]
                 + jnp.dot(ctx.astype(jnp.bfloat16), wc_ref[...],
                           preferred_element_type=jnp.float32)
                 + jnp.dot(h.astype(jnp.bfloat16), wh_ref[...],
                           preferred_element_type=jnp.float32))  # [Bs, 4Hp]
        i_g = jax.nn.sigmoid(gates[:, 0:Hp])
        f_g = jax.nn.sigmoid(gates[:, Hp:2 * Hp])
        g_g = jnp.tanh(gates[:, 2 * Hp:3 * Hp])
        o_g = jax.nn.sigmoid(gates[:, 3 * Hp:4 * Hp])
        c_new = f_g * c + i_g * g_g
        h_new = o_g * jnp.tanh(c_new)

        h_sc[...] = h_new
        c_sc[...] = c_new
        hout_ref[t] = h_new.astype(hout_ref.dtype)   # lane-dense bf16 store
        return 0

    # Partial unroll: amortises loop overhead without blowing vreg live ranges.
    jax.lax.fori_loop(0, Tc, step, 0, unroll=4)


# ---------------------------------------------------------------------------
# Wrapper
# ---------------------------------------------------------------------------
def decoder_forward(tokens, encoder_output, h0, c0, params, *, t_chunk=32):
    """tokens: [B, T] int32; encoder_output: [B, S, H]; h0/c0: [1, B, H]
    (PyTorch LSTM state layout).  Returns logits [B, T, V]."""
    emb_mat = params["embedding"]                       # [V, E]
    B, T = tokens.shape
    S, H = encoder_output.shape[1], encoder_output.shape[2]
    E = emb_mat.shape[1]
    V = params["w_dense"].shape[1]

    Hp = _round_up(H, 128)                              # lane-dense hidden
    G = 4 * Hp                                          # fused gate width

    # Batch sharding: 2 shards (v7x's two TensorCores) when the batch is big
    # enough; each shard sublane-dense (multiple of 8).
    n_bshard = 2 if B > 8 else 1
    Bs = _round_up((B + n_bshard - 1) // n_bshard, 8)
    Bp = Bs * n_bshard

    Tc = min(T, t_chunk)
    Tp = _round_up(T, Tc)

    # ---- per-gate padded weights (gate slices become 128-aligned) ----
    w_e = _pad_gate_cols(params["w_ih_e"], H, Hp)                     # [E, G]
    w_c = jnp.pad(_pad_gate_cols(params["w_ih_c"], H, Hp),
                  ((0, Hp - H), (0, 0)))                              # [Hp, G]
    w_h = jnp.pad(_pad_gate_cols(params["w_hh"], H, Hp),
                  ((0, Hp - H), (0, 0)))                              # [Hp, G]
    b_g = _pad_gate_cols(params["b_lstm"], H, Hp)                     # [1, G]

    # ---- glue: pad tokens, embedding gather (parallel, outside kernels) ----
    tok = tokens
    if Tp != T:
        tok = jnp.pad(tok, ((0, 0), (0, Tp - T)))       # pad with token 0
    if Bp != B:
        tok = jnp.pad(tok, ((0, Bp - B), (0, 0)))
    emb_seq = jnp.take(emb_mat, tok.T, axis=0)          # [Tp, Bp, E]

    # ---- hoisted, fully parallel precompute: pre[t] = emb[t] @ W_e + b ----
    pre = _tiled_matmul_bias(
        emb_seq.reshape(Tp * Bp, E).astype(jnp.bfloat16),
        w_e.astype(jnp.bfloat16), b_g,
        out_dtype=jnp.float32).reshape(Tp, Bp, G)

    # ---- padded / bf16 recurrent operands ----
    enc = jnp.pad(encoder_output,
                  ((0, Bp - B), (0, 0), (0, Hp - H))).astype(jnp.bfloat16)
    h0p = jnp.pad(h0.reshape(B, H), ((0, Bp - B), (0, Hp - H)))
    c0p = jnp.pad(c0.reshape(B, H), ((0, Bp - B), (0, Hp - H)))
    wc_b = w_c.astype(jnp.bfloat16)
    wh_b = w_h.astype(jnp.bfloat16)

    # NOTE: enc / W_c / W_h / h0 / c0 are loop-invariant along the time axis;
    # on v7x one could drop their double-buffering (pl.Buffered(1) or a manual
    # one-shot DMA) to halve their VMEM footprint.
    h_seq = pl.pallas_call(
        _recurrent_kernel,
        out_shape=jax.ShapeDtypeStruct((Tp, Bp, Hp), jnp.bfloat16),
        grid_spec=pltpu.PrefetchScalarGridSpec(
            num_scalar_prefetch=0,
            grid=(n_bshard, Tp // Tc),
            in_specs=[
                pl.BlockSpec((Tc, Bs, G), lambda b, t: (t, b, 0)),   # pre
                pl.BlockSpec((Bs, S, Hp), lambda b, t: (b, 0, 0)),   # encoder
                pl.BlockSpec((Bs, Hp), lambda b, t: (b, 0)),         # h0
                pl.BlockSpec((Bs, Hp), lambda b, t: (b, 0)),         # c0
                pl.BlockSpec((Hp, G), lambda b, t: (0, 0)),          # W_c
                pl.BlockSpec((Hp, G), lambda b, t: (0, 0)),          # W_h
            ],
            out_specs=pl.BlockSpec((Tc, Bs, Hp), lambda b, t: (t, b, 0)),
            scratch_shapes=[pltpu.VMEM((Bs, Hp), jnp.float32),       # h state
                            pltpu.VMEM((Bs, Hp), jnp.float32)],      # c state
        ),
        compiler_params=pltpu.CompilerParams(
            dimension_semantics=("parallel", "arbitrary"),
            vmem_limit_bytes=64 * 1024 * 1024),
    )(pre, enc, h0p, c0p, wc_b, wh_b)

    # ---- vocab projection: transpose the SMALL activations to (B,T,Hp) so
    #      the big logits tensor is produced directly in (B,T,V) layout ----
    h_bt = jnp.transpose(h_seq[:T, :B], (1, 0, 2)).reshape(B * T, Hp)  # bf16

    Vp = _round_up(V, 128)
    w_d = jnp.pad(params["w_dense"],
                  ((0, Hp - H), (0, Vp - V))).astype(jnp.bfloat16)     # [Hp,Vp]
    b_d = jnp.pad(params["b_dense"], ((0, 0), (0, Vp - V)))            # [1, Vp]

    logits = _tiled_matmul_bias(h_bt, w_d, b_d, out_dtype=jnp.float32,
                                tm=256, tn=512)                        # [B*T,Vp]
    return logits[:, :V].reshape(B, T, V)


# ---------------------------------------------------------------------------
# Pure-JAX reference (replicates the PyTorch forward) and param construction.
# ---------------------------------------------------------------------------
def reference_decoder(tokens, enc, h0, c0, params):
    B, T = tokens.shape
    emb_mat = params["embedding"]
    h = h0.reshape(B, -1)
    c = c0.reshape(B, -1)
    H = h.shape[-1]
    outs = []
    for t in range(T):
        emb = emb_mat[tokens[:, t]]
        scores = jnp.einsum("bsh,bh->bs", enc, h)
        alpha = jax.nn.softmax(scores, axis=1)
        ctx = jnp.einsum("bs,bsh->bh", alpha, enc)
        gates = (emb @ params["w_ih_e"] + ctx @ params["w_ih_c"]
                 + h @ params["w_hh"] + params["b_lstm"])
        i_g = jax.nn.sigmoid(gates[:, :H])
        f_g = jax.nn.sigmoid(gates[:, H:2 * H])
        g_g = jnp.tanh(gates[:, 2 * H:3 * H])
        o_g = jax.nn.sigmoid(gates[:, 3 * H:])
        c = f_g * c + i_g * g_g
        h = o_g * jnp.tanh(c)
        outs.append(h @ params["w_dense"] + params["b_dense"])
    return jnp.stack(outs, axis=1)


def make_params(key, vocab_size, embedding_dim, dec_units):
    V, E, H = vocab_size, embedding_dim, dec_units
    ks = jax.random.split(key, 7)
    scale = 0.1
    # Frozen "pretrained" embedding with padding_idx=0 zeroed out.
    embedding = scale * jax.random.normal(ks[0], (V, E), jnp.float32)
    embedding = embedding.at[0].set(0.0)
    # PyTorch LSTM params: W_ih [4H, E+H] (input = cat([emb, ctx])), W_hh [4H, H].
    w_ih = scale * jax.random.normal(ks[1], (4 * H, E + H), jnp.float32)
    w_hh = scale * jax.random.normal(ks[2], (4 * H, H), jnp.float32)
    b_ih = scale * jax.random.normal(ks[3], (4 * H,), jnp.float32)
    b_hh = scale * jax.random.normal(ks[4], (4 * H,), jnp.float32)
    # Dense: [V, H] weight, [V] bias.
    w_dense = scale * jax.random.normal(ks[5], (V, H), jnp.float32)
    b_dense = scale * jax.random.normal(ks[6], (V,), jnp.float32)

    w_ih_t = w_ih.T                       # [E+H, 4H]
    return {
        "embedding": embedding,
        "w_ih_e": w_ih_t[:E, :],          # [E, 4H]
        "w_ih_c": w_ih_t[E:, :],          # [H, 4H]
        "w_hh": w_hh.T,                   # [H, 4H]
        "b_lstm": (b_ih + b_hh).reshape(1, 4 * H),
        "w_dense": w_dense.T,             # [H, V]
        "b_dense": b_dense.reshape(1, V),
    }


if __name__ == "__main__":
    B, T, S = 2, 4, 8          # batch, decoder timesteps, encoder seq len
    H, E, V = 32, 32, 64       # dec_units (= att_units), embedding_dim, vocab

    key = jax.random.PRNGKey(0)
    k_tok, k_enc, k_h, k_c, k_par = jax.random.split(key, 5)

    tokens = jax.random.randint(k_tok, (B, T), 0, V, dtype=jnp.int32)
    encoder_output = jax.random.normal(k_enc, (B, S, H), jnp.float32)
    h0 = jax.random.normal(k_h, (1, B, H), jnp.float32)
    c0 = jax.random.normal(k_c, (1, B, H), jnp.float32)
    params = make_params(k_par, V, E, H)

    fwd = jax.jit(decoder_forward)
    out = fwd(tokens, encoder_output, h0, c0, params)
    out = jax.block_until_ready(out)

    ref = reference_decoder(tokens, encoder_output, h0, c0, params)
    assert out.shape == (B, T, V), out.shape
    max_err = float(jnp.max(jnp.abs(out - ref)))
    # bf16 MXU operands + approx reciprocal => looser tolerance than pure f32.
    assert jnp.allclose(out, ref, atol=5e-2, rtol=5e-2), max_err

    print("KERNEL_OK")
</pallas_src>

<mosaic_0001>
module attributes {stable_mosaic.version = 11 : i64} {
  func.func @_matmul_bias_kernel(%arg0: i32, %arg1: i32, %arg2: memref<32x32xbf16, #tpu.memory_space<vmem>>, %arg3: memref<32x512xbf16, #tpu.memory_space<vmem>>, %arg4: memref<1x512xf32, #tpu.memory_space<vmem>>, %arg5: memref<32x512xf32, #tpu.memory_space<vmem>>) attributes {dimension_semantics = [#tpu.dimension_semantics<parallel>, #tpu.dimension_semantics<parallel>], iteration_bounds = array<i64: 1, 1>, scalar_prefetch = 0 : i64, scratch_operands = 0 : i64, tpu.core_type = #tpu.core_type<tc>, window_params = [{transform_indices = @transform_0, window_bounds = array<i64: 32, 32>}, {transform_indices = @transform_1, window_bounds = array<i64: 32, 512>}, {transform_indices = @transform_2, window_bounds = array<i64: 1, 512>}, {transform_indices = @transform_3, window_bounds = array<i64: 32, 512>}]} {
    %c0 = arith.constant 0 : index
    %c0_0 = arith.constant 0 : index
    %0 = vector.load %arg2[%c0, %c0_0] : memref<32x32xbf16, #tpu.memory_space<vmem>>, vector<32x32xbf16>
    %c0_1 = arith.constant 0 : index
    %c0_2 = arith.constant 0 : index
    %1 = vector.load %arg3[%c0_1, %c0_2] : memref<32x512xbf16, #tpu.memory_space<vmem>>, vector<32x512xbf16>
    %cst = arith.constant dense<0.000000e+00> : vector<32x512xf32>
    %2 = tpu.matmul %0, %1, %cst {dimension_numbers = #tpu.dot_dimension_numbers<[1], [0], [0], [1], [0, 0, 1, 1], [], []>} : vector<32x32xbf16>, vector<32x512xbf16>, vector<32x512xf32> -> vector<32x512xf32>
    %c0_3 = arith.constant 0 : index
    %c0_4 = arith.constant 0 : index
    %3 = vector.load %arg4[%c0_3, %c0_4] : memref<1x512xf32, #tpu.memory_space<vmem>>, vector<1x512xf32>
    %4 = vector.broadcast %3 : vector<1x512xf32> to vector<32x512xf32>
    %5 = arith.addf %2, %4 : vector<32x512xf32>
    %c0_5 = arith.constant 0 : index
    %c0_6 = arith.constant 0 : index
    %6 = vector.load %arg5[%c0_5, %c0_6] : memref<32x512xf32, #tpu.memory_space<vmem>>, vector<32x512xf32>
    tpu.vector_store %arg5[%c0_5, %c0_6], %5 {strides = array<i32>} : memref<32x512xf32, #tpu.memory_space<vmem>>, vector<32x512xf32>,
    return
  }
  func.func @transform_0(%arg0: i32, %arg1: i32) -> (i32, i32) {
    %c0_i32 = arith.constant 0 : i32
    %c0_i32_0 = arith.constant 0 : i32
    return %arg0, %c0_i32 : i32, i32
  }
  func.func @transform_1(%arg0: i32, %arg1: i32) -> (i32, i32) {
    %c0_i32 = arith.constant 0 : i32
    %c0_i32_0 = arith.constant 0 : i32
    return %c0_i32, %arg1 : i32, i32
  }
  func.func @transform_2(%arg0: i32, %arg1: i32) -> (i32, i32) {
    %c0_i32 = arith.constant 0 : i32
    %c0_i32_0 = arith.constant 0 : i32
    return %c0_i32, %arg1 : i32, i32
  }
  func.func @transform_3(%arg0: i32, %arg1: i32) -> (i32, i32) {
    %c0_i32 = arith.constant 0 : i32
    return %arg0, %arg1 : i32, i32
  }
}

module attributes {stable_mosaic.version = 11 : i64} {
  func.func @_recurrent_kernel(%arg0: i32, %arg1: i32, %arg2: memref<4x8x512xf32, #tpu.memory_space<vmem>>, %arg3: memref<8x8x128xbf16, #tpu.memory_space<vmem>>, %arg4: memref<8x128xf32, #tpu.memory_space<vmem>>, %arg5: memref<8x128xf32, #tpu.memory_space<vmem>>, %arg6: memref<128x512xbf16, #tpu.memory_space<vmem>>, %arg7: memref<128x512xbf16, #tpu.memory_space<vmem>>, %arg8: memref<4x8x128xbf16, #tpu.memory_space<vmem>>, %arg9: memref<8x128xf32, #tpu.memory_space<vmem>>, %arg10: memref<8x128xf32, #tpu.memory_space<vmem>>) attributes {dimension_semantics = [#tpu.dimension_semantics<parallel>, #tpu.dimension_semantics<arbitrary>], iteration_bounds = array<i64: 1, 1>, scalar_prefetch = 0 : i64, scratch_operands = 2 : i64, tpu.core_type = #tpu.core_type<tc>, window_params = [{transform_indices = @transform_0, window_bounds = array<i64: 4, 8, 512>}, {transform_indices = @transform_1, window_bounds = array<i64: 8, 8, 128>}, {transform_indices = @transform_2, window_bounds = array<i64: 8, 128>}, {transform_indices = @transform_3, window_bounds = array<i64: 8, 128>}, {pipeline_mode = #tpu.pipeline_mode<synchronous>, transform_indices = @transform_4, window_bounds = array<i64: 128, 512>}, {pipeline_mode = #tpu.pipeline_mode<synchronous>, transform_indices = @transform_5, window_bounds = array<i64: 128, 512>}, {transform_indices = @transform_6, window_bounds = array<i64: 4, 8, 128>}]} {
    %c0_i32 = arith.constant 0 : i32
    %0 = arith.cmpi eq, %arg1, %c0_i32 : i32
    %1 = arith.extui %0 : i1 to i32
    %c0_i32_0 = arith.constant 0 : i32
    %2 = arith.cmpi ne, %1, %c0_i32_0 : i32
    scf.if %2 {
      %c0_112 = arith.constant 0 : index
      %c0_113 = arith.constant 0 : index
      %263 = vector.load %arg4[%c0_112, %c0_113] : memref<8x128xf32, #tpu.memory_space<vmem>>, vector<8x128xf32>
      %c0_114 = arith.constant 0 : index
      %c0_115 = arith.constant 0 : index
      %264 = vector.load %arg9[%c0_114, %c0_115] : memref<8x128xf32, #tpu.memory_space<vmem>>, vector<8x128xf32>
      tpu.vector_store %arg9[%c0_114, %c0_115], %263 {strides = array<i32>} : memref<8x128xf32, #tpu.memory_space<vmem>>, vector<8x128xf32>,
      %c0_116 = arith.constant 0 : index
      %c0_117 = arith.constant 0 : index
      %265 = vector.load %arg5[%c0_116, %c0_117] : memref<8x128xf32, #tpu.memory_space<vmem>>, vector<8x128xf32>
      %c0_118 = arith.constant 0 : index
      %c0_119 = arith.constant 0 : index
      %266 = vector.load %arg10[%c0_118, %c0_119] : memref<8x128xf32, #tpu.memory_space<vmem>>, vector<8x128xf32>
      tpu.vector_store %arg10[%c0_118, %c0_119], %265 {strides = array<i32>} : memref<8x128xf32, #tpu.memory_space<vmem>>, vector<8x128xf32>,
    } else {
    }
    %c0_i32_1 = arith.constant 0 : i32
    %c0 = arith.constant 0 : index
    %c0_2 = arith.constant 0 : index
    %3 = vector.load %arg9[%c0, %c0_2] : memref<8x128xf32, #tpu.memory_space<vmem>>, vector<8x128xf32>
    %c0_3 = arith.constant 0 : index
    %c0_4 = arith.constant 0 : index
    %4 = vector.load %arg10[%c0_3, %c0_4] : memref<8x128xf32, #tpu.memory_space<vmem>>, vector<8x128xf32>
    %c0_5 = arith.constant 0 : index
    %c0_6 = arith.constant 0 : index
    %c0_7 = arith.constant 0 : index
    %5 = vector.load %arg3[%c0_5, %c0_6, %c0_7] : memref<8x8x128xbf16, #tpu.memory_space<vmem>>, vector<8x8x128xbf16>
    %6 = arith.extf %5 : vector<8x8x128xbf16> to vector<8x8x128xf32>
    %7 = vector.shape_cast %3 : vector<8x128xf32> to vector<8x1x128xf32>
    %8 = vector.broadcast %7 : vector<8x1x128xf32> to vector<8x8x128xf32>
    %9 = arith.mulf %6, %8 : vector<8x8x128xf32>
    %cst = arith.constant dense<0.000000e+00> : vector<8x8xf32>
    %10 = vector.multi_reduction <add>, %9, %cst [2] : vector<8x8x128xf32> to vector<8x8xf32>
    %cst_8 = arith.constant dense<0xFF800000> : vector<8xf32>
    %11 = vector.multi_reduction <maximumf>, %10, %cst_8 [1] : vector<8x8xf32> to vector<8xf32>
    %12 = vector.shape_cast %11 : vector<8xf32> to vector<8x1xf32>
    %13 = vector.broadcast %12 : vector<8x1xf32> to vector<8x8xf32>
    %14 = arith.subf %10, %13 : vector<8x8xf32>
    %15 = math.exp %14 : vector<8x8xf32>
    %cst_9 = arith.constant dense<0.000000e+00> : vector<8xf32>
    %16 = vector.multi_reduction <add>, %15, %cst_9 [1] : vector<8x8xf32> to vector<8xf32>
    %17 = vector.shape_cast %16 : vector<8xf32> to vector<8x1xf32>
    %18 = tpu.reciprocal %17 {approx = true} : vector<8x1xf32> -> vector<8x1xf32>
    %19 = vector.shape_cast %15 : vector<8x8xf32> to vector<8x1x8xf32>
    %20 = arith.truncf %19 : vector<8x1x8xf32> to vector<8x1x8xbf16>
    "tpu.trace_start"() <{level = 10 : i32, message = "bqs,bsh->bqh"}> : () -> ()
    %cst_10 = arith.constant dense<0.000000e+00> : vector<8x1x128xf32>
    %21 = tpu.matmul %20, %5, %cst_10 {dimension_numbers = #tpu.dot_dimension_numbers<[2], [1], [1], [2], [0, 0, 0, 1, 1, 2], [0], [0]>} : vector<8x1x8xbf16>, vector<8x8x128xbf16>, vector<8x1x128xf32> -> vector<8x1x128xf32>
    "tpu.trace_stop"() : () -> ()
    %22 = vector.shape_cast %21 : vector<8x1x128xf32> to vector<8x128xf32>
    %23 = vector.broadcast %18 : vector<8x1xf32> to vector<8x128xf32>
    %24 = arith.mulf %22, %23 : vector<8x128xf32>
    %25 = arith.index_cast %c0_i32_1 : i32 to index
    %c0_11 = arith.constant 0 : index
    %c0_12 = arith.constant 0 : index
    %26 = vector.load %arg2[%25, %c0_11, %c0_12] : memref<4x8x512xf32, #tpu.memory_space<vmem>>, vector<1x8x512xf32>
    %27 = vector.shape_cast %26 : vector<1x8x512xf32> to vector<8x512xf32>
    %28 = arith.truncf %24 : vector<8x128xf32> to vector<8x128xbf16>
    %c0_13 = arith.constant 0 : index
    %c0_14 = arith.constant 0 : index
    %29 = vector.load %arg6[%c0_13, %c0_14] : memref<128x512xbf16, #tpu.memory_space<vmem>>, vector<128x512xbf16>
    %cst_15 = arith.constant dense<0.000000e+00> : vector<8x512xf32>
    %30 = tpu.matmul %28, %29, %cst_15 {dimension_numbers = #tpu.dot_dimension_numbers<[1], [0], [0], [1], [0, 0, 1, 1], [], []>} : vector<8x128xbf16>, vector<128x512xbf16>, vector<8x512xf32> -> vector<8x512xf32>
    %31 = arith.addf %27, %30 : vector<8x512xf32>
    %32 = arith.truncf %3 : vector<8x128xf32> to vector<8x128xbf16>
    %c0_16 = arith.constant 0 : index
    %c0_17 = arith.constant 0 : index
    %33 = vector.load %arg7[%c0_16, %c0_17] : memref<128x512xbf16, #tpu.memory_space<vmem>>, vector<128x512xbf16>
    %cst_18 = arith.constant dense<0.000000e+00> : vector<8x512xf32>
    %34 = tpu.matmul %32, %33, %cst_18 {dimension_numbers = #tpu.dot_dimension_numbers<[1], [0], [0], [1], [0, 0, 1, 1], [], []>} : vector<8x128xbf16>, vector<128x512xbf16>, vector<8x512xf32> -> vector<8x512xf32>
    %35 = arith.addf %31, %34 : vector<8x512xf32>
    %36 = vector.extract_strided_slice %35 {offsets = [0, 0], sizes = [8, 128], strides = [1, 1]} : vector<8x512xf32> to vector<8x128xf32>
    %37 = arith.negf %36 : vector<8x128xf32>
    %38 = math.exp %37 : vector<8x128xf32>
    %cst_19 = arith.constant 1.000000e+00 : f32
    %39 = vector.broadcast %cst_19 : f32 to vector<8x128xf32>
    %40 = arith.addf %39, %38 : vector<8x128xf32>
    %41 = arith.divf %39, %40 : vector<8x128xf32>
    %42 = vector.extract_strided_slice %35 {offsets = [0, 128], sizes = [8, 128], strides = [1, 1]} : vector<8x512xf32> to vector<8x128xf32>
    %43 = arith.negf %42 : vector<8x128xf32>
    %44 = math.exp %43 : vector<8x128xf32>
    %cst_20 = arith.constant 1.000000e+00 : f32
    %45 = vector.broadcast %cst_20 : f32 to vector<8x128xf32>
    %46 = arith.addf %45, %44 : vector<8x128xf32>
    %47 = arith.divf %45, %46 : vector<8x128xf32>
    %48 = vector.extract_strided_slice %35 {offsets = [0, 256], sizes = [8, 128], strides = [1, 1]} : vector<8x512xf32> to vector<8x128xf32>
    %49 = math.tanh %48 : vector<8x128xf32>
    %50 = vector.extract_strided_slice %35 {offsets = [0, 384], sizes = [8, 128], strides = [1, 1]} : vector<8x512xf32> to vector<8x128xf32>
    %51 = arith.negf %50 : vector<8x128xf32>
    %52 = math.exp %51 : vector<8x128xf32>
    %cst_21 = arith.constant 1.000000e+00 : f32
    %53 = vector.broadcast %cst_21 : f32 to vector<8x128xf32>
    %54 = arith.addf %53, %52 : vector<8x128xf32>
    %55 = arith.divf %53, %54 : vector<8x128xf32>
    %56 = arith.mulf %47, %4 : vector<8x128xf32>
    %57 = arith.mulf %41, %49 : vector<8x128xf32>
    %58 = arith.addf %56, %57 : vector<8x128xf32>
    %59 = math.tanh %58 : vector<8x128xf32>
    %60 = arith.mulf %55, %59 : vector<8x128xf32>
    %c0_22 = arith.constant 0 : index
    %c0_23 = arith.constant 0 : index
    %61 = vector.load %arg9[%c0_22, %c0_23] : memref<8x128xf32, #tpu.memory_space<vmem>>, vector<8x128xf32>
    tpu.vector_store %arg9[%c0_22, %c0_23], %60 {strides = array<i32>} : memref<8x128xf32, #tpu.memory_space<vmem>>, vector<8x128xf32>,
    %c0_24 = arith.constant 0 : index
    %c0_25 = arith.constant 0 : index
    %62 = vector.load %arg10[%c0_24, %c0_25] : memref<8x128xf32, #tpu.memory_space<vmem>>, vector<8x128xf32>
    tpu.vector_store %arg10[%c0_24, %c0_25], %58 {strides = array<i32>} : memref<8x128xf32, #tpu.memory_space<vmem>>, vector<8x128xf32>,
    %63 = arith.truncf %60 : vector<8x128xf32> to vector<8x128xbf16>
    %64 = arith.index_cast %c0_i32_1 : i32 to index
    %c0_26 = arith.constant 0 : index
    %c0_27 = arith.constant 0 : index
    %65 = vector.load %arg8[%64, %c0_26, %c0_27] : memref<4x8x128xbf16, #tpu.memory_space<vmem>>, vector<1x8x128xbf16>
    %66 = vector.shape_cast %65 : vector<1x8x128xbf16> to vector<8x128xbf16>
    %67 = vector.shape_cast %63 : vector<8x128xbf16> to vector<1x8x128xbf16>
    tpu.vector_store %arg8[%64, %c0_26, %c0_27], %67 {strides = array<i32>} : memref<4x8x128xbf16, #tpu.memory_space<vmem>>, vector<1x8x128xbf16>,
    %c1_i32 = arith.constant 1 : i32
    %c0_28 = arith.constant 0 : index
    %c0_29 = arith.constant 0 : index
    %68 = vector.load %arg9[%c0_28, %c0_29] : memref<8x128xf32, #tpu.memory_space<vmem>>, vector<8x128xf32>
    %c0_30 = arith.constant 0 : index
    %c0_31 = arith.constant 0 : index
    %69 = vector.load %arg10[%c0_30, %c0_31] : memref<8x128xf32, #tpu.memory_space<vmem>>, vector<8x128xf32>
    %c0_32 = arith.constant 0 : index
    %c0_33 = arith.constant 0 : index
    %c0_34 = arith.constant 0 : index
    %70 = vector.load %arg3[%c0_32, %c0_33, %c0_34] : memref<8x8x128xbf16, #tpu.memory_space<vmem>>, vector<8x8x128xbf16>
    %71 = arith.extf %70 : vector<8x8x128xbf16> to vector<8x8x128xf32>
    %72 = vector.shape_cast %68 : vector<8x128xf32> to vector<8x1x128xf32>
    %73 = vector.broadcast %72 : vector<8x1x128xf32> to vector<8x8x128xf32>
    %74 = arith.mulf %71, %73 : vector<8x8x128xf32>
    %cst_35 = arith.constant dense<0.000000e+00> : vector<8x8xf32>
    %75 = vector.multi_reduction <add>, %74, %cst_35 [2] : vector<8x8x128xf32> to vector<8x8xf32>
    %cst_36 = arith.constant dense<0xFF800000> : vector<8xf32>
    %76 = vector.multi_reduction <maximumf>, %75, %cst_36 [1] : vector<8x8xf32> to vector<8xf32>
    %77 = vector.shape_cast %76 : vector<8xf32> to vector<8x1xf32>
    %78 = vector.broadcast %77 : vector<8x1xf32> to vector<8x8xf32>
    %79 = arith.subf %75, %78 : vector<8x8xf32>
    %80 = math.exp %79 : vector<8x8xf32>
    %cst_37 = arith.constant dense<0.000000e+00> : vector<8xf32>
    %81 = vector.multi_reduction <add>, %80, %cst_37 [1] : vector<8x8xf32> to vector<8xf32>
    %82 = vector.shape_cast %81 : vector<8xf32> to vector<8x1xf32>
    %83 = tpu.reciprocal %82 {approx = true} : vector<8x1xf32> -> vector<8x1xf32>
    %84 = vector.shape_cast %80 : vector<8x8xf32> to vector<8x1x8xf32>
    %85 = arith.truncf %84 : vector<8x1x8xf32> to vector<8x1x8xbf16>
    "tpu.trace_start"() <{level = 10 : i32, message = "bqs,bsh->bqh"}> : () -> ()
    %cst_38 = arith.constant dense<0.000000e+00> : vector<8x1x128xf32>
    %86 = tpu.matmul %85, %70, %cst_38 {dimension_numbers = #tpu.dot_dimension_numbers<[2], [1], [1], [2], [0, 0, 0, 1, 1, 2], [0], [0]>} : vector<8x1x8xbf16>, vector<8x8x128xbf16>, vector<8x1x128xf32> -> vector<8x1x128xf32>
    "tpu.trace_stop"() : () -> ()
    %87 = vector.shape_cast %86 : vector<8x1x128xf32> to vector<8x128xf32>
    %88 = vector.broadcast %83 : vector<8x1xf32> to vector<8x128xf32>
    %89 = arith.mulf %87, %88 : vector<8x128xf32>
    %90 = arith.index_cast %c1_i32 : i32 to index
    %c0_39 = arith.constant 0 : index
    %c0_40 = arith.constant 0 : index
    %91 = vector.load %arg2[%90, %c0_39, %c0_40] : memref<4x8x512xf32, #tpu.memory_space<vmem>>, vector<1x8x512xf32>
    %92 = vector.shape_cast %91 : vector<1x8x512xf32> to vector<8x512xf32>
    %93 = arith.truncf %89 : vector<8x128xf32> to vector<8x128xbf16>
    %c0_41 = arith.constant 0 : index
    %c0_42 = arith.constant 0 : index
    %94 = vector.load %arg6[%c0_41, %c0_42] : memref<128x512xbf16, #tpu.memory_space<vmem>>, vector<128x512xbf16>
    %cst_43 = arith.constant dense<0.000000e+00> : vector<8x512xf32>
    %95 = tpu.matmul %93, %94, %cst_43 {dimension_numbers = #tpu.dot_dimension_numbers<[1], [0], [0], [1], [0, 0, 1, 1], [], []>} : vector<8x128xbf16>, vector<128x512xbf16>, vector<8x512xf32> -> vector<8x512xf32>
    %96 = arith.addf %92, %95 : vector<8x512xf32>
    %97 = arith.truncf %68 : vector<8x128xf32> to vector<8x128xbf16>
    %c0_44 = arith.constant 0 : index
    %c0_45 = arith.constant 0 : index
    %98 = vector.load %arg7[%c0_44, %c0_45] : memref<128x512xbf16, #tpu.memory_space<vmem>>, vector<128x512xbf16>
    %cst_46 = arith.constant dense<0.000000e+00> : vector<8x512xf32>
    %99 = tpu.matmul %97, %98, %cst_46 {dimension_numbers = #tpu.dot_dimension_numbers<[1], [0], [0], [1], [0, 0, 1, 1], [], []>} : vector<8x128xbf16>, vector<128x512xbf16>, vector<8x512xf32> -> vector<8x512xf32>
    %100 = arith.addf %96, %99 : vector<8x512xf32>
    %101 = vector.extract_strided_slice %100 {offsets = [0, 0], sizes = [8, 128], strides = [1, 1]} : vector<8x512xf32> to vector<8x128xf32>
    %102 = arith.negf %101 : vector<8x128xf32>
    %103 = math.exp %102 : vector<8x128xf32>
    %cst_47 = arith.constant 1.000000e+00 : f32
    %104 = vector.broadcast %cst_47 : f32 to vector<8x128xf32>
    %105 = arith.addf %104, %103 : vector<8x128xf32>
    %106 = arith.divf %104, %105 : vector<8x128xf32>
    %107 = vector.extract_strided_slice %100 {offsets = [0, 128], sizes = [8, 128], strides = [1, 1]} : vector<8x512xf32> to vector<8x128xf32>
    %108 = arith.negf %107 : vector<8x128xf32>
    %109 = math.exp %108 : vector<8x128xf32>
    %cst_48 = arith.constant 1.000000e+00 : f32
    %110 = vector.broadcast %cst_48 : f32 to vector<8x128xf32>
    %111 = arith.addf %110, %109 : vector<8x128xf32>
    %112 = arith.divf %110, %111 : vector<8x128xf32>
    %113 = vector.extract_strided_slice %100 {offsets = [0, 256], sizes = [8, 128], strides = [1, 1]} : vector<8x512xf32> to vector<8x128xf32>
    %114 = math.tanh %113 : vector<8x128xf32>
    %115 = vector.extract_strided_slice %100 {offsets = [0, 384], sizes = [8, 128], strides = [1, 1]} : vector<8x512xf32> to vector<8x128xf32>
    %116 = arith.negf %115 : vector<8x128xf32>
    %117 = math.exp %116 : vector<8x128xf32>
    %cst_49 = arith.constant 1.000000e+00 : f32
    %118 = vector.broadcast %cst_49 : f32 to vector<8x128xf32>
    %119 = arith.addf %118, %117 : vector<8x128xf32>
    %120 = arith.divf %118, %119 : vector<8x128xf32>
    %121 = arith.mulf %112, %69 : vector<8x128xf32>
    %122 = arith.mulf %106, %114 : vector<8x128xf32>
    %123 = arith.addf %121, %122 : vector<8x128xf32>
    %124 = math.tanh %123 : vector<8x128xf32>
    %125 = arith.mulf %120, %124 : vector<8x128xf32>
    %c0_50 = arith.constant 0 : index
    %c0_51 = arith.constant 0 : index
    %126 = vector.load %arg9[%c0_50, %c0_51] : memref<8x128xf32, #tpu.memory_space<vmem>>, vector<8x128xf32>
    tpu.vector_store %arg9[%c0_50, %c0_51], %125 {strides = array<i32>} : memref<8x128xf32, #tpu.memory_space<vmem>>, vector<8x128xf32>,
    %c0_52 = arith.constant 0 : index
    %c0_53 = arith.constant 0 : index
    %127 = vector.load %arg10[%c0_52, %c0_53] : memref<8x128xf32, #tpu.memory_space<vmem>>, vector<8x128xf32>
    tpu.vector_store %arg10[%c0_52, %c0_53], %123 {strides = array<i32>} : memref<8x128xf32, #tpu.memory_space<vmem>>, vector<8x128xf32>,
    %128 = arith.truncf %125 : vector<8x128xf32> to vector<8x128xbf16>
    %129 = arith.index_cast %c1_i32 : i32 to index
    %c0_54 = arith.constant 0 : index
    %c0_55 = arith.constant 0 : index
    %130 = vector.load %arg8[%129, %c0_54, %c0_55] : memref<4x8x128xbf16, #tpu.memory_space<vmem>>, vector<1x8x128xbf16>
    %131 = vector.shape_cast %130 : vector<1x8x128xbf16> to vector<8x128xbf16>
    %132 = vector.shape_cast %128 : vector<8x128xbf16> to vector<1x8x128xbf16>
    tpu.vector_store %arg8[%129, %c0_54, %c0_55], %132 {strides = array<i32>} : memref<4x8x128xbf16, #tpu.memory_space<vmem>>, vector<1x8x128xbf16>,
    %c2_i32 = arith.constant 2 : i32
    %c0_56 = arith.constant 0 : index
    %c0_57 = arith.constant 0 : index
    %133 = vector.load %arg9[%c0_56, %c0_57] : memref<8x128xf32, #tpu.memory_space<vmem>>, vector<8x128xf32>
    %c0_58 = arith.constant 0 : index
    %c0_59 = arith.constant 0 : index
    %134 = vector.load %arg10[%c0_58, %c0_59] : memref<8x128xf32, #tpu.memory_space<vmem>>, vector<8x128xf32>
    %c0_60 = arith.constant 0 : index
    %c0_61 = arith.constant 0 : index
    %c0_62 = arith.constant 0 : index
    %135 = vector.load %arg3[%c0_60, %c0_61, %c0_62] : memref<8x8x128xbf16, #tpu.memory_space<vmem>>, vector<8x8x128xbf16>
    %136 = arith.extf %135 : vector<8x8x128xbf16> to vector<8x8x128xf32>
    %137 = vector.shape_cast %133 : vector<8x128xf32> to vector<8x1x128xf32>
    %138 = vector.broadcast %137 : vector<8x1x128xf32> to vector<8x8x128xf32>
    %139 = arith.mulf %136, %138 : vector<8x8x128xf32>
    %cst_63 = arith.constant dense<0.000000e+00> : vector<8x8xf32>
    %140 = vector.multi_reduction <add>, %139, %cst_63 [2] : vector<8x8x128xf32> to vector<8x8xf32>
    %cst_64 = arith.constant dense<0xFF800000> : vector<8xf32>
    %141 = vector.multi_reduction <maximumf>, %140, %cst_64 [1] : vector<8x8xf32> to vector<8xf32>
    %142 = vector.shape_cast %141 : vector<8xf32> to vector<8x1xf32>
    %143 = vector.broadcast %142 : vector<8x1xf32> to vector<8x8xf32>
    %144 = arith.subf %140, %143 : vector<8x8xf32>
    %145 = math.exp %144 : vector<8x8xf32>
    %cst_65 = arith.constant dense<0.000000e+00> : vector<8xf32>
    %146 = vector.multi_reduction <add>, %145, %cst_65 [1] : vector<8x8xf32> to vector<8xf32>
    %147 = vector.shape_cast %146 : vector<8xf32> to vector<8x1xf32>
    %148 = tpu.reciprocal %147 {approx = true} : vector<8x1xf32> -> vector<8x1xf32>
    %149 = vector.shape_cast %145 : vector<8x8xf32> to vector<8x1x8xf32>
    %150 = arith.truncf %149 : vector<8x1x8xf32> to vector<8x1x8xbf16>
    "tpu.trace_start"() <{level = 10 : i32, message = "bqs,bsh->bqh"}> : () -> ()
    %cst_66 = arith.constant dense<0.000000e+00> : vector<8x1x128xf32>
    %151 = tpu.matmul %150, %135, %cst_66 {dimension_numbers = #tpu.dot_dimension_numbers<[2], [1], [1], [2], [0, 0, 0, 1, 1, 2], [0], [0]>} : vector<8x1x8xbf16>, vector<8x8x128xbf16>, vector<8x1x128xf32> -> vector<8x1x128xf32>
    "tpu.trace_stop"() : () -> ()
    %152 = vector.shape_cast %151 : vector<8x1x128xf32> to vector<8x128xf32>
    %153 = vector.broadcast %148 : vector<8x1xf32> to vector<8x128xf32>
    %154 = arith.mulf %152, %153 : vector<8x128xf32>
    %155 = arith.index_cast %c2_i32 : i32 to index
    %c0_67 = arith.constant 0 : index
    %c0_68 = arith.constant 0 : index
    %156 = vector.load %arg2[%155, %c0_67, %c0_68] : memref<4x8x512xf32, #tpu.memory_space<vmem>>, vector<1x8x512xf32>
    %157 = vector.shape_cast %156 : vector<1x8x512xf32> to vector<8x512xf32>
    %158 = arith.truncf %154 : vector<8x128xf32> to vector<8x128xbf16>
    %c0_69 = arith.constant 0 : index
    %c0_70 = arith.constant 0 : index
    %159 = vector.load %arg6[%c0_69, %c0_70] : memref<128x512xbf16, #tpu.memory_space<vmem>>, vector<128x512xbf16>
    %cst_71 = arith.constant dense<0.000000e+00> : vector<8x512xf32>
    %160 = tpu.matmul %158, %159, %cst_71 {dimension_numbers = #tpu.dot_dimension_numbers<[1], [0], [0], [1], [0, 0, 1, 1], [], []>} : vector<8x128xbf16>, vector<128x512xbf16>, vector<8x512xf32> -> vector<8x512xf32>
    %161 = arith.addf %157, %160 : vector<8x512xf32>
    %162 = arith.truncf %133 : vector<8x128xf32> to vector<8x128xbf16>
    %c0_72 = arith.constant 0 : index
    %c0_73 = arith.constant 0 : index
    %163 = vector.load %arg7[%c0_72, %c0_73] : memref<128x512xbf16, #tpu.memory_space<vmem>>, vector<128x512xbf16>
    %cst_74 = arith.constant dense<0.000000e+00> : vector<8x512xf32>
    %164 = tpu.matmul %162, %163, %cst_74 {dimension_numbers = #tpu.dot_dimension_numbers<[1], [0], [0], [1], [0, 0, 1, 1], [], []>} : vector<8x128xbf16>, vector<128x512xbf16>, vector<8x512xf32> -> vector<8x512xf32>
    %165 = arith.addf %161, %164 : vector<8x512xf32>
    %166 = vector.extract_strided_slice %165 {offsets = [0, 0], sizes = [8, 128], strides = [1, 1]} : vector<8x512xf32> to vector<8x128xf32>
    %167 = arith.negf %166 : vector<8x128xf32>
    %168 = math.exp %167 : vector<8x128xf32>
    %cst_75 = arith.constant 1.000000e+00 : f32
    %169 = vector.broadcast %cst_75 : f32 to vector<8x128xf32>
    %170 = arith.addf %169, %168 : vector<8x128xf32>
    %171 = arith.divf %169, %170 : vector<8x128xf32>
    %172 = vector.extract_strided_slice %165 {offsets = [0, 128], sizes = [8, 128], strides = [1, 1]} : vector<8x512xf32> to vector<8x128xf32>
    %173 = arith.negf %172 : vector<8x128xf32>
    %174 = math.exp %173 : vector<8x128xf32>
    %cst_76 = arith.constant 1.000000e+00 : f32
    %175 = vector.broadcast %cst_76 : f32 to vector<8x128xf32>
    %176 = arith.addf %175, %174 : vector<8x128xf32>
    %177 = arith.divf %175, %176 : vector<8x128xf32>
    %178 = vector.extract_strided_slice %165 {offsets = [0, 256], sizes = [8, 128], strides = [1, 1]} : vector<8x512xf32> to vector<8x128xf32>
    %179 = math.tanh %178 : vector<8x128xf32>
    %180 = vector.extract_strided_slice %165 {offsets = [0, 384], sizes = [8, 128], strides = [1, 1]} : vector<8x512xf32> to vector<8x128xf32>
    %181 = arith.negf %180 : vector<8x128xf32>
    %182 = math.exp %181 : vector<8x128xf32>
    %cst_77 = arith.constant 1.000000e+00 : f32
    %183 = vector.broadcast %cst_77 : f32 to vector<8x128xf32>
    %184 = arith.addf %183, %182 : vector<8x128xf32>
    %185 = arith.divf %183, %184 : vector<8x128xf32>
    %186 = arith.mulf %177, %134 : vector<8x128xf32>
    %187 = arith.mulf %171, %179 : vector<8x128xf32>
    %188 = arith.addf %186, %187 : vector<8x128xf32>
    %189 = math.tanh %188 : vector<8x128xf32>
    %190 = arith.mulf %185, %189 : vector<8x128xf32>
    %c0_78 = arith.constant 0 : index
    %c0_79 = arith.constant 0 : index
    %191 = vector.load %arg9[%c0_78, %c0_79] : memref<8x128xf32, #tpu.memory_space<vmem>>, vector<8x128xf32>
    tpu.vector_store %arg9[%c0_78, %c0_79], %190 {strides = array<i32>} : memref<8x128xf32, #tpu.memory_space<vmem>>, vector<8x128xf32>,
    %c0_80 = arith.constant 0 : index
    %c0_81 = arith.constant 0 : index
    %192 = vector.load %arg10[%c0_80, %c0_81] : memref<8x128xf32, #tpu.memory_space<vmem>>, vector<8x128xf32>
    tpu.vector_store %arg10[%c0_80, %c0_81], %188 {strides = array<i32>} : memref<8x128xf32, #tpu.memory_space<vmem>>, vector<8x128xf32>,
    %193 = arith.truncf %190 : vector<8x128xf32> to vector<8x128xbf16>
    %194 = arith.index_cast %c2_i32 : i32 to index
    %c0_82 = arith.constant 0 : index
    %c0_83 = arith.constant 0 : index
    %195 = vector.load %arg8[%194, %c0_82, %c0_83] : memref<4x8x128xbf16, #tpu.memory_space<vmem>>, vector<1x8x128xbf16>
    %196 = vector.shape_cast %195 : vector<1x8x128xbf16> to vector<8x128xbf16>
    %197 = vector.shape_cast %193 : vector<8x128xbf16> to vector<1x8x128xbf16>
    tpu.vector_store %arg8[%194, %c0_82, %c0_83], %197 {strides = array<i32>} : memref<4x8x128xbf16, #tpu.memory_space<vmem>>, vector<1x8x128xbf16>,
    %c3_i32 = arith.constant 3 : i32
    %c0_84 = arith.constant 0 : index
    %c0_85 = arith.constant 0 : index
    %198 = vector.load %arg9[%c0_84, %c0_85] : memref<8x128xf32, #tpu.memory_space<vmem>>, vector<8x128xf32>
    %c0_86 = arith.constant 0 : index
    %c0_87 = arith.constant 0 : index
    %199 = vector.load %arg10[%c0_86, %c0_87] : memref<8x128xf32, #tpu.memory_space<vmem>>, vector<8x128xf32>
    %c0_88 = arith.constant 0 : index
    %c0_89 = arith.constant 0 : index
    %c0_90 = arith.constant 0 : index
    %200 = vector.load %arg3[%c0_88, %c0_89, %c0_90] : memref<8x8x128xbf16, #tpu.memory_space<vmem>>, vector<8x8x128xbf16>
    %201 = arith.extf %200 : vector<8x8x128xbf16> to vector<8x8x128xf32>
    %202 = vector.shape_cast %198 : vector<8x128xf32> to vector<8x1x128xf32>
    %203 = vector.broadcast %202 : vector<8x1x128xf32> to vector<8x8x128xf32>
    %204 = arith.mulf %201, %203 : vector<8x8x128xf32>
    %cst_91 = arith.constant dense<0.000000e+00> : vector<8x8xf32>
    %205 = vector.multi_reduction <add>, %204, %cst_91 [2] : vector<8x8x128xf32> to vector<8x8xf32>
    %cst_92 = arith.constant dense<0xFF800000> : vector<8xf32>
    %206 = vector.multi_reduction <maximumf>, %205, %cst_92 [1] : vector<8x8xf32> to vector<8xf32>
    %207 = vector.shape_cast %206 : vector<8xf32> to vector<8x1xf32>
    %208 = vector.broadcast %207 : vector<8x1xf32> to vector<8x8xf32>
    %209 = arith.subf %205, %208 : vector<8x8xf32>
    %210 = math.exp %209 : vector<8x8xf32>
    %cst_93 = arith.constant dense<0.000000e+00> : vector<8xf32>
    %211 = vector.multi_reduction <add>, %210, %cst_93 [1] : vector<8x8xf32> to vector<8xf32>
    %212 = vector.shape_cast %211 : vector<8xf32> to vector<8x1xf32>
    %213 = tpu.reciprocal %212 {approx = true} : vector<8x1xf32> -> vector<8x1xf32>
    %214 = vector.shape_cast %210 : vector<8x8xf32> to vector<8x1x8xf32>
    %215 = arith.truncf %214 : vector<8x1x8xf32> to vector<8x1x8xbf16>
    "tpu.trace_start"() <{level = 10 : i32, message = "bqs,bsh->bqh"}> : () -> ()
    %cst_94 = arith.constant dense<0.000000e+00> : vector<8x1x128xf32>
    %216 = tpu.matmul %215, %200, %cst_94 {dimension_numbers = #tpu.dot_dimension_numbers<[2], [1], [1], [2], [0, 0, 0, 1, 1, 2], [0], [0]>} : vector<8x1x8xbf16>, vector<8x8x128xbf16>, vector<8x1x128xf32> -> vector<8x1x128xf32>
    "tpu.trace_stop"() : () -> ()
    %217 = vector.shape_cast %216 : vector<8x1x128xf32> to vector<8x128xf32>
    %218 = vector.broadcast %213 : vector<8x1xf32> to vector<8x128xf32>
    %219 = arith.mulf %217, %218 : vector<8x128xf32>
    %220 = arith.index_cast %c3_i32 : i32 to index
    %c0_95 = arith.constant 0 : index
    %c0_96 = arith.constant 0 : index
    %221 = vector.load %arg2[%220, %c0_95, %c0_96] : memref<4x8x512xf32, #tpu.memory_space<vmem>>, vector<1x8x512xf32>
    %222 = vector.shape_cast %221 : vector<1x8x512xf32> to vector<8x512xf32>
    %223 = arith.truncf %219 : vector<8x128xf32> to vector<8x128xbf16>
    %c0_97 = arith.constant 0 : index
    %c0_98 = arith.constant 0 : index
    %224 = vector.load %arg6[%c0_97, %c0_98] : memref<128x512xbf16, #tpu.memory_space<vmem>>, vector<128x512xbf16>
    %cst_99 = arith.constant dense<0.000000e+00> : vector<8x512xf32>
    %225 = tpu.matmul %223, %224, %cst_99 {dimension_numbers = #tpu.dot_dimension_numbers<[1], [0], [0], [1], [0, 0, 1, 1], [], []>} : vector<8x128xbf16>, vector<128x512xbf16>, vector<8x512xf32> -> vector<8x512xf32>
    %226 = arith.addf %222, %225 : vector<8x512xf32>
    %227 = arith.truncf %198 : vector<8x128xf32> to vector<8x128xbf16>
    %c0_100 = arith.constant 0 : index
    %c0_101 = arith.constant 0 : index
    %228 = vector.load %arg7[%c0_100, %c0_101] : memref<128x512xbf16, #tpu.memory_space<vmem>>, vector<128x512xbf16>
    %cst_102 = arith.constant dense<0.000000e+00> : vector<8x512xf32>
    %229 = tpu.matmul %227, %228, %cst_102 {dimension_numbers = #tpu.dot_dimension_numbers<[1], [0], [0], [1], [0, 0, 1, 1], [], []>} : vector<8x128xbf16>, vector<128x512xbf16>, vector<8x512xf32> -> vector<8x512xf32>
    %230 = arith.addf %226, %229 : vector<8x512xf32>
    %231 = vector.extract_strided_slice %230 {offsets = [0, 0], sizes = [8, 128], strides = [1, 1]} : vector<8x512xf32> to vector<8x128xf32>
    %232 = arith.negf %231 : vector<8x128xf32>
    %233 = math.exp %232 : vector<8x128xf32>
    %cst_103 = arith.constant 1.000000e+00 : f32
    %234 = vector.broadcast %cst_103 : f32 to vector<8x128xf32>
    %235 = arith.addf %234, %233 : vector<8x128xf32>
    %236 = arith.divf %234, %235 : vector<8x128xf32>
    %237 = vector.extract_strided_slice %230 {offsets = [0, 128], sizes = [8, 128], strides = [1, 1]} : vector<8x512xf32> to vector<8x128xf32>
    %238 = arith.negf %237 : vector<8x128xf32>
    %239 = math.exp %238 : vector<8x128xf32>
    %cst_104 = arith.constant 1.000000e+00 : f32
    %240 = vector.broadcast %cst_104 : f32 to vector<8x128xf32>
    %241 = arith.addf %240, %239 : vector<8x128xf32>
    %242 = arith.divf %240, %241 : vector<8x128xf32>
    %243 = vector.extract_strided_slice %230 {offsets = [0, 256], sizes = [8, 128], strides = [1, 1]} : vector<8x512xf32> to vector<8x128xf32>
    %244 = math.tanh %243 : vector<8x128xf32>
    %245 = vector.extract_strided_slice %230 {offsets = [0, 384], sizes = [8, 128], strides = [1, 1]} : vector<8x512xf32> to vector<8x128xf32>
    %246 = arith.negf %245 : vector<8x128xf32>
    %247 = math.exp %246 : vector<8x128xf32>
    %cst_105 = arith.constant 1.000000e+00 : f32
    %248 = vector.broadcast %cst_105 : f32 to vector<8x128xf32>
    %249 = arith.addf %248, %247 : vector<8x128xf32>
    %250 = arith.divf %248, %249 : vector<8x128xf32>
    %251 = arith.mulf %242, %199 : vector<8x128xf32>
    %252 = arith.mulf %236, %244 : vector<8x128xf32>
    %253 = arith.addf %251, %252 : vector<8x128xf32>
    %254 = math.tanh %253 : vector<8x128xf32>
    %255 = arith.mulf %250, %254 : vector<8x128xf32>
    %c0_106 = arith.constant 0 : index
    %c0_107 = arith.constant 0 : index
    %256 = vector.load %arg9[%c0_106, %c0_107] : memref<8x128xf32, #tpu.memory_space<vmem>>, vector<8x128xf32>
    tpu.vector_store %arg9[%c0_106, %c0_107], %255 {strides = array<i32>} : memref<8x128xf32, #tpu.memory_space<vmem>>, vector<8x128xf32>,
    %c0_108 = arith.constant 0 : index
    %c0_109 = arith.constant 0 : index
    %257 = vector.load %arg10[%c0_108, %c0_109] : memref<8x128xf32, #tpu.memory_space<vmem>>, vector<8x128xf32>
    tpu.vector_store %arg10[%c0_108, %c0_109], %253 {strides = array<i32>} : memref<8x128xf32, #tpu.memory_space<vmem>>, vector<8x128xf32>,
    %258 = arith.truncf %255 : vector<8x128xf32> to vector<8x128xbf16>
    %259 = arith.index_cast %c3_i32 : i32 to index
    %c0_110 = arith.constant 0 : index
    %c0_111 = arith.constant 0 : index
    %260 = vector.load %arg8[%259, %c0_110, %c0_111] : memref<4x8x128xbf16, #tpu.memory_space<vmem>>, vector<1x8x128xbf16>
    %261 = vector.shape_cast %260 : vector<1x8x128xbf16> to vector<8x128xbf16>
    %262 = vector.shape_cast %258 : vector<8x128xbf16> to vector<1x8x128xbf16>
    tpu.vector_store %arg8[%259, %c0_110, %c0_111], %262 {strides = array<i32>} : memref<4x8x128xbf16, #tpu.memory_space<vmem>>, vector<1x8x128xbf16>,
    %c4_i32 = arith.constant 4 : i32
    return
  }
  func.func @transform_0(%arg0: i32, %arg1: i32) -> (i32, i32, i32) {
    %c0_i32 = arith.constant 0 : i32
    %c0_i32_0 = arith.constant 0 : i32
    return %arg1, %arg0, %c0_i32 : i32, i32, i32
  }
  func.func @transform_1(%arg0: i32, %arg1: i32) -> (i32, i32, i32) {
    %c0_i32 = arith.constant 0 : i32
    %c0_i32_0 = arith.constant 0 : i32
    %c0_i32_1 = arith.constant 0 : i32
    return %arg0, %c0_i32, %c0_i32_0 : i32, i32, i32
  }
  func.func @transform_2(%arg0: i32, %arg1: i32) -> (i32, i32) {
    %c0_i32 = arith.constant 0 : i32
    %c0_i32_0 = arith.constant 0 : i32
    return %arg0, %c0_i32 : i32, i32
  }
  func.func @transform_3(%arg0: i32, %arg1: i32) -> (i32, i32) {
    %c0_i32 = arith.constant 0 : i32
    %c0_i32_0 = arith.constant 0 : i32
    return %arg0, %c0_i32 : i32, i32
  }
  func.func @transform_4(%arg0: i32, %arg1: i32) -> (i32, i32) {
    %c0_i32 = arith.constant 0 : i32
    %c0_i32_0 = arith.constant 0 : i32
    %c0_i32_1 = arith.constant 0 : i32
    return %c0_i32, %c0_i32_0 : i32, i32
  }
  func.func @transform_5(%arg0: i32, %arg1: i32) -> (i32, i32) {
    %c0_i32 = arith.constant 0 : i32
    %c0_i32_0 = arith.constant 0 : i32
    %c0_i32_1 = arith.constant 0 : i32
    return %c0_i32, %c0_i32_0 : i32, i32
  }
  func.func @transform_6(%arg0: i32, %arg1: i32) -> (i32, i32, i32) {
    %c0_i32 = arith.constant 0 : i32
    %c0_i32_0 = arith.constant 0 : i32
    return %arg1, %arg0, %c0_i32 : i32, i32, i32
  }
}

module attributes {stable_mosaic.version = 11 : i64} {
  func.func @_matmul_bias_kernel(%arg0: i32, %arg1: i32, %arg2: memref<8x128xbf16, #tpu.memory_space<vmem>>, %arg3: memref<128x128xbf16, #tpu.memory_space<vmem>>, %arg4: memref<1x128xf32, #tpu.memory_space<vmem>>, %arg5: memref<8x128xf32, #tpu.memory_space<vmem>>) attributes {dimension_semantics = [#tpu.dimension_semantics<parallel>, #tpu.dimension_semantics<parallel>], iteration_bounds = array<i64: 1, 1>, scalar_prefetch = 0 : i64, scratch_operands = 0 : i64, tpu.core_type = #tpu.core_type<tc>, window_params = [{transform_indices = @transform_0, window_bounds = array<i64: 8, 128>}, {transform_indices = @transform_1, window_bounds = array<i64: 128, 128>}, {transform_indices = @transform_2, window_bounds = array<i64: 1, 128>}, {transform_indices = @transform_3, window_bounds = array<i64: 8, 128>}]} {
    %c0 = arith.constant 0 : index
    %c0_0 = arith.constant 0 : index
    %0 = vector.load %arg2[%c0, %c0_0] : memref<8x128xbf16, #tpu.memory_space<vmem>>, vector<8x128xbf16>
    %c0_1 = arith.constant 0 : index
    %c0_2 = arith.constant 0 : index
    %1 = vector.load %arg3[%c0_1, %c0_2] : memref<128x128xbf16, #tpu.memory_space<vmem>>, vector<128x128xbf16>
    %cst = arith.constant dense<0.000000e+00> : vector<8x128xf32>
    %2 = tpu.matmul %0, %1, %cst {dimension_numbers = #tpu.dot_dimension_numbers<[1], [0], [0], [1], [0, 0, 1, 1], [], []>} : vector<8x128xbf16>, vector<128x128xbf16>, vector<8x128xf32> -> vector<8x128xf32>
    %c0_3 = arith.constant 0 : index
    %c0_4 = arith.constant 0 : index
    %3 = vector.load %arg4[%c0_3, %c0_4] : memref<1x128xf32, #tpu.memory_space<vmem>>, vector<1x128xf32>
    %4 = vector.broadcast %3 : vector<1x128xf32> to vector<8x128xf32>
    %5 = arith.addf %2, %4 : vector<8x128xf32>
    %c0_5 = arith.constant 0 : index
    %c0_6 = arith.constant 0 : index
    %6 = vector.load %arg5[%c0_5, %c0_6] : memref<8x128xf32, #tpu.memory_space<vmem>>, vector<8x128xf32>
    tpu.vector_store %arg5[%c0_5, %c0_6], %5 {strides = array<i32>} : memref<8x128xf32, #tpu.memory_space<vmem>>, vector<8x128xf32>,
    return
  }
  func.func @transform_0(%arg0: i32, %arg1: i32) -> (i32, i32) {
    %c0_i32 = arith.constant 0 : i32
    %c0_i32_0 = arith.constant 0 : i32
    return %arg0, %c0_i32 : i32, i32
  }
  func.func @transform_1(%arg0: i32, %arg1: i32) -> (i32, i32) {
    %c0_i32 = arith.constant 0 : i32
    %c0_i32_0 = arith.constant 0 : i32
    return %c0_i32, %arg1 : i32, i32
  }
  func.func @transform_2(%arg0: i32, %arg1: i32) -> (i32, i32) {
    %c0_i32 = arith.constant 0 : i32
    %c0_i32_0 = arith.constant 0 : i32
    return %c0_i32, %arg1 : i32, i32
  }
  func.func @transform_3(%arg0: i32, %arg1: i32) -> (i32, i32) {
    %c0_i32 = arith.constant 0 : i32
    return %arg0, %arg1 : i32, i32
  }
}

</mosaic_0001>

<llo_original>
// kernel: decoder_forward.5
$region0: #{decoder_forward.5}
  #allocation0 [shape = 'u32[]', space=smem, size = 0x4, offset = 0x4, fixed_abs, tag = 'smem constant byte address 0x4 - core index']
  #allocation1 [shape = 'u32[144,128]{1,0:T(1,128)}', space=vmem, size = 0x12000, scoped, tag = 'internal scratch']
  %s0 = inlined_call_operand.hbm [shape: bf16[8,128], index: 0, kind: input, shape index: {}]
  %s1 = inlined_call_operand.hbm [shape: bf16[128,128], index: 1, kind: input, shape index: {}]
  %s2 = inlined_call_operand.hbm [shape: f32[1,128], index: 2, kind: input, shape index: {}]
  %s3 = inlined_call_operand.hbm [shape: f32[8,128], index: 3, kind: output, shape index: {}]
  %s4 = sld [smem:[#allocation0]]
  $region34: #{decoder_forward.5} parent=0
    _
  %s6 = ssub.s32 1, %s4
  %s7 = scalar_select 0, %s6, %s4
  $region1: #{decoder_forward.5} parent=0
    #allocation2 [shape = 'u8[2048]{0}', space=vmem, size = 0x800, scoped, tag = 'input window, operand 0, single buffered']
    #allocation3 [shape = 's32[1]{0}', space=sflag, size = 0x4, scoped, tag = 'scoped memory for decoder_forward.5']
    #allocation4 [shape = 's32[1]{0}', space=sflag, size = 0x4, scoped, tag = 'scoped memory for decoder_forward.5']
    #allocation5 [shape = 'u8[32768]{0}', space=vmem, size = 0x8000, scoped, tag = 'input window, operand 1, single buffered']
    #allocation6 [shape = 's32[1]{0}', space=sflag, size = 0x4, scoped, tag = 'scoped memory for decoder_forward.5']
    #allocation7 [shape = 'u8[512]{0}', space=vmem, size = 0x400, scoped, tag = 'input window, operand 2, single buffered']
    #allocation8 [shape = 'u8[4096]{0}', space=vmem, size = 0x1000, scoped, tag = 'output window, operand 0, single buffered']
    %8 = vsyncpa [#allocation3], 0
    %9 = vsyncpa [#allocation6], 0
    %10 = vsyncpa [#allocation4], 0
    // Predicated region
    $region2: #{decoder_forward.5} parent=1 // pred_check
      _
    $region3: #{decoder_forward.5} parent=1 // pred_check_branch
      %12 = sbr.rel (0) target = $region5
    $region4: #{decoder_forward.5} parent=1 // pred_region
      %s14 = ssub.s32 64, 64
      %15 = vsyncadd [#allocation3], %s14
      %s17 = sshll.u32 [#allocation2], 4
      %s18 = int_to_ptr.vmem [resolvable:$true] %s17
      %20 = dma.hbm_to_vmem [thread:$0]  %s0, 64, %s18, [#allocation3]
    $region5: #{decoder_forward.5} parent=1 // pred_fallthru
      _
    // Predicated region
    $region6: #{decoder_forward.5} parent=1 // pred_check
      _
    $region7: #{decoder_forward.5} parent=1 // pred_check_branch
      %22 = sbr.rel (0) target = $region9
    $region8: #{decoder_forward.5} parent=1 // pred_region
      %s24 = ssub.s32 1024, 1024
      %25 = vsyncadd [#allocation6], %s24
      %s26 = sshll.u32 [#allocation5], 4
      %s27 = int_to_ptr.vmem [resolvable:$true] %s26
      %32 = dma.hbm_to_vmem [thread:$0]  %s1, 1024, %s27, [#allocation6], 64, 64, 4
    $region9: #{decoder_forward.5} parent=1 // pred_fallthru
      _
    // Predicated region
    $region10: #{decoder_forward.5} parent=1 // pred_check
      _
    $region11: #{decoder_forward.5} parent=1 // pred_check_branch
      %34 = sbr.rel (0) target = $region13
    $region12: #{decoder_forward.5} parent=1 // pred_region
      %s36 = ssub.s32 16, 16
      %37 = vsyncadd [#allocation6], %s36
      %s39 = sshll.u32 [#allocation7], 4
      %s40 = int_to_ptr.vmem [resolvable:$true] %s39
      %42 = dma.hbm_to_vmem [thread:$0]  %s2, 16, %s40, [#allocation6]
    $region13: #{decoder_forward.5} parent=1 // pred_fallthru
      _
    // Predicated region
    $region14: #{decoder_forward.5} parent=1 // pred_check
      _
    $region15: #{decoder_forward.5} parent=1 // pred_check_branch
      %44 = sbr.rel (0) target = $region17
    $region16: #{decoder_forward.5} parent=1 // pred_region
      %45 = dma.done [#allocation3], 64
    $region17: #{decoder_forward.5} parent=1 // pred_fallthru
      _
    // Predicated region
    $region18: #{decoder_forward.5} parent=1 // pred_check
      _
    $region19: #{decoder_forward.5} parent=1 // pred_check_branch
      %47 = sbr.rel (0) target = $region21
    $region20: #{decoder_forward.5} parent=1 // pred_region
      %48 = dma.done [#allocation6], 1024
    $region21: #{decoder_forward.5} parent=1 // pred_fallthru
      _
    // Predicated region
    $region22: #{decoder_forward.5} parent=1 // pred_check
      _
    $region23: #{decoder_forward.5} parent=1 // pred_check_branch
      %50 = sbr.rel (0) target = $region25
    $region24: #{decoder_forward.5} parent=1 // pred_region
      %51 = dma.done [#allocation6], 16
    $region25: #{decoder_forward.5} parent=1 // pred_fallthru
      _
    %v53 = vld [vmem:[#allocation2] sm:$0xf]
    %v54 = vld [vmem:[#allocation5] sm:$0xf]
    %v55 = vld [vmem:[#allocation5 + $0x4] sm:$0xf]
    %v56 = vld [vmem:[#allocation5 + $0x8] sm:$0xf]
    %v57 = vld [vmem:[#allocation5 + $0xc] sm:$0xf]
    %v58 = vld [vmem:[#allocation5 + $0x10] sm:$0xf]
    %v59 = vld [vmem:[#allocation5 + $0x14] sm:$0xf]
    %v60 = vld [vmem:[#allocation5 + $0x18] sm:$0xf]
    %v61 = vld [vmem:[#allocation5 + $0x1c] sm:$0xf]
    %v62 = vld [vmem:[#allocation5 + $0x20] sm:$0xf]
    %v63 = vld [vmem:[#allocation5 + $0x24] sm:$0xf]
    %v64 = vld [vmem:[#allocation5 + $0x28] sm:$0xf]
    %v65 = vld [vmem:[#allocation5 + $0x2c] sm:$0xf]
    %v66 = vld [vmem:[#allocation5 + $0x30] sm:$0xf]
    %v67 = vld [vmem:[#allocation5 + $0x34] sm:$0xf]
    %v68 = vld [vmem:[#allocation5 + $0x38] sm:$0xf]
    %v69 = vld [vmem:[#allocation5 + $0x3c] sm:$0xf]
    %v70 = vld [vmem:[#allocation7] sm:$0x1]
    %v72 = vlaneseq
    %v73 = vshrl.u32 %v72, 7
    %v74 = vsub.s32 0, %v73
    %v75 = vrot.slane %v70, %v74
    %v93 = vunpack.c.l.b16 %v54
    %v94 = vunpack.c.l.b16 %v55
    %v95 = vunpack.c.l.b16 %v56
    %v96 = vunpack.c.l.b16 %v57
    %v97 = vunpack.c.l.b16 %v58
    %v98 = vunpack.c.l.b16 %v59
    %v99 = vunpack.c.l.b16 %v60
    %v100 = vunpack.c.l.b16 %v61
    %v101 = vunpack.c.l.b16 %v62
    %v102 = vunpack.c.l.b16 %v63
    %v103 = vunpack.c.l.b16 %v64
    %v104 = vunpack.c.l.b16 %v65
    %v105 = vunpack.c.l.b16 %v66
    %v106 = vunpack.c.l.b16 %v67
    %v107 = vunpack.c.l.b16 %v68
    %v108 = vunpack.c.l.b16 %v69
    %v109 = vpack.c.b16 %v94, %v93
    %v110 = vpack.c.b16 %v96, %v95
    %v111 = vpack.c.b16 %v98, %v97
    %v112 = vpack.c.b16 %v100, %v99
    %v113 = vpack.c.b16 %v102, %v101
    %v114 = vpack.c.b16 %v104, %v103
    %v115 = vpack.c.b16 %v106, %v105
    %v116 = vpack.c.b16 %v108, %v107
    %125 = vmatprep.subr.bf16.mxu0 0
    %126 = vmatpush1.bf16.msra.mxu0 %v109
    %127 = vmatprep.subr.bf16.mxu0 0
    %128 = vmatpush1.bf16.msra.mxu0 %v110
    %129 = vmatprep.subr.bf16.mxu0 0
    %130 = vmatpush1.bf16.msra.mxu0 %v111
    %131 = vmatprep.subr.bf16.mxu0 0
    %132 = vmatpush1.bf16.msra.mxu0 %v112
    %133 = vmatprep.subr.bf16.mxu0 0
    %134 = vmatpush1.bf16.msra.mxu0 %v113
    %135 = vmatprep.subr.bf16.mxu0 0
    %136 = vmatpush1.bf16.msra.mxu0 %v114
    %137 = vmatprep.subr.bf16.mxu0 0
    %138 = vmatpush1.bf16.msra.mxu0 %v115
    %139 = vmatprep.subr.bf16.mxu0 0
    %140 = vmatpush1.bf16.msra.mxu0 %v116
    %141 = vmatprep.subr.bf16.mxu0 0
    %142 = vmatpush1.bf16.msra.mxu0 0
    %143 = vmatprep.subr.bf16.mxu0 0
    %144 = vmatpush1.bf16.msra.mxu0 0
    %145 = vmatprep.subr.bf16.mxu0 0
    %146 = vmatpush1.bf16.msra.mxu0 0
    %147 = vmatprep.subr.bf16.mxu0 0
    %148 = vmatpush1.bf16.msra.mxu0 0
    %149 = vmatprep.subr.bf16.mxu0 0
    %150 = vmatpush1.bf16.msra.mxu0 0
    %151 = vmatprep.subr.bf16.mxu0 0
    %152 = vmatpush1.bf16.msra.mxu0 0
    %153 = vmatprep.subr.bf16.mxu0 0
    %154 = vmatpush1.bf16.msra.mxu0 0
    %155 = vmatprep.subr.bf16.mxu0 0
    %156 = vmatpush1.bf16.msra.mxu0 0
    %157 = vmatprep.mubr.bf16.mxu0 0
    %158 = vmatmul.mubr.bf16.gmra.mrb[0].mxu0 %v53
    %v159 = vpop.f32.mrb[0].mxu0
    %v160 = vadd.f32 %v75, %v159
    %v161 = vpop.f32.mrb[0].mxu0
    %v162 = vpop.f32.mrb[0].mxu0
    %v163 = vpop.f32.mrb[0].mxu0
    %164 = vdwg.mxu0
    %165 = vst [vmem:[#allocation8] sm:$0xff] %v160
    // Predicated region
    $region26: #{decoder_forward.5} parent=1 // pred_check
      _
    $region27: #{decoder_forward.5} parent=1 // pred_check_branch
      %167 = sbr.rel (0) target = $region29
    $region28: #{decoder_forward.5} parent=1 // pred_region
      %s169 = ssub.s32 128, 128
      %170 = vsyncadd [#allocation4], %s169
      %s172 = sshll.u32 [#allocation8], 4
      %s173 = int_to_ptr.vmem [resolvable:$true] %s172
      %175 = dma.vmem_to_hbm [thread:$0]  %s173, 128, %s3, [#allocation4]
    $region29: #{decoder_forward.5} parent=1 // pred_fallthru
      _
    // Predicated region
    $region30: #{decoder_forward.5} parent=1 // pred_check
      _
    $region31: #{decoder_forward.5} parent=1 // pred_check_branch
      %177 = sbr.rel (0) target = $region33
    $region32: #{decoder_forward.5} parent=1 // pred_region
      %178 = dma.done [#allocation4], 128
    $region33: #{decoder_forward.5} parent=1 // pred_fallthru
      _
    %179 = vsyncpa [#allocation3], 1
    %180 = vsyncpa [#allocation6], 1
    %181 = vsyncpa [#allocation4], 1

// kernel: decoder_forward.3
$region0: #{decoder_forward.3}
  #allocation0 [shape = 'u32[]', space=smem, size = 0x4, offset = 0x4, fixed_abs, tag = 'smem constant byte address 0x4 - core index']
  #allocation1 [shape = 'u32[144,128]{1,0:T(1,128)}', space=vmem, size = 0x12000, scoped, tag = 'internal scratch']
  %s0 = inlined_call_operand.hbm [shape: bf16[32,32], index: 0, kind: input, shape index: {}]
  %s1 = inlined_call_operand.hbm [shape: bf16[32,512], index: 1, kind: input, shape index: {}]
  %s2 = inlined_call_operand.hbm [shape: f32[1,512], index: 2, kind: input, shape index: {}]
  %s3 = inlined_call_operand.hbm [shape: f32[32,512], index: 3, kind: output, shape index: {}]
  %s4 = sld [smem:[#allocation0]]
  $region34: #{decoder_forward.3} parent=0
    _
  %s6 = ssub.s32 1, %s4
  %s7 = scalar_select 0, %s6, %s4
  $region1: #{decoder_forward.3} parent=0
    #allocation2 [shape = 'u8[8192]{0}', space=vmem, size = 0x2000, scoped, tag = 'input window, operand 0, single buffered']
    #allocation3 [shape = 's32[1]{0}', space=sflag, size = 0x4, scoped, tag = 'scoped memory for decoder_forward.3']
    #allocation4 [shape = 's32[1]{0}', space=sflag, size = 0x4, scoped, tag = 'scoped memory for decoder_forward.3']
    #allocation5 [shape = 'u8[32768]{0}', space=vmem, size = 0x8000, scoped, tag = 'input window, operand 1, single buffered']
    #allocation6 [shape = 's32[1]{0}', space=sflag, size = 0x4, scoped, tag = 'scoped memory for decoder_forward.3']
    #allocation7 [shape = 'u8[2048]{0}', space=vmem, size = 0x800, scoped, tag = 'input window, operand 2, single buffered']
    #allocation8 [shape = 'u8[65536]{0}', space=vmem, size = 0x10000, scoped, tag = 'output window, operand 0, single buffered']
    %8 = vsyncpa [#allocation3], 0
    %9 = vsyncpa [#allocation6], 0
    %10 = vsyncpa [#allocation4], 0
    // Predicated region
    $region2: #{decoder_forward.3} parent=1 // pred_check
      _
    $region3: #{decoder_forward.3} parent=1 // pred_check_branch
      %12 = sbr.rel (0) target = $region5
    $region4: #{decoder_forward.3} parent=1 // pred_region
      %s14 = ssub.s32 256, 256
      %15 = vsyncadd [#allocation3], %s14
      %s16 = sshll.u32 [#allocation2], 4
      %s17 = int_to_ptr.vmem [resolvable:$true] %s16
      %22 = dma.hbm_to_vmem [thread:$0]  %s0, 256, %s17, [#allocation3], 64, 64, 4
    $region5: #{decoder_forward.3} parent=1 // pred_fallthru
      _
    // Predicated region
    $region6: #{decoder_forward.3} parent=1 // pred_check
      _
    $region7: #{decoder_forward.3} parent=1 // pred_check_branch
      %24 = sbr.rel (0) target = $region9
    $region8: #{decoder_forward.3} parent=1 // pred_region
      %s26 = ssub.s32 1024, 1024
      %27 = vsyncadd [#allocation6], %s26
      %s28 = sshll.u32 [#allocation5], 4
      %s29 = int_to_ptr.vmem [resolvable:$true] %s28
      %34 = dma.hbm_to_vmem [thread:$0]  %s1, 1024, %s29, [#allocation6], 256, 256, 16
    $region9: #{decoder_forward.3} parent=1 // pred_fallthru
      _
    // Predicated region
    $region10: #{decoder_forward.3} parent=1 // pred_check
      _
    $region11: #{decoder_forward.3} parent=1 // pred_check_branch
      %36 = sbr.rel (0) target = $region13
    $region12: #{decoder_forward.3} parent=1 // pred_region
      %s38 = ssub.s32 64, 64
      %39 = vsyncadd [#allocation6], %s38
      %s41 = sshll.u32 [#allocation7], 4
      %s42 = int_to_ptr.vmem [resolvable:$true] %s41
      %44 = dma.hbm_to_vmem [thread:$0]  %s2, 64, %s42, [#allocation6]
    $region13: #{decoder_forward.3} parent=1 // pred_fallthru
      _
    // Predicated region
    $region14: #{decoder_forward.3} parent=1 // pred_check
      _
    $region15: #{decoder_forward.3} parent=1 // pred_check_branch
      %46 = sbr.rel (0) target = $region17
    $region16: #{decoder_forward.3} parent=1 // pred_region
      %47 = dma.done [#allocation3], 256
    $region17: #{decoder_forward.3} parent=1 // pred_fallthru
      _
    // Predicated region
    $region18: #{decoder_forward.3} parent=1 // pred_check
      _
    $region19: #{decoder_forward.3} parent=1 // pred_check_branch
      %49 = sbr.rel (0) target = $region21
    $region20: #{decoder_forward.3} parent=1 // pred_region
      %50 = dma.done [#allocation6], 1024
    $region21: #{decoder_forward.3} parent=1 // pred_fallthru
      _
    // Predicated region
    $region22: #{decoder_forward.3} parent=1 // pred_check
      _
    $region23: #{decoder_forward.3} parent=1 // pred_check_branch
      %52 = sbr.rel (0) target = $region25
    $region24: #{decoder_forward.3} parent=1 // pred_region
      %53 = dma.done [#allocation6], 64
    $region25: #{decoder_forward.3} parent=1 // pred_fallthru
      _
    %v55 = vld [vmem:[#allocation2] sm:$0xf]
    %v56 = vld [vmem:[#allocation2 + $0x4] sm:$0xf]
    %v57 = vld [vmem:[#allocation2 + $0x8] sm:$0xf]
    %v58 = vld [vmem:[#allocation2 + $0xc] sm:$0xf]
    %v59 = vld [vmem:[#allocation5] sm:$0xff]
    %v60 = vld [vmem:[#allocation5 + $0x8] sm:$0xff]
    %v61 = vld [vmem:[#allocation5 + $0x10] sm:$0xff]
    %v62 = vld [vmem:[#allocation5 + $0x18] sm:$0xff]
    %v63 = vld [vmem:[#allocation5 + $0x20] sm:$0xff]
    %v64 = vld [vmem:[#allocation5 + $0x28] sm:$0xff]
    %v65 = vld [vmem:[#allocation5 + $0x30] sm:$0xff]
    %v66 = vld [vmem:[#allocation5 + $0x38] sm:$0xff]
    %v67 = vld [vmem:[#allocation7] sm:$0xf]
    %v69 = vlaneseq
    %v70 = vshrl.u32 %v69, 7
    %v71 = vsub.s32 0, %v70
    %v72 = vrot.slane %v67, %v71
    %v73 = vlaneseq
    %v74 = vshrl.u32 %v73, 7
    %v75 = vsub.s32 1, %v74
    %v76 = vrot.slane %v67, %v75
    %v77 = vlaneseq
    %v78 = vshrl.u32 %v77, 7
    %v79 = vsub.s32 2, %v78
    %v80 = vrot.slane %v67, %v79
    %v81 = vlaneseq
    %v82 = vshrl.u32 %v81, 7
    %v83 = vsub.s32 3, %v82
    %v84 = vrot.slane %v67, %v83
    %v93 = vunpack.c.l.b16 %v55
    %v94 = vunpack.c.l.b16 %v56
    %v95 = vunpack.c.l.b16 %v57
    %v96 = vunpack.c.l.b16 %v58
    %v97 = vpack.c.b16 %v94, %v93
    %v98 = vpack.c.b16 %v96, %v95
    %v107 = vunpack.c.l.b16 %v59
    %v108 = vunpack.c.h.b16 %v59
    %v109 = vunpack.c.l.b16 %v60
    %v110 = vunpack.c.h.b16 %v60
    %v111 = vunpack.c.l.b16 %v61
    %v112 = vunpack.c.h.b16 %v61
    %v113 = vunpack.c.l.b16 %v62
    %v114 = vunpack.c.h.b16 %v62
    %v115 = vunpack.c.l.b16 %v63
    %v116 = vunpack.c.h.b16 %v63
    %v117 = vunpack.c.l.b16 %v64
    %v118 = vunpack.c.h.b16 %v64
    %v119 = vunpack.c.l.b16 %v65
    %v120 = vunpack.c.h.b16 %v65
    %v121 = vunpack.c.l.b16 %v66
    %v122 = vunpack.c.h.b16 %v66
    %v123 = vpack.c.b16 %v111, %v107
    %v124 = vpack.c.b16 %v112, %v108
    %v125 = vpack.c.b16 %v113, %v109
    %v126 = vpack.c.b16 %v114, %v110
    %v127 = vpack.c.b16 %v119, %v115
    %v128 = vpack.c.b16 %v120, %v116
    %v129 = vpack.c.b16 %v121, %v117
    %v130 = vpack.c.b16 %v122, %v118
    %vm139 = vcmask 261120
    %v141 = vsel %vm139, %v97, 0
    %v144 = vsel %vm139, %v98, 0
    %146 = vmatprep.subr.bf16.mxu0 %v124
    %147 = vmatpush1.bf16.msra.mxu0 %v123
    %148 = vmatprep.subr.bf16.mxu0 %v128
    %149 = vmatpush1.bf16.msra.mxu0 %v127
    %150 = vmatprep.subr.bf16.mxu0 0
    %151 = vmatpush1.bf16.msra.mxu0 0
    %152 = vmatprep.subr.bf16.mxu0 0
    %153 = vmatpush1.bf16.msra.mxu0 0
    %154 = vmatprep.subr.bf16.mxu0 0
    %155 = vmatpush1.bf16.msra.mxu0 0
    %156 = vmatprep.subr.bf16.mxu0 0
    %157 = vmatpush1.bf16.msra.mxu0 0
    %158 = vmatprep.subr.bf16.mxu0 0
    %159 = vmatpush1.bf16.msra.mxu0 0
    %160 = vmatprep.subr.bf16.mxu0 0
    %161 = vmatpush1.bf16.msra.mxu0 0
    %162 = vmatprep.subr.bf16.mxu0 0
    %163 = vmatpush1.bf16.msra.mxu0 0
    %164 = vmatprep.subr.bf16.mxu0 0
    %165 = vmatpush1.bf16.msra.mxu0 0
    %166 = vmatprep.subr.bf16.mxu0 0
    %167 = vmatpush1.bf16.msra.mxu0 0
    %168 = vmatprep.subr.bf16.mxu0 0
    %169 = vmatpush1.bf16.msra.mxu0 0
    %170 = vmatprep.subr.bf16.mxu0 0
    %171 = vmatpush1.bf16.msra.mxu0 0
    %172 = vmatprep.subr.bf16.mxu0 0
    %173 = vmatpush1.bf16.msra.mxu0 0
    %174 = vmatprep.subr.bf16.mxu0 0
    %175 = vmatpush1.bf16.msra.mxu0 0
    %176 = vmatprep.subr.bf16.mxu0 0
    %177 = vmatpush1.bf16.msra.mxu0 0
    %178 = vmatprep.mubr.bf16.mxu0 0
    %179 = vmatmul.mubr.bf16.gmra.mrb[0].mxu0 %v141
    %v180 = vpop.f32.mrb[0].mxu0
    %v181 = vadd.f32 %v72, %v180
    %v182 = vpop.f32.mrb[0].mxu0
    %v183 = vadd.f32 %v76, %v182
    %v184 = vpop.f32.mrb[0].mxu0
    %v185 = vadd.f32 %v72, %v184
    %v186 = vpop.f32.mrb[0].mxu0
    %v187 = vadd.f32 %v76, %v186
    %188 = vmatprep.mubr.bf16.mxu0 0
    %189 = vmatmul.mubr.bf16.gmra.mrb[0].mxu0 %v144
    %v190 = vpop.f32.mrb[0].mxu0
    %v191 = vadd.f32 %v72, %v190
    %v192 = vpop.f32.mrb[0].mxu0
    %v193 = vadd.f32 %v76, %v192
    %v194 = vpop.f32.mrb[0].mxu0
    %v195 = vadd.f32 %v72, %v194
    %v196 = vpop.f32.mrb[0].mxu0
    %v197 = vadd.f32 %v76, %v196
    %198 = vdwg.mxu0
    %199 = vmatprep.subr.bf16.mxu0 %v126
    %200 = vmatpush1.bf16.msra.mxu0 %v125
    %201 = vmatprep.subr.bf16.mxu0 %v130
    %202 = vmatpush1.bf16.msra.mxu0 %v129
    %203 = vmatprep.subr.bf16.mxu0 0
    %204 = vmatpush1.bf16.msra.mxu0 0
    %205 = vmatprep.subr.bf16.mxu0 0
    %206 = vmatpush1.bf16.msra.mxu0 0
    %207 = vmatprep.subr.bf16.mxu0 0
    %208 = vmatpush1.bf16.msra.mxu0 0
    %209 = vmatprep.subr.bf16.mxu0 0
    %210 = vmatpush1.bf16.msra.mxu0 0
    %211 = vmatprep.subr.bf16.mxu0 0
    %212 = vmatpush1.bf16.msra.mxu0 0
    %213 = vmatprep.subr.bf16.mxu0 0
    %214 = vmatpush1.bf16.msra.mxu0 0
    %215 = vmatprep.subr.bf16.mxu0 0
    %216 = vmatpush1.bf16.msra.mxu0 0
    %217 = vmatprep.subr.bf16.mxu0 0
    %218 = vmatpush1.bf16.msra.mxu0 0
    %219 = vmatprep.subr.bf16.mxu0 0
    %220 = vmatpush1.bf16.msra.mxu0 0
    %221 = vmatprep.subr.bf16.mxu0 0
    %222 = vmatpush1.bf16.msra.mxu0 0
    %223 = vmatprep.subr.bf16.mxu0 0
    %224 = vmatpush1.bf16.msra.mxu0 0
    %225 = vmatprep.subr.bf16.mxu0 0
    %226 = vmatpush1.bf16.msra.mxu0 0
    %227 = vmatprep.subr.bf16.mxu0 0
    %228 = vmatpush1.bf16.msra.mxu0 0
    %229 = vmatprep.subr.bf16.mxu0 0
    %230 = vmatpush1.bf16.msra.mxu0 0
    %231 = vmatprep.mubr.bf16.mxu0 0
    %232 = vmatmul.mubr.bf16.gmra.mrb[0].mxu0 %v141
    %v233 = vpop.f32.mrb[0].mxu0
    %v234 = vadd.f32 %v80, %v233
    %v235 = vpop.f32.mrb[0].mxu0
    %v236 = vadd.f32 %v84, %v235
    %v237 = vpop.f32.mrb[0].mxu0
    %v238 = vadd.f32 %v80, %v237
    %v239 = vpop.f32.mrb[0].mxu0
    %v240 = vadd.f32 %v84, %v239
    %241 = vmatprep.mubr.bf16.mxu0 0
    %242 = vmatmul.mubr.bf16.gmra.mrb[0].mxu0 %v144
    %v243 = vpop.f32.mrb[0].mxu0
    %v244 = vadd.f32 %v80, %v243
    %v245 = vpop.f32.mrb[0].mxu0
    %v246 = vadd.f32 %v84, %v245
    %v247 = vpop.f32.mrb[0].mxu0
    %v248 = vadd.f32 %v80, %v247
    %v249 = vpop.f32.mrb[0].mxu0
    %v250 = vadd.f32 %v84, %v249
    %251 = vdwg.mxu0
    %252 = vst [vmem:[#allocation8] sm:$0xff] %v181
    %253 = vst [vmem:[#allocation8 + $0x8] sm:$0xff] %v183
    %254 = vst [vmem:[#allocation8 + $0x10] sm:$0xff] %v234
    %255 = vst [vmem:[#allocation8 + $0x18] sm:$0xff] %v236
    %256 = vst [vmem:[#allocation8 + $0x20] sm:$0xff] %v185
    %257 = vst [vmem:[#allocation8 + $0x28] sm:$0xff] %v187
    %258 = vst [vmem:[#allocation8 + $0x30] sm:$0xff] %v238
    %259 = vst [vmem:[#allocation8 + $0x38] sm:$0xff] %v240
    %260 = vst [vmem:[#allocation8 + $0x40] sm:$0xff] %v191
    %261 = vst [vmem:[#allocation8 + $0x48] sm:$0xff] %v193
    %262 = vst [vmem:[#allocation8 + $0x50] sm:$0xff] %v244
    %263 = vst [vmem:[#allocation8 + $0x58] sm:$0xff] %v246
    %264 = vst [vmem:[#allocation8 + $0x60] sm:$0xff] %v195
    %265 = vst [vmem:[#allocation8 + $0x68] sm:$0xff] %v197
    %266 = vst [vmem:[#allocation8 + $0x70] sm:$0xff] %v248
    %267 = vst [vmem:[#allocation8 + $0x78] sm:$0xff] %v250
    // Predicated region
    $region26: #{decoder_forward.3} parent=1 // pred_check
      _
    $region27: #{decoder_forward.3} parent=1 // pred_check_branch
      %269 = sbr.rel (0) target = $region29
    $region28: #{decoder_forward.3} parent=1 // pred_region
      %s271 = ssub.s32 2048, 2048
      %272 = vsyncadd [#allocation4], %s271
      %s273 = sshll.u32 [#allocation8], 4
      %s274 = int_to_ptr.vmem [resolvable:$true] %s273
      %279 = dma.vmem_to_hbm [thread:$0]  %s274, 2048, %s3, [#allocation4], 512, 512, 32
    $region29: #{decoder_forward.3} parent=1 // pred_fallthru
      _
    // Predicated region
    $region30: #{decoder_forward.3} parent=1 // pred_check
      _
    $region31: #{decoder_forward.3} parent=1 // pred_check_branch
      %281 = sbr.rel (0) target = $region33
    $region32: #{decoder_forward.3} parent=1 // pred_region
      %282 = dma.done [#allocation4], 2048
    $region33: #{decoder_forward.3} parent=1 // pred_fallthru
      _
    %283 = vsyncpa [#allocation3], 1
    %284 = vsyncpa [#allocation6], 1
    %285 = vsyncpa [#allocation4], 1

// kernel: decoder_forward.4
$region0: #{decoder_forward.4}
  #allocation0 [shape = 'u32[]', space=smem, size = 0x4, offset = 0x4, fixed_abs, tag = 'smem constant byte address 0x4 - core index']
  #allocation1 [shape = 'u32[144,128]{1,0:T(1,128)}', space=vmem, size = 0x12000, scoped, tag = 'internal scratch']
  #allocation2 [shape = 'f32[8,128]{1,0:T(8,128)}', space=vmem, size = 0x1000, scoped, tag = 'scratch operand']
  #allocation3 [shape = 'f32[8,128]{1,0:T(8,128)}', space=vmem, size = 0x1000, scoped, tag = 'scratch operand']
  %s0 = inlined_call_operand.hbm [shape: f32[4,8,512], index: 0, kind: input, shape index: {}]
  %s1 = inlined_call_operand.hbm [shape: bf16[8,8,128], index: 1, kind: input, shape index: {}]
  %s2 = inlined_call_operand.hbm [shape: f32[8,128], index: 2, kind: input, shape index: {}]
  %s3 = inlined_call_operand.hbm [shape: f32[8,128], index: 3, kind: input, shape index: {}]
  %s4 = inlined_call_operand.hbm [shape: bf16[128,512], index: 4, kind: input, shape index: {}]
  %s5 = inlined_call_operand.hbm [shape: bf16[128,512], index: 5, kind: input, shape index: {}]
  %s6 = inlined_call_operand.hbm [shape: bf16[4,8,128], index: 6, kind: output, shape index: {}]
  %s7 = sld [smem:[#allocation0]]
  $region62: #{decoder_forward.4} parent=0
    _
  %s9 = ssub.s32 1, %s7
  %s10 = scalar_select 0, %s9, %s7
  $region1: #{decoder_forward.4} parent=0
    #allocation4 [shape = 'u8[65536]{0}', space=vmem, size = 0x10000, scoped, tag = 'input window, operand 0, single buffered']
    #allocation5 [shape = 's32[1]{0}', space=sflag, size = 0x4, scoped, tag = 'scoped memory for decoder_forward.4']
    #allocation6 [shape = 's32[1]{0}', space=sflag, size = 0x4, scoped, tag = 'scoped memory for decoder_forward.4']
    #allocation7 [shape = 'u8[16384]{0}', space=vmem, size = 0x4000, scoped, tag = 'input window, operand 1, single buffered']
    #allocation8 [shape = 's32[1]{0}', space=sflag, size = 0x4, scoped, tag = 'scoped memory for decoder_forward.4']
    #allocation9 [shape = 'u8[4096]{0}', space=vmem, size = 0x1000, scoped, tag = 'input window, operand 2, single buffered']
    #allocation10 [shape = 'u8[4096]{0}', space=vmem, size = 0x1000, scoped, tag = 'input window, operand 3, single buffered']
    #allocation11 [shape = 's32[1]{0}', space=sflag, size = 0x4, scoped, tag = 'scoped memory for decoder_forward.4']
    #allocation12 [shape = 'u8[131072]{0}', space=vmem, size = 0x20000, scoped, tag = 'input window, operand 4, single buffered']
    #allocation13 [shape = 'u8[131072]{0}', space=vmem, size = 0x20000, scoped, tag = 'input window, operand 5, single buffered']
    #allocation14 [shape = 's32[1]{0}', space=sflag, size = 0x4, scoped, tag = 'scoped memory for decoder_forward.4']
    #allocation15 [shape = 'u8[8192]{0}', space=vmem, size = 0x2000, scoped, tag = 'output window, operand 0, single buffered']
    %11 = vsyncpa [#allocation5], 0
    %12 = vsyncpa [#allocation8], 0
    %13 = vsyncpa [#allocation11], 0
    %14 = vsyncpa [#allocation14], 0
    %15 = vsyncpa [#allocation6], 0
    // Predicated region
    $region2: #{decoder_forward.4} parent=1 // pred_check
      _
    $region3: #{decoder_forward.4} parent=1 // pred_check_branch
      %17 = sbr.rel (0) target = $region5
    $region4: #{decoder_forward.4} parent=1 // pred_region
      %s19 = ssub.s32 2048, 2048
      %20 = vsyncadd [#allocation5], %s19
      %s21 = sshll.u32 [#allocation4], 4
      %s22 = int_to_ptr.vmem [resolvable:$true] %s21
      %27 = dma.hbm_to_vmem [thread:$0]  %s0, 2048, %s22, [#allocation5], 512, 512, 32
    $region5: #{decoder_forward.4} parent=1 // pred_fallthru
      _
    // Predicated region
    $region6: #{decoder_forward.4} parent=1 // pred_check
      _
    $region7: #{decoder_forward.4} parent=1 // pred_check_branch
      %29 = sbr.rel (0) target = $region9
    $region8: #{decoder_forward.4} parent=1 // pred_region
      %s31 = ssub.s32 512, 512
      %32 = vsyncadd [#allocation8], %s31
      %s33 = sshll.u32 [#allocation7], 4
      %s34 = int_to_ptr.vmem [resolvable:$true] %s33
      %39 = dma.hbm_to_vmem [thread:$0]  %s1, 512, %s34, [#allocation8], 64, 64, 4
    $region9: #{decoder_forward.4} parent=1 // pred_fallthru
      _
    // Predicated region
    $region10: #{decoder_forward.4} parent=1 // pred_check
      _
    $region11: #{decoder_forward.4} parent=1 // pred_check_branch
      %41 = sbr.rel (0) target = $region13
    $region12: #{decoder_forward.4} parent=1 // pred_region
      %s43 = ssub.s32 128, 128
      %44 = vsyncadd [#allocation8], %s43
      %s46 = sshll.u32 [#allocation9], 4
      %s47 = int_to_ptr.vmem [resolvable:$true] %s46
      %49 = dma.hbm_to_vmem [thread:$0]  %s2, 128, %s47, [#allocation8]
    $region13: #{decoder_forward.4} parent=1 // pred_fallthru
      _
    // Predicated region
    $region14: #{decoder_forward.4} parent=1 // pred_check
      _
    $region15: #{decoder_forward.4} parent=1 // pred_check_branch
      %51 = sbr.rel (0) target = $region17
    $region16: #{decoder_forward.4} parent=1 // pred_region
      %s53 = ssub.s32 128, 128
      %54 = vsyncadd [#allocation11], %s53
      %s56 = sshll.u32 [#allocation10], 4
      %s57 = int_to_ptr.vmem [resolvable:$true] %s56
      %59 = dma.hbm_to_vmem [thread:$0]  %s3, 128, %s57, [#allocation11]
    $region17: #{decoder_forward.4} parent=1 // pred_fallthru
      _
    // Predicated region
    $region18: #{decoder_forward.4} parent=1 // pred_check
      _
    $region19: #{decoder_forward.4} parent=1 // pred_check_branch
      %61 = sbr.rel (0) target = $region21
    $region20: #{decoder_forward.4} parent=1 // pred_region
      %s63 = ssub.s32 4096, 4096
      %64 = vsyncadd [#allocation11], %s63
      %s65 = sshll.u32 [#allocation12], 4
      %s66 = int_to_ptr.vmem [resolvable:$true] %s65
      %71 = dma.hbm_to_vmem [thread:$0]  %s4, 4096, %s66, [#allocation11], 256, 256, 16
    $region21: #{decoder_forward.4} parent=1 // pred_fallthru
      _
    // Predicated region
    $region22: #{decoder_forward.4} parent=1 // pred_check
      _
    $region23: #{decoder_forward.4} parent=1 // pred_check_branch
      %73 = sbr.rel (0) target = $region25
    $region24: #{decoder_forward.4} parent=1 // pred_region
      %s75 = ssub.s32 4096, 4096
      %76 = vsyncadd [#allocation14], %s75
      %s77 = sshll.u32 [#allocation13], 4
      %s78 = int_to_ptr.vmem [resolvable:$true] %s77
      %83 = dma.hbm_to_vmem [thread:$0]  %s5, 4096, %s78, [#allocation14], 256, 256, 16
    $region25: #{decoder_forward.4} parent=1 // pred_fallthru
      _
    // Predicated region
    $region26: #{decoder_forward.4} parent=1 // pred_check
      _
    $region27: #{decoder_forward.4} parent=1 // pred_check_branch
      %85 = sbr.rel (0) target = $region29
    $region28: #{decoder_forward.4} parent=1 // pred_region
      %86 = dma.done [#allocation5], 2048
    $region29: #{decoder_forward.4} parent=1 // pred_fallthru
      _
    // Predicated region
    $region30: #{decoder_forward.4} parent=1 // pred_check
      _
    $region31: #{decoder_forward.4} parent=1 // pred_check_branch
      %88 = sbr.rel (0) target = $region33
    $region32: #{decoder_forward.4} parent=1 // pred_region
      %89 = dma.done [#allocation8], 512
    $region33: #{decoder_forward.4} parent=1 // pred_fallthru
      _
    // Predicated region
    $region34: #{decoder_forward.4} parent=1 // pred_check
      _
    $region35: #{decoder_forward.4} parent=1 // pred_check_branch
      %91 = sbr.rel (0) target = $region37
    $region36: #{decoder_forward.4} parent=1 // pred_region
      %92 = dma.done [#allocation8], 128
    $region37: #{decoder_forward.4} parent=1 // pred_fallthru
      _
    // Predicated region
    $region38: #{decoder_forward.4} parent=1 // pred_check
      _
    $region39: #{decoder_forward.4} parent=1 // pred_check_branch
      %94 = sbr.rel (0) target = $region41
    $region40: #{decoder_forward.4} parent=1 // pred_region
      %95 = dma.done [#allocation11], 128
    $region41: #{decoder_forward.4} parent=1 // pred_fallthru
      _
    // Predicated region
    $region42: #{decoder_forward.4} parent=1 // pred_check
      _
    $region43: #{decoder_forward.4} parent=1 // pred_check_branch
      %97 = sbr.rel (0) target = $region45
    $region44: #{decoder_forward.4} parent=1 // pred_region
      %98 = dma.done [#allocation11], 4096
    $region45: #{decoder_forward.4} parent=1 // pred_fallthru
      _
    // Predicated region
    $region46: #{decoder_forward.4} parent=1 // pred_check
      _
    $region47: #{decoder_forward.4} parent=1 // pred_check_branch
      %100 = sbr.rel (0) target = $region49
    $region48: #{decoder_forward.4} parent=1 // pred_region
      %101 = dma.done [#allocation14], 4096
    $region49: #{decoder_forward.4} parent=1 // pred_fallthru
      _
    %p103 = scmp.eq.s32.totalorder 0, 0
    // Predicated region
    $region50: #{decoder_forward.4} parent=1 // pred_check
      %p104 = pneg %p103
    $region51: #{decoder_forward.4} parent=1 // pred_check_branch
      %106 = sbr.rel (%p104) target = $region53
    $region52: #{decoder_forward.4} parent=1 // pred_region
      %v107 = vld [vmem:[#allocation9] sm:$0xff]
      %108 = vst [vmem:[#allocation2] sm:$0xff] %v107
      %v109 = vld [vmem:[#allocation10] sm:$0xff]
      %110 = vst [vmem:[#allocation3] sm:$0xff] %v109
    $region53: #{decoder_forward.4} parent=1 // pred_fallthru
      _
    %v111 = vld [vmem:[#allocation2] sm:$0xff]
    %v112 = vld [vmem:[#allocation3] sm:$0xff]
    %v113 = vld [vmem:[#allocation7] sm:$0xf]
    %v114 = vld [vmem:[#allocation7 + $0x4] sm:$0xf]
    %v115 = vld [vmem:[#allocation7 + $0x8] sm:$0xf]
    %v116 = vld [vmem:[#allocation7 + $0xc] sm:$0xf]
    %v117 = vld [vmem:[#allocation7 + $0x10] sm:$0xf]
    %v118 = vld [vmem:[#allocation7 + $0x14] sm:$0xf]
    %v119 = vld [vmem:[#allocation7 + $0x18] sm:$0xf]
    %v120 = vld [vmem:[#allocation7 + $0x1c] sm:$0xf]
    %v121 = vunpack.c.l.bf16 %v113
    %v122 = vunpack.c.l.bf16 %v114
    %v123 = vunpack.c.l.bf16 %v115
    %v124 = vunpack.c.l.bf16 %v116
    %v125 = vunpack.c.l.bf16 %v117
    %v126 = vunpack.c.l.bf16 %v118
    %v127 = vunpack.c.l.bf16 %v119
    %v128 = vunpack.c.l.bf16 %v120
    %v130 = vcombine.high %v111, %v111
    %v132 = vunpack.c.l.s4 1966171168
    %v133 = vunpack.c.0.s8 %v132
    %v134 = vlaneseq
    %v135 = vshrl.u32 %v134, 7
    %v136 = vsub.s32 %v133, %v135
    %v137 = vrot.slane %v111, %v136
    %v139 = vunpack.c.l.s4 1966171168
    %v140 = vunpack.c.0.s8 %v139
    %v141 = vlaneseq
    %v142 = vshrl.u32 %v141, 7
    %v143 = vsub.s32 %v140, %v142
    %v144 = vrot.slane %v130, %v143
    %v145 = vcombine.high %v137, %v137
    %v146 = vcombine.high %v144, %v144
    %v148 = vunpack.c.l.s4 1966171168
    %v149 = vunpack.c.0.s8 %v148
    %v150 = vlaneseq
    %v151 = vshrl.u32 %v150, 7
    %v152 = vsub.s32 %v149, %v151
    %v153 = vrot.slane %v137, %v152
    %v155 = vunpack.c.l.s4 1966171168
    %v156 = vunpack.c.0.s8 %v155
    %v157 = vlaneseq
    %v158 = vshrl.u32 %v157, 7
    %v159 = vsub.s32 %v156, %v158
    %v160 = vrot.slane %v144, %v159
    %v162 = vunpack.c.l.s4 1966171168
    %v163 = vunpack.c.0.s8 %v162
    %v164 = vlaneseq
    %v165 = vshrl.u32 %v164, 7
    %v166 = vsub.s32 %v163, %v165
    %v167 = vrot.slane %v145, %v166
    %v169 = vunpack.c.l.s4 1966171168
    %v170 = vunpack.c.0.s8 %v169
    %v171 = vlaneseq
    %v172 = vshrl.u32 %v171, 7
    %v173 = vsub.s32 %v170, %v172
    %v174 = vrot.slane %v146, %v173
    %v175 = vcombine.high %v153, %v153
    %v176 = vcombine.high %v160, %v160
    %v177 = vcombine.high %v167, %v167
    %v178 = vcombine.high %v174, %v174
    %v179 = vlaneseq
    %v180 = vshrl.u32 %v179, 7
    %v181 = vsub.s32 0, %v180
    %v182 = vrot.slane %v153, %v181
    %v183 = vlaneseq
    %v184 = vshrl.u32 %v183, 7
    %v185 = vsub.s32 0, %v184
    %v186 = vrot.slane %v167, %v185
    %v187 = vlaneseq
    %v188 = vshrl.u32 %v187, 7
    %v189 = vsub.s32 0, %v188
    %v190 = vrot.slane %v175, %v189
    %v191 = vlaneseq
    %v192 = vshrl.u32 %v191, 7
    %v193 = vsub.s32 0, %v192
    %v194 = vrot.slane %v177, %v193
    %v195 = vlaneseq
    %v196 = vshrl.u32 %v195, 7
    %v197 = vsub.s32 0, %v196
    %v198 = vrot.slane %v160, %v197
    %v199 = vlaneseq
    %v200 = vshrl.u32 %v199, 7
    %v201 = vsub.s32 0, %v200
    %v202 = vrot.slane %v174, %v201
    %v203 = vlaneseq
    %v204 = vshrl.u32 %v203, 7
    %v205 = vsub.s32 0, %v204
    %v206 = vrot.slane %v176, %v205
    %v207 = vlaneseq
    %v208 = vshrl.u32 %v207, 7
    %v209 = vsub.s32 0, %v208
    %v210 = vrot.slane %v178, %v209
    %v219 = vmul.f32 %v121, %v182
    %v220 = vmul.f32 %v122, %v186
    %v221 = vmul.f32 %v123, %v190
    %v222 = vmul.f32 %v124, %v194
    %v223 = vmul.f32 %v125, %v198
    %v224 = vmul.f32 %v126, %v202
    %v225 = vmul.f32 %v127, %v206
    %v226 = vmul.f32 %v128, %v210
    %227 = vadd.xlane.f32.xlu0 %v219
    %v228 = vpop.xlane.xlu0 %227
    %229 = vadd.xlane.f32.xlu0 %v220
    %v230 = vpop.xlane.xlu0 %229
    %231 = vadd.xlane.f32.xlu0 %v221
    %v232 = vpop.xlane.xlu0 %231
    %233 = vadd.xlane.f32.xlu0 %v222
    %v234 = vpop.xlane.xlu0 %233
    %235 = vadd.xlane.f32.xlu0 %v223
    %v236 = vpop.xlane.xlu0 %235
    %237 = vadd.xlane.f32.xlu0 %v224
    %v238 = vpop.xlane.xlu0 %237
    %239 = vadd.xlane.f32.xlu0 %v225
    %v240 = vpop.xlane.xlu0 %239
    %241 = vadd.xlane.f32.xlu0 %v226
    %v242 = vpop.xlane.xlu0 %241
    %v251 = vlaneseq
    %v252 = vand.u32 %v251, 127
    %v253 = vlaneseq
    %v254 = vshrl.u32 %v253, 7
    %v255 = vsub.s32 %v252, %v254
    %v256 = vrot.slane %v228, %v255
    %v257 = vlaneseq
    %v258 = vshrl.u32 %v257, 7
    %v259 = vsub.s32 %v252, %v258
    %v260 = vrot.slane %v230, %v259
    %v261 = vlaneseq
    %v262 = vshrl.u32 %v261, 7
    %v263 = vsub.s32 %v252, %v262
    %v264 = vrot.slane %v232, %v263
    %v265 = vlaneseq
    %v266 = vshrl.u32 %v265, 7
    %v267 = vsub.s32 %v252, %v266
    %v268 = vrot.slane %v234, %v267
    %v269 = vlaneseq
    %v270 = vshrl.u32 %v269, 7
    %v271 = vsub.s32 %v252, %v270
    %v272 = vrot.slane %v236, %v271
    %v273 = vlaneseq
    %v274 = vshrl.u32 %v273, 7
    %v275 = vsub.s32 %v252, %v274
    %v276 = vrot.slane %v238, %v275
    %v277 = vlaneseq
    %v278 = vshrl.u32 %v277, 7
    %v279 = vsub.s32 %v252, %v278
    %v280 = vrot.slane %v240, %v279
    %v281 = vlaneseq
    %v282 = vshrl.u32 %v281, 7
    %v283 = vsub.s32 %v252, %v282
    %v284 = vrot.slane %v242, %v283
    %vm285 = vcmask 1041409
    %v286 = vsel %vm285, %v260, %v256
    %vm287 = vcmask 1042434
    %v288 = vsel %vm287, %v264, %v286
    %vm289 = vcmask 1043459
    %v290 = vsel %vm289, %v268, %v288
    %vm291 = vcmask 1044484
    %v292 = vsel %vm291, %v272, %v290
    %vm293 = vcmask 1045509
    %v294 = vsel %vm293, %v276, %v292
    %vm295 = vcmask 1046534
    %v296 = vsel %vm295, %v280, %v294
    %vm297 = vcmask 1047559
    %v298 = vsel %vm297, %v284, %v296
    %vm300 = vcmask 64512
    %v301 = vsel %vm300, %v298, -inf
    %302 = vmax.xlane.f32.xlu0 %v301
    %v303 = vpop.xlane.xlu0 %302
    %v305 = vlaneseq
    %v306 = vshrl.u32 %v305, 7
    %v307 = vsub.s32 0, %v306
    %v308 = vrot.slane %v303, %v307
    %v309 = vlaneseq
    %v310 = vshrl.u32 %v309, 7
    %v311 = vsub.s32 1, %v310
    %v312 = vrot.slane %v303, %v311
    %v313 = vlaneseq
    %v314 = vshrl.u32 %v313, 7
    %v315 = vsub.s32 2, %v314
    %v316 = vrot.slane %v303, %v315
    %v317 = vlaneseq
    %v318 = vshrl.u32 %v317, 7
    %v319 = vsub.s32 3, %v318
    %v320 = vrot.slane %v303, %v319
    %v321 = vlaneseq
    %v322 = vshrl.u32 %v321, 7
    %v323 = vsub.s32 4, %v322
    %v324 = vrot.slane %v303, %v323
    %v325 = vlaneseq
    %v326 = vshrl.u32 %v325, 7
    %v327 = vsub.s32 5, %v326
    %v328 = vrot.slane %v303, %v327
    %v329 = vlaneseq
    %v330 = vshrl.u32 %v329, 7
    %v331 = vsub.s32 6, %v330
    %v332 = vrot.slane %v303, %v331
    %v333 = vlaneseq
    %v334 = vshrl.u32 %v333, 7
    %v335 = vsub.s32 7, %v334
    %v336 = vrot.slane %v303, %v335
    %v345 = vsub.f32 %v228, %v308
    %v346 = vsub.f32 %v230, %v312
    %v347 = vsub.f32 %v232, %v316
    %v348 = vsub.f32 %v234, %v320
    %v349 = vsub.f32 %v236, %v324
    %v350 = vsub.f32 %v238, %v328
    %v351 = vsub.f32 %v240, %v332
    %v352 = vsub.f32 %v242, %v336
    %v353 = vmul.f32 %v345, 1.442695
    %v354 = vpow.pop %v353
    %v355 = vmul.f32 %v346, 1.442695
    %v356 = vpow.pop %v355
    %v357 = vmul.f32 %v347, 1.442695
    %v358 = vpow.pop %v357
    %v359 = vmul.f32 %v348, 1.442695
    %v360 = vpow.pop %v359
    %v361 = vmul.f32 %v349, 1.442695
    %v362 = vpow.pop %v361
    %v363 = vmul.f32 %v350, 1.442695
    %v364 = vpow.pop %v363
    %v365 = vmul.f32 %v351, 1.442695
    %v366 = vpow.pop %v365
    %v367 = vmul.f32 %v352, 1.442695
    %v368 = vpow.pop %v367
    %377 = vset.pattern.permute.xlu0 0
    %378 = vperm.xlu0 %377, %v354
    %v379 = vpop.permute.xlu0 %378
    %380 = vset.pattern.permute.xlu0 0
    %381 = vperm.xlu0 %380, %v356
    %v382 = vpop.permute.xlu0 %381
    %383 = vset.pattern.permute.xlu0 0
    %384 = vperm.xlu0 %383, %v358
    %v385 = vpop.permute.xlu0 %384
    %386 = vset.pattern.permute.xlu0 0
    %387 = vperm.xlu0 %386, %v360
    %v388 = vpop.permute.xlu0 %387
    %389 = vset.pattern.permute.xlu0 0
    %390 = vperm.xlu0 %389, %v362
    %v391 = vpop.permute.xlu0 %390
    %392 = vset.pattern.permute.xlu0 0
    %393 = vperm.xlu0 %392, %v364
    %v394 = vpop.permute.xlu0 %393
    %395 = vset.pattern.permute.xlu0 0
    %396 = vperm.xlu0 %395, %v366
    %v397 = vpop.permute.xlu0 %396
    %398 = vset.pattern.permute.xlu0 0
    %399 = vperm.xlu0 %398, %v368
    %v400 = vpop.permute.xlu0 %399
    %v401 = vlaneseq
    %v402 = vshrl.u32 %v401, 7
    %v403 = vsub.s32 %v252, %v402
    %v404 = vrot.slane %v379, %v403
    %v405 = vlaneseq
    %v406 = vshrl.u32 %v405, 7
    %v407 = vsub.s32 %v252, %v406
    %v408 = vrot.slane %v382, %v407
    %v409 = vlaneseq
    %v410 = vshrl.u32 %v409, 7
    %v411 = vsub.s32 %v252, %v410
    %v412 = vrot.slane %v385, %v411
    %v413 = vlaneseq
    %v414 = vshrl.u32 %v413, 7
    %v415 = vsub.s32 %v252, %v414
    %v416 = vrot.slane %v388, %v415
    %v417 = vlaneseq
    %v418 = vshrl.u32 %v417, 7
    %v419 = vsub.s32 %v252, %v418
    %v420 = vrot.slane %v391, %v419
    %v421 = vlaneseq
    %v422 = vshrl.u32 %v421, 7
    %v423 = vsub.s32 %v252, %v422
    %v424 = vrot.slane %v394, %v423
    %v425 = vlaneseq
    %v426 = vshrl.u32 %v425, 7
    %v427 = vsub.s32 %v252, %v426
    %v428 = vrot.slane %v397, %v427
    %v429 = vlaneseq
    %v430 = vshrl.u32 %v429, 7
    %v431 = vsub.s32 %v252, %v430
    %v432 = vrot.slane %v400, %v431
    %v433 = vsel %vm285, %v408, %v404
    %v434 = vsel %vm287, %v412, %v433
    %v435 = vsel %vm289, %v416, %v434
    %v436 = vsel %vm291, %v420, %v435
    %v437 = vsel %vm293, %v424, %v436
    %v438 = vsel %vm295, %v428, %v437
    %v439 = vsel %vm297, %v432, %v438
    %v441 = vsel %vm300, %v439, 0.0
    %442 = vadd.xlane.f32.xlu0 %v441
    %v443 = vpop.xlane.xlu0 %442
    %v444 = vrcp.pop %v443
    %v445 = vpack.c.bf16 %v354, %v354
    %v446 = vpack.c.bf16 %v356, %v356
    %v447 = vpack.c.bf16 %v358, %v358
    %v448 = vpack.c.bf16 %v360, %v360
    %v449 = vpack.c.bf16 %v362, %v362
    %v450 = vpack.c.bf16 %v364, %v364
    %v451 = vpack.c.bf16 %v366, %v366
    %v452 = vpack.c.bf16 %v368, %v368
    %v454 = vunpack.c.l.b16 %v445
    %455 = vset.pattern.permute.xlu0 0
    %456 = vperm.xlu0 %455, %v454
    %v457 = vpop.permute.xlu0 %456
    %v458 = vlaneseq
    %v459 = vshrl.u32 %v458, 7
    %v460 = vsub.s32 %v252, %v459
    %v461 = vrot.slane %v457, %v460
    %v462 = vpack.c.b16 %v461, %v461
    %v464 = vsel %vm300, %v462, 0
    %vm466 = vcmask 1043456
    %v468 = vsel %vm466, %v113, 0
    %470 = vmatprep.subr.bf16.mxu0 0
    %471 = vmatpush1.bf16.msra.mxu0 %v468
    %472 = vmatprep.subr.bf16.mxu0 0
    %473 = vmatpush1.bf16.msra.mxu0 0
    %474 = vmatprep.subr.bf16.mxu0 0
    %475 = vmatpush1.bf16.msra.mxu0 0
    %476 = vmatprep.subr.bf16.mxu0 0
    %477 = vmatpush1.bf16.msra.mxu0 0
    %478 = vmatprep.subr.bf16.mxu0 0
    %479 = vmatpush1.bf16.msra.mxu0 0
    %480 = vmatprep.subr.bf16.mxu0 0
    %481 = vmatpush1.bf16.msra.mxu0 0
    %482 = vmatprep.subr.bf16.mxu0 0
    %483 = vmatpush1.bf16.msra.mxu0 0
    %484 = vmatprep.subr.bf16.mxu0 0
    %485 = vmatpush1.bf16.msra.mxu0 0
    %486 = vmatprep.subr.bf16.mxu0 0
    %487 = vmatpush1.bf16.msra.mxu0 0
    %488 = vmatprep.subr.bf16.mxu0 0
    %489 = vmatpush1.bf16.msra.mxu0 0
    %490 = vmatprep.subr.bf16.mxu0 0
    %491 = vmatpush1.bf16.msra.mxu0 0
    %492 = vmatprep.subr.bf16.mxu0 0
    %493 = vmatpush1.bf16.msra.mxu0 0
    %494 = vmatprep.subr.bf16.mxu0 0
    %495 = vmatpush1.bf16.msra.mxu0 0
    %496 = vmatprep.subr.bf16.mxu0 0
    %497 = vmatpush1.bf16.msra.mxu0 0
    %498 = vmatprep.subr.bf16.mxu0 0
    %499 = vmatpush1.bf16.msra.mxu0 0
    %500 = vmatprep.subr.bf16.mxu0 0
    %501 = vmatpush1.bf16.msra.mxu0 0
    %502 = vmatprep.mubr.bf16.mxu0 0
    %503 = vmatmul.mubr.bf16.gmra.mrb[0].mxu0 %v464
    %v504 = vpop.f32.mrb[0].mxu0
    %v505 = vadd.f32 0.0, %v504
    %v506 = vpop.f32.mrb[0].mxu0
    %v507 = vpop.f32.mrb[0].mxu0
    %v508 = vpop.f32.mrb[0].mxu0
    %509 = vdwg.mxu0
    %v511 = vunpack.c.l.b16 %v446
    %512 = vset.pattern.permute.xlu0 0
    %513 = vperm.xlu0 %512, %v511
    %v514 = vpop.permute.xlu0 %513
    %v515 = vlaneseq
    %v516 = vshrl.u32 %v515, 7
    %v517 = vsub.s32 %v252, %v516
    %v518 = vrot.slane %v514, %v517
    %v519 = vpack.c.b16 %v518, %v518
    %v521 = vsel %vm300, %v519, 0
    %v524 = vsel %vm466, %v114, 0
    %526 = vmatprep.subr.bf16.mxu0 0
    %527 = vmatpush1.bf16.msra.mxu0 %v524
    %528 = vmatprep.subr.bf16.mxu0 0
    %529 = vmatpush1.bf16.msra.mxu0 0
    %530 = vmatprep.subr.bf16.mxu0 0
    %531 = vmatpush1.bf16.msra.mxu0 0
    %532 = vmatprep.subr.bf16.mxu0 0
    %533 = vmatpush1.bf16.msra.mxu0 0
    %534 = vmatprep.subr.bf16.mxu0 0
    %535 = vmatpush1.bf16.msra.mxu0 0
    %536 = vmatprep.subr.bf16.mxu0 0
    %537 = vmatpush1.bf16.msra.mxu0 0
    %538 = vmatprep.subr.bf16.mxu0 0
    %539 = vmatpush1.bf16.msra.mxu0 0
    %540 = vmatprep.subr.bf16.mxu0 0
    %541 = vmatpush1.bf16.msra.mxu0 0
    %542 = vmatprep.subr.bf16.mxu0 0
    %543 = vmatpush1.bf16.msra.mxu0 0
    %544 = vmatprep.subr.bf16.mxu0 0
    %545 = vmatpush1.bf16.msra.mxu0 0
    %546 = vmatprep.subr.bf16.mxu0 0
    %547 = vmatpush1.bf16.msra.mxu0 0
    %548 = vmatprep.subr.bf16.mxu0 0
    %549 = vmatpush1.bf16.msra.mxu0 0
    %550 = vmatprep.subr.bf16.mxu0 0
    %551 = vmatpush1.bf16.msra.mxu0 0
    %552 = vmatprep.subr.bf16.mxu0 0
    %553 = vmatpush1.bf16.msra.mxu0 0
    %554 = vmatprep.subr.bf16.mxu0 0
    %555 = vmatpush1.bf16.msra.mxu0 0
    %556 = vmatprep.subr.bf16.mxu0 0
    %557 = vmatpush1.bf16.msra.mxu0 0
    %558 = vmatprep.mubr.bf16.mxu0 0
    %559 = vmatmul.mubr.bf16.gmra.mrb[0].mxu0 %v521
    %v560 = vpop.f32.mrb[0].mxu0
    %v561 = vadd.f32 0.0, %v560
    %v562 = vpop.f32.mrb[0].mxu0
    %v563 = vpop.f32.mrb[0].mxu0
    %v564 = vpop.f32.mrb[0].mxu0
    %565 = vdwg.mxu0
    %v567 = vunpack.c.l.b16 %v447
    %568 = vset.pattern.permute.xlu0 0
    %569 = vperm.xlu0 %568, %v567
    %v570 = vpop.permute.xlu0 %569
    %v571 = vlaneseq
    %v572 = vshrl.u32 %v571, 7
    %v573 = vsub.s32 %v252, %v572
    %v574 = vrot.slane %v570, %v573
    %v575 = vpack.c.b16 %v574, %v574
    %v577 = vsel %vm300, %v575, 0
    %v580 = vsel %vm466, %v115, 0
    %582 = vmatprep.subr.bf16.mxu0 0
    %583 = vmatpush1.bf16.msra.mxu0 %v580
    %584 = vmatprep.subr.bf16.mxu0 0
    %585 = vmatpush1.bf16.msra.mxu0 0
    %586 = vmatprep.subr.bf16.mxu0 0
    %587 = vmatpush1.bf16.msra.mxu0 0
    %588 = vmatprep.subr.bf16.mxu0 0
    %589 = vmatpush1.bf16.msra.mxu0 0
    %590 = vmatprep.subr.bf16.mxu0 0
    %591 = vmatpush1.bf16.msra.mxu0 0
    %592 = vmatprep.subr.bf16.mxu0 0
    %593 = vmatpush1.bf16.msra.mxu0 0
    %594 = vmatprep.subr.bf16.mxu0 0
    %595 = vmatpush1.bf16.msra.mxu0 0
    %596 = vmatprep.subr.bf16.mxu0 0
    %597 = vmatpush1.bf16.msra.mxu0 0
    %598 = vmatprep.subr.bf16.mxu0 0
    %599 = vmatpush1.bf16.msra.mxu0 0
    %600 = vmatprep.subr.bf16.mxu0 0
    %601 = vmatpush1.bf16.msra.mxu0 0
    %602 = vmatprep.subr.bf16.mxu0 0
    %603 = vmatpush1.bf16.msra.mxu0 0
    %604 = vmatprep.subr.bf16.mxu0 0
    %605 = vmatpush1.bf16.msra.mxu0 0
    %606 = vmatprep.subr.bf16.mxu0 0
    %607 = vmatpush1.bf16.msra.mxu0 0
    %608 = vmatprep.subr.bf16.mxu0 0
    %609 = vmatpush1.bf16.msra.mxu0 0
    %610 = vmatprep.subr.bf16.mxu0 0
    %611 = vmatpush1.bf16.msra.mxu0 0
    %612 = vmatprep.subr.bf16.mxu0 0
    %613 = vmatpush1.bf16.msra.mxu0 0
    %614 = vmatprep.mubr.bf16.mxu0 0
    %615 = vmatmul.mubr.bf16.gmra.mrb[0].mxu0 %v577
    %v616 = vpop.f32.mrb[0].mxu0
    %v617 = vadd.f32 0.0, %v616
    %v618 = vpop.f32.mrb[0].mxu0
    %v619 = vpop.f32.mrb[0].mxu0
    %v620 = vpop.f32.mrb[0].mxu0
    %621 = vdwg.mxu0
    %v623 = vunpack.c.l.b16 %v448
    %624 = vset.pattern.permute.xlu0 0
    %625 = vperm.xlu0 %624, %v623
    %v626 = vpop.permute.xlu0 %625
    %v627 = vlaneseq
    %v628 = vshrl.u32 %v627, 7
    %v629 = vsub.s32 %v252, %v628
    %v630 = vrot.slane %v626, %v629
    %v631 = vpack.c.b16 %v630, %v630
    %v633 = vsel %vm300, %v631, 0
    %v636 = vsel %vm466, %v116, 0
    %638 = vmatprep.subr.bf16.mxu0 0
    %639 = vmatpush1.bf16.msra.mxu0 %v636
    %640 = vmatprep.subr.bf16.mxu0 0
    %641 = vmatpush1.bf16.msra.mxu0 0
    %642 = vmatprep.subr.bf16.mxu0 0
    %643 = vmatpush1.bf16.msra.mxu0 0
    %644 = vmatprep.subr.bf16.mxu0 0
    %645 = vmatpush1.bf16.msra.mxu0 0
    %646 = vmatprep.subr.bf16.mxu0 0
    %647 = vmatpush1.bf16.msra.mxu0 0
    %648 = vmatprep.subr.bf16.mxu0 0
    %649 = vmatpush1.bf16.msra.mxu0 0
    %650 = vmatprep.subr.bf16.mxu0 0
    %651 = vmatpush1.bf16.msra.mxu0 0
    %652 = vmatprep.subr.bf16.mxu0 0
    %653 = vmatpush1.bf16.msra.mxu0 0
    %654 = vmatprep.subr.bf16.mxu0 0
    %655 = vmatpush1.bf16.msra.mxu0 0
    %656 = vmatprep.subr.bf16.mxu0 0
    %657 = vmatpush1.bf16.msra.mxu0 0
    %658 = vmatprep.subr.bf16.mxu0 0
    %659 = vmatpush1.bf16.msra.mxu0 0
    %660 = vmatprep.subr.bf16.mxu0 0
    %661 = vmatpush1.bf16.msra.mxu0 0
    %662 = vmatprep.subr.bf16.mxu0 0
    %663 = vmatpush1.bf16.msra.mxu0 0
    %664 = vmatprep.subr.bf16.mxu0 0
    %665 = vmatpush1.bf16.msra.mxu0 0
    %666 = vmatprep.subr.bf16.mxu0 0
    %667 = vmatpush1.bf16.msra.mxu0 0
    %668 = vmatprep.subr.bf16.mxu0 0
    %669 = vmatpush1.bf16.msra.mxu0 0
    %670 = vmatprep.mubr.bf16.mxu0 0
    %671 = vmatmul.mubr.bf16.gmra.mrb[0].mxu0 %v633
    %v672 = vpop.f32.mrb[0].mxu0
    %v673 = vadd.f32 0.0, %v672
    %v674 = vpop.f32.mrb[0].mxu0
    %v675 = vpop.f32.mrb[0].mxu0
    %v676 = vpop.f32.mrb[0].mxu0
    %677 = vdwg.mxu0
    %v679 = vunpack.c.l.b16 %v449
    %680 = vset.pattern.permute.xlu0 0
    %681 = vperm.xlu0 %680, %v679
    %v682 = vpop.permute.xlu0 %681
    %v683 = vlaneseq
    %v684 = vshrl.u32 %v683, 7
    %v685 = vsub.s32 %v252, %v684
    %v686 = vrot.slane %v682, %v685
    %v687 = vpack.c.b16 %v686, %v686
    %v689 = vsel %vm300, %v687, 0
    %v692 = vsel %vm466, %v117, 0
    %694 = vmatprep.subr.bf16.mxu0 0
    %695 = vmatpush1.bf16.msra.mxu0 %v692
    %696 = vmatprep.subr.bf16.mxu0 0
    %697 = vmatpush1.bf16.msra.mxu0 0
    %698 = vmatprep.subr.bf16.mxu0 0
    %699 = vmatpush1.bf16.msra.mxu0 0
    %700 = vmatprep.subr.bf16.mxu0 0
    %701 = vmatpush1.bf16.msra.mxu0 0
    %702 = vmatprep.subr.bf16.mxu0 0
    %703 = vmatpush1.bf16.msra.mxu0 0
    %704 = vmatprep.subr.bf16.mxu0 0
    %705 = vmatpush1.bf16.msra.mxu0 0
    %706 = vmatprep.subr.bf16.mxu0 0
    %707 = vmatpush1.bf16.msra.mxu0 0
    %708 = vmatprep.subr.bf16.mxu0 0
    %709 = vmatpush1.bf16.msra.mxu0 0
    %710 = vmatprep.subr.bf16.mxu0 0
    %711 = vmatpush1.bf16.msra.mxu0 0
    %712 = vmatprep.subr.bf16.mxu0 0
    %713 = vmatpush1.bf16.msra.mxu0 0
    %714 = vmatprep.subr.bf16.mxu0 0
    %715 = vmatpush1.bf16.msra.mxu0 0
    %716 = vmatprep.subr.bf16.mxu0 0
    %717 = vmatpush1.bf16.msra.mxu0 0
    %718 = vmatprep.subr.bf16.mxu0 0
    %719 = vmatpush1.bf16.msra.mxu0 0
    %720 = vmatprep.subr.bf16.mxu0 0
    %721 = vmatpush1.bf16.msra.mxu0 0
    %722 = vmatprep.subr.bf16.mxu0 0
    %723 = vmatpush1.bf16.msra.mxu0 0
    %724 = vmatprep.subr.bf16.mxu0 0
    %725 = vmatpush1.bf16.msra.mxu0 0
    %726 = vmatprep.mubr.bf16.mxu0 0
    %727 = vmatmul.mubr.bf16.gmra.mrb[0].mxu0 %v689
    %v728 = vpop.f32.mrb[0].mxu0
    %v729 = vadd.f32 0.0, %v728
    %v730 = vpop.f32.mrb[0].mxu0
    %v731 = vpop.f32.mrb[0].mxu0
    %v732 = vpop.f32.mrb[0].mxu0
    %733 = vdwg.mxu0
    %v735 = vunpack.c.l.b16 %v450
    %736 = vset.pattern.permute.xlu0 0
    %737 = vperm.xlu0 %736, %v735
    %v738 = vpop.permute.xlu0 %737
    %v739 = vlaneseq
    %v740 = vshrl.u32 %v739, 7
    %v741 = vsub.s32 %v252, %v740
    %v742 = vrot.slane %v738, %v741
    %v743 = vpack.c.b16 %v742, %v742
    %v745 = vsel %vm300, %v743, 0
    %v748 = vsel %vm466, %v118, 0
    %750 = vmatprep.subr.bf16.mxu0 0
    %751 = vmatpush1.bf16.msra.mxu0 %v748
    %752 = vmatprep.subr.bf16.mxu0 0
    %753 = vmatpush1.bf16.msra.mxu0 0
    %754 = vmatprep.subr.bf16.mxu0 0
    %755 = vmatpush1.bf16.msra.mxu0 0
    %756 = vmatprep.subr.bf16.mxu0 0
    %757 = vmatpush1.bf16.msra.mxu0 0
    %758 = vmatprep.subr.bf16.mxu0 0
    %759 = vmatpush1.bf16.msra.mxu0 0
    %760 = vmatprep.subr.bf16.mxu0 0
    %761 = vmatpush1.bf16.msra.mxu0 0
    %762 = vmatprep.subr.bf16.mxu0 0
    %763 = vmatpush1.bf16.msra.mxu0 0
    %764 = vmatprep.subr.bf16.mxu0 0
    %765 = vmatpush1.bf16.msra.mxu0 0
    %766 = vmatprep.subr.bf16.mxu0 0
    %767 = vmatpush1.bf16.msra.mxu0 0
    %768 = vmatprep.subr.bf16.mxu0 0
    %769 = vmatpush1.bf16.msra.mxu0 0
    %770 = vmatprep.subr.bf16.mxu0 0
    %771 = vmatpush1.bf16.msra.mxu0 0
    %772 = vmatprep.subr.bf16.mxu0 0
    %773 = vmatpush1.bf16.msra.mxu0 0
    %774 = vmatprep.subr.bf16.mxu0 0
    %775 = vmatpush1.bf16.msra.mxu0 0
    %776 = vmatprep.subr.bf16.mxu0 0
    %777 = vmatpush1.bf16.msra.mxu0 0
    %778 = vmatprep.subr.bf16.mxu0 0
    %779 = vmatpush1.bf16.msra.mxu0 0
    %780 = vmatprep.subr.bf16.mxu0 0
    %781 = vmatpush1.bf16.msra.mxu0 0
    %782 = vmatprep.mubr.bf16.mxu0 0
    %783 = vmatmul.mubr.bf16.gmra.mrb[0].mxu0 %v745
    %v784 = vpop.f32.mrb[0].mxu0
    %v785 = vadd.f32 0.0, %v784
    %v786 = vpop.f32.mrb[0].mxu0
    %v787 = vpop.f32.mrb[0].mxu0
    %v788 = vpop.f32.mrb[0].mxu0
    %789 = vdwg.mxu0
    %v791 = vunpack.c.l.b16 %v451
    %792 = vset.pattern.permute.xlu0 0
    %793 = vperm.xlu0 %792, %v791
    %v794 = vpop.permute.xlu0 %793
    %v795 = vlaneseq
    %v796 = vshrl.u32 %v795, 7
    %v797 = vsub.s32 %v252, %v796
    %v798 = vrot.slane %v794, %v797
    %v799 = vpack.c.b16 %v798, %v798
    %v801 = vsel %vm300, %v799, 0
    %v804 = vsel %vm466, %v119, 0
    %806 = vmatprep.subr.bf16.mxu0 0
    %807 = vmatpush1.bf16.msra.mxu0 %v804
    %808 = vmatprep.subr.bf16.mxu0 0
    %809 = vmatpush1.bf16.msra.mxu0 0
    %810 = vmatprep.subr.bf16.mxu0 0
    %811 = vmatpush1.bf16.msra.mxu0 0
    %812 = vmatprep.subr.bf16.mxu0 0
    %813 = vmatpush1.bf16.msra.mxu0 0
    %814 = vmatprep.subr.bf16.mxu0 0
    %815 = vmatpush1.bf16.msra.mxu0 0
    %816 = vmatprep.subr.bf16.mxu0 0
    %817 = vmatpush1.bf16.msra.mxu0 0
    %818 = vmatprep.subr.bf16.mxu0 0
    %819 = vmatpush1.bf16.msra.mxu0 0
    %820 = vmatprep.subr.bf16.mxu0 0
    %821 = vmatpush1.bf16.msra.mxu0 0
    %822 = vmatprep.subr.bf16.mxu0 0
    %823 = vmatpush1.bf16.msra.mxu0 0
    %824 = vmatprep.subr.bf16.mxu0 0
    %825 = vmatpush1.bf16.msra.mxu0 0
    %826 = vmatprep.subr.bf16.mxu0 0
    %827 = vmatpush1.bf16.msra.mxu0 0
    %828 = vmatprep.subr.bf16.mxu0 0
    %829 = vmatpush1.bf16.msra.mxu0 0
    %830 = vmatprep.subr.bf16.mxu0 0
    %831 = vmatpush1.bf16.msra.mxu0 0
    %832 = vmatprep.subr.bf16.mxu0 0
    %833 = vmatpush1.bf16.msra.mxu0 0
    %834 = vmatprep.subr.bf16.mxu0 0
    %835 = vmatpush1.bf16.msra.mxu0 0
    %836 = vmatprep.subr.bf16.mxu0 0
    %837 = vmatpush1.bf16.msra.mxu0 0
    %838 = vmatprep.mubr.bf16.mxu0 0
    %839 = vmatmul.mubr.bf16.gmra.mrb[0].mxu0 %v801
    %v840 = vpop.f32.mrb[0].mxu0
    %v841 = vadd.f32 0.0, %v840
    %v842 = vpop.f32.mrb[0].mxu0
    %v843 = vpop.f32.mrb[0].mxu0
    %v844 = vpop.f32.mrb[0].mxu0
    %845 = vdwg.mxu0
    %v847 = vunpack.c.l.b16 %v452
    %848 = vset.pattern.permute.xlu0 0
    %849 = vperm.xlu0 %848, %v847
    %v850 = vpop.permute.xlu0 %849
    %v851 = vlaneseq
    %v852 = vshrl.u32 %v851, 7
    %v853 = vsub.s32 %v252, %v852
    %v854 = vrot.slane %v850, %v853
    %v855 = vpack.c.b16 %v854, %v854
    %v857 = vsel %vm300, %v855, 0
    %v860 = vsel %vm466, %v120, 0
    %862 = vmatprep.subr.bf16.mxu0 0
    %863 = vmatpush1.bf16.msra.mxu0 %v860
    %864 = vmatprep.subr.bf16.mxu0 0
    %865 = vmatpush1.bf16.msra.mxu0 0
    %866 = vmatprep.subr.bf16.mxu0 0
    %867 = vmatpush1.bf16.msra.mxu0 0
    %868 = vmatprep.subr.bf16.mxu0 0
    %869 = vmatpush1.bf16.msra.mxu0 0
    %870 = vmatprep.subr.bf16.mxu0 0
    %871 = vmatpush1.bf16.msra.mxu0 0
    %872 = vmatprep.subr.bf16.mxu0 0
    %873 = vmatpush1.bf16.msra.mxu0 0
    %874 = vmatprep.subr.bf16.mxu0 0
    %875 = vmatpush1.bf16.msra.mxu0 0
    %876 = vmatprep.subr.bf16.mxu0 0
    %877 = vmatpush1.bf16.msra.mxu0 0
    %878 = vmatprep.subr.bf16.mxu0 0
    %879 = vmatpush1.bf16.msra.mxu0 0
    %880 = vmatprep.subr.bf16.mxu0 0
    %881 = vmatpush1.bf16.msra.mxu0 0
    %882 = vmatprep.subr.bf16.mxu0 0
    %883 = vmatpush1.bf16.msra.mxu0 0
    %884 = vmatprep.subr.bf16.mxu0 0
    %885 = vmatpush1.bf16.msra.mxu0 0
    %886 = vmatprep.subr.bf16.mxu0 0
    %887 = vmatpush1.bf16.msra.mxu0 0
    %888 = vmatprep.subr.bf16.mxu0 0
    %889 = vmatpush1.bf16.msra.mxu0 0
    %890 = vmatprep.subr.bf16.mxu0 0
    %891 = vmatpush1.bf16.msra.mxu0 0
    %892 = vmatprep.subr.bf16.mxu0 0
    %893 = vmatpush1.bf16.msra.mxu0 0
    %894 = vmatprep.mubr.bf16.mxu0 0
    %895 = vmatmul.mubr.bf16.gmra.mrb[0].mxu0 %v857
    %v896 = vpop.f32.mrb[0].mxu0
    %v897 = vadd.f32 0.0, %v896
    %v898 = vpop.f32.mrb[0].mxu0
    %v899 = vpop.f32.mrb[0].mxu0
    %v900 = vpop.f32.mrb[0].mxu0
    %901 = vdwg.mxu0
    %v903 = vrot.slane %v444, 1
    %v904 = vrot.slane %v444, 2
    %v905 = vrot.slane %v444, 3
    %v906 = vrot.slane %v444, 4
    %v907 = vrot.slane %v444, 5
    %v908 = vrot.slane %v444, 6
    %v909 = vrot.slane %v444, 7
    %v918 = vmul.f32 %v505, %v444
    %v919 = vmul.f32 %v561, %v903
    %v920 = vmul.f32 %v617, %v904
    %v921 = vmul.f32 %v673, %v905
    %v922 = vmul.f32 %v729, %v906
    %v923 = vmul.f32 %v785, %v907
    %v924 = vmul.f32 %v841, %v908
    %v925 = vmul.f32 %v897, %v909
    %v926 = vld [vmem:[#allocation4] sm:$0xff]
    %v927 = vld [vmem:[#allocation4 + $0x8] sm:$0xff]
    %v928 = vld [vmem:[#allocation4 + $0x10] sm:$0xff]
    %v929 = vld [vmem:[#allocation4 + $0x18] sm:$0xff]
    %v930 = vpack.c.bf16 %v918, %v918
    %v931 = vpack.c.bf16 %v919, %v919
    %v932 = vpack.c.bf16 %v920, %v920
    %v933 = vpack.c.bf16 %v921, %v921
    %v934 = vpack.c.bf16 %v922, %v922
    %v935 = vpack.c.bf16 %v923, %v923
    %v936 = vpack.c.bf16 %v924, %v924
    %v937 = vpack.c.bf16 %v925, %v925
    %v938 = vld [vmem:[#allocation12] sm:$0xff]
    %v939 = vld [vmem:[#allocation12 + $0x8] sm:$0xff]
    %v940 = vld [vmem:[#allocation12 + $0x10] sm:$0xff]
    %v941 = vld [vmem:[#allocation12 + $0x18] sm:$0xff]
    %v942 = vld [vmem:[#allocation12 + $0x20] sm:$0xff]
    %v943 = vld [vmem:[#allocation12 + $0x28] sm:$0xff]
    %v944 = vld [vmem:[#allocation12 + $0x30] sm:$0xff]
    %v945 = vld [vmem:[#allocation12 + $0x38] sm:$0xff]
    %v946 = vld [vmem:[#allocation12 + $0x40] sm:$0xff]
    %v947 = vld [vmem:[#allocation12 + $0x48] sm:$0xff]
    %v948 = vld [vmem:[#allocation12 + $0x50] sm:$0xff]
    %v949 = vld [vmem:[#allocation12 + $0x58] sm:$0xff]
    %v950 = vld [vmem:[#allocation12 + $0x60] sm:$0xff]
    %v951 = vld [vmem:[#allocation12 + $0x68] sm:$0xff]
    %v952 = vld [vmem:[#allocation12 + $0x70] sm:$0xff]
    %v953 = vld [vmem:[#allocation12 + $0x78] sm:$0xff]
    %v954 = vld [vmem:[#allocation12 + $0x80] sm:$0xff]
    %v955 = vld [vmem:[#allocation12 + $0x88] sm:$0xff]
    %v956 = vld [vmem:[#allocation12 + $0x90] sm:$0xff]
    %v957 = vld [vmem:[#allocation12 + $0x98] sm:$0xff]
    %v958 = vld [vmem:[#allocation12 + $0xa0] sm:$0xff]
    %v959 = vld [vmem:[#allocation12 + $0xa8] sm:$0xff]
    %v960 = vld [vmem:[#allocation12 + $0xb0] sm:$0xff]
    %v961 = vld [vmem:[#allocation12 + $0xb8] sm:$0xff]
    %v962 = vld [vmem:[#allocation12 + $0xc0] sm:$0xff]
    %v963 = vld [vmem:[#allocation12 + $0xc8] sm:$0xff]
    %v964 = vld [vmem:[#allocation12 + $0xd0] sm:$0xff]
    %v965 = vld [vmem:[#allocation12 + $0xd8] sm:$0xff]
    %v966 = vld [vmem:[#allocation12 + $0xe0] sm:$0xff]
    %v967 = vld [vmem:[#allocation12 + $0xe8] sm:$0xff]
    %v968 = vld [vmem:[#allocation12 + $0xf0] sm:$0xff]
    %v969 = vld [vmem:[#allocation12 + $0xf8] sm:$0xff]
    %v978 = vunpack.c.l.b16 %v930
    %v979 = vunpack.c.l.b16 %v931
    %v980 = vunpack.c.l.b16 %v932
    %v981 = vunpack.c.l.b16 %v933
    %v982 = vunpack.c.l.b16 %v934
    %v983 = vunpack.c.l.b16 %v935
    %v984 = vunpack.c.l.b16 %v936
    %v985 = vunpack.c.l.b16 %v937
    %v986 = vrot.slane %v979, 7
    %v987 = vsel %vm285, %v986, %v978
    %v988 = vrot.slane %v980, 6
    %v989 = vsel %vm287, %v988, %v987
    %v990 = vrot.slane %v981, 5
    %v991 = vsel %vm289, %v990, %v989
    %v992 = vrot.slane %v982, 4
    %v993 = vsel %vm291, %v992, %v991
    %v994 = vrot.slane %v983, 3
    %v995 = vsel %vm293, %v994, %v993
    %v996 = vrot.slane %v984, 2
    %v997 = vsel %vm295, %v996, %v995
    %v998 = vrot.slane %v985, 1
    %v999 = vsel %vm297, %v998, %v997
    %v1000 = vpack.c.b16 %v999, %v999
    %v1034 = vunpack.c.l.b16 %v938
    %v1035 = vunpack.c.h.b16 %v938
    %v1036 = vunpack.c.l.b16 %v939
    %v1037 = vunpack.c.h.b16 %v939
    %v1038 = vunpack.c.l.b16 %v940
    %v1039 = vunpack.c.h.b16 %v940
    %v1040 = vunpack.c.l.b16 %v941
    %v1041 = vunpack.c.h.b16 %v941
    %v1042 = vunpack.c.l.b16 %v942
    %v1043 = vunpack.c.h.b16 %v942
    %v1044 = vunpack.c.l.b16 %v943
    %v1045 = vunpack.c.h.b16 %v943
    %v1046 = vunpack.c.l.b16 %v944
    %v1047 = vunpack.c.h.b16 %v944
    %v1048 = vunpack.c.l.b16 %v945
    %v1049 = vunpack.c.h.b16 %v945
    %v1050 = vunpack.c.l.b16 %v946
    %v1051 = vunpack.c.h.b16 %v946
    %v1052 = vunpack.c.l.b16 %v947
    %v1053 = vunpack.c.h.b16 %v947
    %v1054 = vunpack.c.l.b16 %v948
    %v1055 = vunpack.c.h.b16 %v948
    %v1056 = vunpack.c.l.b16 %v949
    %v1057 = vunpack.c.h.b16 %v949
    %v1058 = vunpack.c.l.b16 %v950
    %v1059 = vunpack.c.h.b16 %v950
    %v1060 = vunpack.c.l.b16 %v951
    %v1061 = vunpack.c.h.b16 %v951
    %v1062 = vunpack.c.l.b16 %v952
    %v1063 = vunpack.c.h.b16 %v952
    %v1064 = vunpack.c.l.b16 %v953
    %v1065 = vunpack.c.h.b16 %v953
    %v1066 = vunpack.c.l.b16 %v954
    %v1067 = vunpack.c.h.b16 %v954
    %v1068 = vunpack.c.l.b16 %v955
    %v1069 = vunpack.c.h.b16 %v955
    %v1070 = vunpack.c.l.b16 %v956
    %v1071 = vunpack.c.h.b16 %v956
    %v1072 = vunpack.c.l.b16 %v957
    %v1073 = vunpack.c.h.b16 %v957
    %v1074 = vunpack.c.l.b16 %v958
    %v1075 = vunpack.c.h.b16 %v958
    %v1076 = vunpack.c.l.b16 %v959
    %v1077 = vunpack.c.h.b16 %v959
    %v1078 = vunpack.c.l.b16 %v960
    %v1079 = vunpack.c.h.b16 %v960
    %v1080 = vunpack.c.l.b16 %v961
    %v1081 = vunpack.c.h.b16 %v961
    %v1082 = vunpack.c.l.b16 %v962
    %v1083 = vunpack.c.h.b16 %v962
    %v1084 = vunpack.c.l.b16 %v963
    %v1085 = vunpack.c.h.b16 %v963
    %v1086 = vunpack.c.l.b16 %v964
    %v1087 = vunpack.c.h.b16 %v964
    %v1088 = vunpack.c.l.b16 %v965
    %v1089 = vunpack.c.h.b16 %v965
    %v1090 = vunpack.c.l.b16 %v966
    %v1091 = vunpack.c.h.b16 %v966
    %v1092 = vunpack.c.l.b16 %v967
    %v1093 = vunpack.c.h.b16 %v967
    %v1094 = vunpack.c.l.b16 %v968
    %v1095 = vunpack.c.h.b16 %v968
    %v1096 = vunpack.c.l.b16 %v969
    %v1097 = vunpack.c.h.b16 %v969
    %v1098 = vpack.c.b16 %v1038, %v1034
    %v1099 = vpack.c.b16 %v1039, %v1035
    %v1100 = vpack.c.b16 %v1040, %v1036
    %v1101 = vpack.c.b16 %v1041, %v1037
    %v1102 = vpack.c.b16 %v1046, %v1042
    %v1103 = vpack.c.b16 %v1047, %v1043
    %v1104 = vpack.c.b16 %v1048, %v1044
    %v1105 = vpack.c.b16 %v1049, %v1045
    %v1106 = vpack.c.b16 %v1054, %v1050
    %v1107 = vpack.c.b16 %v1055, %v1051
    %v1108 = vpack.c.b16 %v1056, %v1052
    %v1109 = vpack.c.b16 %v1057, %v1053
    %v1110 = vpack.c.b16 %v1062, %v1058
    %v1111 = vpack.c.b16 %v1063, %v1059
    %v1112 = vpack.c.b16 %v1064, %v1060
    %v1113 = vpack.c.b16 %v1065, %v1061
    %v1114 = vpack.c.b16 %v1070, %v1066
    %v1115 = vpack.c.b16 %v1071, %v1067
    %v1116 = vpack.c.b16 %v1072, %v1068
    %v1117 = vpack.c.b16 %v1073, %v1069
    %v1118 = vpack.c.b16 %v1078, %v1074
    %v1119 = vpack.c.b16 %v1079, %v1075
    %v1120 = vpack.c.b16 %v1080, %v1076
    %v1121 = vpack.c.b16 %v1081, %v1077
    %v1122 = vpack.c.b16 %v1086, %v1082
    %v1123 = vpack.c.b16 %v1087, %v1083
    %v1124 = vpack.c.b16 %v1088, %v1084
    %v1125 = vpack.c.b16 %v1089, %v1085
    %v1126 = vpack.c.b16 %v1094, %v1090
    %v1127 = vpack.c.b16 %v1095, %v1091
    %v1128 = vpack.c.b16 %v1096, %v1092
    %v1129 = vpack.c.b16 %v1097, %v1093
    %1162 = vmatprep.subr.bf16.mxu0 %v1099
    %1163 = vmatpush1.bf16.msra.mxu0 %v1098
    %1164 = vmatprep.subr.bf16.mxu0 %v1103
    %1165 = vmatpush1.bf16.msra.mxu0 %v1102
    %1166 = vmatprep.subr.bf16.mxu0 %v1107
    %1167 = vmatpush1.bf16.msra.mxu0 %v1106
    %1168 = vmatprep.subr.bf16.mxu0 %v1111
    %1169 = vmatpush1.bf16.msra.mxu0 %v1110
    %1170 = vmatprep.subr.bf16.mxu0 %v1115
    %1171 = vmatpush1.bf16.msra.mxu0 %v1114
    %1172 = vmatprep.subr.bf16.mxu0 %v1119
    %1173 = vmatpush1.bf16.msra.mxu0 %v1118
    %1174 = vmatprep.subr.bf16.mxu0 %v1123
    %1175 = vmatpush1.bf16.msra.mxu0 %v1122
    %1176 = vmatprep.subr.bf16.mxu0 %v1127
    %1177 = vmatpush1.bf16.msra.mxu0 %v1126
    %1178 = vmatprep.subr.bf16.mxu0 0
    %1179 = vmatpush1.bf16.msra.mxu0 0
    %1180 = vmatprep.subr.bf16.mxu0 0
    %1181 = vmatpush1.bf16.msra.mxu0 0
    %1182 = vmatprep.subr.bf16.mxu0 0
    %1183 = vmatpush1.bf16.msra.mxu0 0
    %1184 = vmatprep.subr.bf16.mxu0 0
    %1185 = vmatpush1.bf16.msra.mxu0 0
    %1186 = vmatprep.subr.bf16.mxu0 0
    %1187 = vmatpush1.bf16.msra.mxu0 0
    %1188 = vmatprep.subr.bf16.mxu0 0
    %1189 = vmatpush1.bf16.msra.mxu0 0
    %1190 = vmatprep.subr.bf16.mxu0 0
    %1191 = vmatpush1.bf16.msra.mxu0 0
    %1192 = vmatprep.subr.bf16.mxu0 0
    %1193 = vmatpush1.bf16.msra.mxu0 0
    %1194 = vmatprep.mubr.bf16.mxu0 0
    %1195 = vmatmul.mubr.bf16.gmra.mrb[0].mxu0 %v1000
    %v1196 = vpop.f32.mrb[0].mxu0
    %v1197 = vadd.f32 0.0, %v1196
    %v1198 = vpop.f32.mrb[0].mxu0
    %v1199 = vadd.f32 0.0, %v1198
    %v1200 = vpop.f32.mrb[0].mxu0
    %v1201 = vpop.f32.mrb[0].mxu0
    %1202 = vdwg.mxu0
    %1203 = vmatprep.subr.bf16.mxu0 %v1101
    %1204 = vmatpush1.bf16.msra.mxu0 %v1100
    %1205 = vmatprep.subr.bf16.mxu0 %v1105
    %1206 = vmatpush1.bf16.msra.mxu0 %v1104
    %1207 = vmatprep.subr.bf16.mxu0 %v1109
    %1208 = vmatpush1.bf16.msra.mxu0 %v1108
    %1209 = vmatprep.subr.bf16.mxu0 %v1113
    %1210 = vmatpush1.bf16.msra.mxu0 %v1112
    %1211 = vmatprep.subr.bf16.mxu0 %v1117
    %1212 = vmatpush1.bf16.msra.mxu0 %v1116
    %1213 = vmatprep.subr.bf16.mxu0 %v1121
    %1214 = vmatpush1.bf16.msra.mxu0 %v1120
    %1215 = vmatprep.subr.bf16.mxu0 %v1125
    %1216 = vmatpush1.bf16.msra.mxu0 %v1124
    %1217 = vmatprep.subr.bf16.mxu0 %v1129
    %1218 = vmatpush1.bf16.msra.mxu0 %v1128
    %1219 = vmatprep.subr.bf16.mxu0 0
    %1220 = vmatpush1.bf16.msra.mxu0 0
    %1221 = vmatprep.subr.bf16.mxu0 0
    %1222 = vmatpush1.bf16.msra.mxu0 0
    %1223 = vmatprep.subr.bf16.mxu0 0
    %1224 = vmatpush1.bf16.msra.mxu0 0
    %1225 = vmatprep.subr.bf16.mxu0 0
    %1226 = vmatpush1.bf16.msra.mxu0 0
    %1227 = vmatprep.subr.bf16.mxu0 0
    %1228 = vmatpush1.bf16.msra.mxu0 0
    %1229 = vmatprep.subr.bf16.mxu0 0
    %1230 = vmatpush1.bf16.msra.mxu0 0
    %1231 = vmatprep.subr.bf16.mxu0 0
    %1232 = vmatpush1.bf16.msra.mxu0 0
    %1233 = vmatprep.subr.bf16.mxu0 0
    %1234 = vmatpush1.bf16.msra.mxu0 0
    %1235 = vmatprep.mubr.bf16.mxu0 0
    %1236 = vmatmul.mubr.bf16.gmra.mrb[0].mxu0 %v1000
    %v1237 = vpop.f32.mrb[0].mxu0
    %v1238 = vadd.f32 0.0, %v1237
    %v1239 = vpop.f32.mrb[0].mxu0
    %v1240 = vadd.f32 0.0, %v1239
    %v1241 = vpop.f32.mrb[0].mxu0
    %v1242 = vpop.f32.mrb[0].mxu0
    %1243 = vdwg.mxu0
    %v1244 = vadd.f32 %v926, %v1197
    %v1245 = vadd.f32 %v927, %v1199
    %v1246 = vadd.f32 %v928, %v1238
    %v1247 = vadd.f32 %v929, %v1240
    %v1248 = vpack.c.bf16 %v111, %v111
    %v1249 = vld [vmem:[#allocation13] sm:$0xff]
    %v1250 = vld [vmem:[#allocation13 + $0x8] sm:$0xff]
    %v1251 = vld [vmem:[#allocation13 + $0x10] sm:$0xff]
    %v1252 = vld [vmem:[#allocation13 + $0x18] sm:$0xff]
    %v1253 = vld [vmem:[#allocation13 + $0x20] sm:$0xff]
    %v1254 = vld [vmem:[#allocation13 + $0x28] sm:$0xff]
    %v1255 = vld [vmem:[#allocation13 + $0x30] sm:$0xff]
    %v1256 = vld [vmem:[#allocation13 + $0x38] sm:$0xff]
    %v1257 = vld [vmem:[#allocation13 + $0x40] sm:$0xff]
    %v1258 = vld [vmem:[#allocation13 + $0x48] sm:$0xff]
    %v1259 = vld [vmem:[#allocation13 + $0x50] sm:$0xff]
    %v1260 = vld [vmem:[#allocation13 + $0x58] sm:$0xff]
    %v1261 = vld [vmem:[#allocation13 + $0x60] sm:$0xff]
    %v1262 = vld [vmem:[#allocation13 + $0x68] sm:$0xff]
    %v1263 = vld [vmem:[#allocation13 + $0x70] sm:$0xff]
    %v1264 = vld [vmem:[#allocation13 + $0x78] sm:$0xff]
    %v1265 = vld [vmem:[#allocation13 + $0x80] sm:$0xff]
    %v1266 = vld [vmem:[#allocation13 + $0x88] sm:$0xff]
    %v1267 = vld [vmem:[#allocation13 + $0x90] sm:$0xff]
    %v1268 = vld [vmem:[#allocation13 + $0x98] sm:$0xff]
    %v1269 = vld [vmem:[#allocation13 + $0xa0] sm:$0xff]
    %v1270 = vld [vmem:[#allocation13 + $0xa8] sm:$0xff]
    %v1271 = vld [vmem:[#allocation13 + $0xb0] sm:$0xff]
    %v1272 = vld [vmem:[#allocation13 + $0xb8] sm:$0xff]
    %v1273 = vld [vmem:[#allocation13 + $0xc0] sm:$0xff]
    %v1274 = vld [vmem:[#allocation13 + $0xc8] sm:$0xff]
    %v1275 = vld [vmem:[#allocation13 + $0xd0] sm:$0xff]
    %v1276 = vld [vmem:[#allocation13 + $0xd8] sm:$0xff]
    %v1277 = vld [vmem:[#allocation13 + $0xe0] sm:$0xff]
    %v1278 = vld [vmem:[#allocation13 + $0xe8] sm:$0xff]
    %v1279 = vld [vmem:[#allocation13 + $0xf0] sm:$0xff]
    %v1280 = vld [vmem:[#allocation13 + $0xf8] sm:$0xff]
    %v1313 = vunpack.c.l.b16 %v1249
    %v1314 = vunpack.c.h.b16 %v1249
    %v1315 = vunpack.c.l.b16 %v1250
    %v1316 = vunpack.c.h.b16 %v1250
    %v1317 = vunpack.c.l.b16 %v1251
    %v1318 = vunpack.c.h.b16 %v1251
    %v1319 = vunpack.c.l.b16 %v1252
    %v1320 = vunpack.c.h.b16 %v1252
    %v1321 = vunpack.c.l.b16 %v1253
    %v1322 = vunpack.c.h.b16 %v1253
    %v1323 = vunpack.c.l.b16 %v1254
    %v1324 = vunpack.c.h.b16 %v1254
    %v1325 = vunpack.c.l.b16 %v1255
    %v1326 = vunpack.c.h.b16 %v1255
    %v1327 = vunpack.c.l.b16 %v1256
    %v1328 = vunpack.c.h.b16 %v1256
    %v1329 = vunpack.c.l.b16 %v1257
    %v1330 = vunpack.c.h.b16 %v1257
    %v1331 = vunpack.c.l.b16 %v1258
    %v1332 = vunpack.c.h.b16 %v1258
    %v1333 = vunpack.c.l.b16 %v1259
    %v1334 = vunpack.c.h.b16 %v1259
    %v1335 = vunpack.c.l.b16 %v1260
    %v1336 = vunpack.c.h.b16 %v1260
    %v1337 = vunpack.c.l.b16 %v1261
    %v1338 = vunpack.c.h.b16 %v1261
    %v1339 = vunpack.c.l.b16 %v1262
    %v1340 = vunpack.c.h.b16 %v1262
    %v1341 = vunpack.c.l.b16 %v1263
    %v1342 = vunpack.c.h.b16 %v1263
    %v1343 = vunpack.c.l.b16 %v1264
    %v1344 = vunpack.c.h.b16 %v1264
    %v1345 = vunpack.c.l.b16 %v1265
    %v1346 = vunpack.c.h.b16 %v1265
    %v1347 = vunpack.c.l.b16 %v1266
    %v1348 = vunpack.c.h.b16 %v1266
    %v1349 = vunpack.c.l.b16 %v1267
    %v1350 = vunpack.c.h.b16 %v1267
    %v1351 = vunpack.c.l.b16 %v1268
    %v1352 = vunpack.c.h.b16 %v1268
    %v1353 = vunpack.c.l.b16 %v1269
    %v1354 = vunpack.c.h.b16 %v1269
    %v1355 = vunpack.c.l.b16 %v1270
    %v1356 = vunpack.c.h.b16 %v1270
    %v1357 = vunpack.c.l.b16 %v1271
    %v1358 = vunpack.c.h.b16 %v1271
    %v1359 = vunpack.c.l.b16 %v1272
    %v1360 = vunpack.c.h.b16 %v1272
    %v1361 = vunpack.c.l.b16 %v1273
    %v1362 = vunpack.c.h.b16 %v1273
    %v1363 = vunpack.c.l.b16 %v1274
    %v1364 = vunpack.c.h.b16 %v1274
    %v1365 = vunpack.c.l.b16 %v1275
    %v1366 = vunpack.c.h.b16 %v1275
    %v1367 = vunpack.c.l.b16 %v1276
    %v1368 = vunpack.c.h.b16 %v1276
    %v1369 = vunpack.c.l.b16 %v1277
    %v1370 = vunpack.c.h.b16 %v1277
    %v1371 = vunpack.c.l.b16 %v1278
    %v1372 = vunpack.c.h.b16 %v1278
    %v1373 = vunpack.c.l.b16 %v1279
    %v1374 = vunpack.c.h.b16 %v1279
    %v1375 = vunpack.c.l.b16 %v1280
    %v1376 = vunpack.c.h.b16 %v1280
    %v1377 = vpack.c.b16 %v1317, %v1313
    %v1378 = vpack.c.b16 %v1318, %v1314
    %v1379 = vpack.c.b16 %v1319, %v1315
    %v1380 = vpack.c.b16 %v1320, %v1316
    %v1381 = vpack.c.b16 %v1325, %v1321
    %v1382 = vpack.c.b16 %v1326, %v1322
    %v1383 = vpack.c.b16 %v1327, %v1323
    %v1384 = vpack.c.b16 %v1328, %v1324
    %v1385 = vpack.c.b16 %v1333, %v1329
    %v1386 = vpack.c.b16 %v1334, %v1330
    %v1387 = vpack.c.b16 %v1335, %v1331
    %v1388 = vpack.c.b16 %v1336, %v1332
    %v1389 = vpack.c.b16 %v1341, %v1337
    %v1390 = vpack.c.b16 %v1342, %v1338
    %v1391 = vpack.c.b16 %v1343, %v1339
    %v1392 = vpack.c.b16 %v1344, %v1340
    %v1393 = vpack.c.b16 %v1349, %v1345
    %v1394 = vpack.c.b16 %v1350, %v1346
    %v1395 = vpack.c.b16 %v1351, %v1347
    %v1396 = vpack.c.b16 %v1352, %v1348
    %v1397 = vpack.c.b16 %v1357, %v1353
    %v1398 = vpack.c.b16 %v1358, %v1354
    %v1399 = vpack.c.b16 %v1359, %v1355
    %v1400 = vpack.c.b16 %v1360, %v1356
    %v1401 = vpack.c.b16 %v1365, %v1361
    %v1402 = vpack.c.b16 %v1366, %v1362
    %v1403 = vpack.c.b16 %v1367, %v1363
    %v1404 = vpack.c.b16 %v1368, %v1364
    %v1405 = vpack.c.b16 %v1373, %v1369
    %v1406 = vpack.c.b16 %v1374, %v1370
    %v1407 = vpack.c.b16 %v1375, %v1371
    %v1408 = vpack.c.b16 %v1376, %v1372
    %1441 = vmatprep.subr.bf16.mxu0 %v1378
    %1442 = vmatpush1.bf16.msra.mxu0 %v1377
    %1443 = vmatprep.subr.bf16.mxu0 %v1382
    %1444 = vmatpush1.bf16.msra.mxu0 %v1381
    %1445 = vmatprep.subr.bf16.mxu0 %v1386
    %1446 = vmatpush1.bf16.msra.mxu0 %v1385
    %1447 = vmatprep.subr.bf16.mxu0 %v1390
    %1448 = vmatpush1.bf16.msra.mxu0 %v1389
    %1449 = vmatprep.subr.bf16.mxu0 %v1394
    %1450 = vmatpush1.bf16.msra.mxu0 %v1393
    %1451 = vmatprep.subr.bf16.mxu0 %v1398
    %1452 = vmatpush1.bf16.msra.mxu0 %v1397
    %1453 = vmatprep.subr.bf16.mxu0 %v1402
    %1454 = vmatpush1.bf16.msra.mxu0 %v1401
    %1455 = vmatprep.subr.bf16.mxu0 %v1406
    %1456 = vmatpush1.bf16.msra.mxu0 %v1405
    %1457 = vmatprep.subr.bf16.mxu0 0
    %1458 = vmatpush1.bf16.msra.mxu0 0
    %1459 = vmatprep.subr.bf16.mxu0 0
    %1460 = vmatpush1.bf16.msra.mxu0 0
    %1461 = vmatprep.subr.bf16.mxu0 0
    %1462 = vmatpush1.bf16.msra.mxu0 0
    %1463 = vmatprep.subr.bf16.mxu0 0
    %1464 = vmatpush1.bf16.msra.mxu0 0
    %1465 = vmatprep.subr.bf16.mxu0 0
    %1466 = vmatpush1.bf16.msra.mxu0 0
    %1467 = vmatprep.subr.bf16.mxu0 0
    %1468 = vmatpush1.bf16.msra.mxu0 0
    %1469 = vmatprep.subr.bf16.mxu0 0
    %1470 = vmatpush1.bf16.msra.mxu0 0
    %1471 = vmatprep.subr.bf16.mxu0 0
    %1472 = vmatpush1.bf16.msra.mxu0 0
    %1473 = vmatprep.mubr.bf16.mxu0 0
    %1474 = vmatmul.mubr.bf16.gmra.mrb[0].mxu0 %v1248
    %v1475 = vpop.f32.mrb[0].mxu0
    %v1476 = vadd.f32 0.0, %v1475
    %v1477 = vpop.f32.mrb[0].mxu0
    %v1478 = vadd.f32 0.0, %v1477
    %v1479 = vpop.f32.mrb[0].mxu0
    %v1480 = vpop.f32.mrb[0].mxu0
    %1481 = vdwg.mxu0
    %1482 = vmatprep.subr.bf16.mxu0 %v1380
    %1483 = vmatpush1.bf16.msra.mxu0 %v1379
    %1484 = vmatprep.subr.bf16.mxu0 %v1384
    %1485 = vmatpush1.bf16.msra.mxu0 %v1383
    %1486 = vmatprep.subr.bf16.mxu0 %v1388
    %1487 = vmatpush1.bf16.msra.mxu0 %v1387
    %1488 = vmatprep.subr.bf16.mxu0 %v1392
    %1489 = vmatpush1.bf16.msra.mxu0 %v1391
    %1490 = vmatprep.subr.bf16.mxu0 %v1396
    %1491 = vmatpush1.bf16.msra.mxu0 %v1395
    %1492 = vmatprep.subr.bf16.mxu0 %v1400
    %1493 = vmatpush1.bf16.msra.mxu0 %v1399
    %1494 = vmatprep.subr.bf16.mxu0 %v1404
    %1495 = vmatpush1.bf16.msra.mxu0 %v1403
    %1496 = vmatprep.subr.bf16.mxu0 %v1408
    %1497 = vmatpush1.bf16.msra.mxu0 %v1407
    %1498 = vmatprep.subr.bf16.mxu0 0
    %1499 = vmatpush1.bf16.msra.mxu0 0
    %1500 = vmatprep.subr.bf16.mxu0 0
    %1501 = vmatpush1.bf16.msra.mxu0 0
    %1502 = vmatprep.subr.bf16.mxu0 0
    %1503 = vmatpush1.bf16.msra.mxu0 0
    %1504 = vmatprep.subr.bf16.mxu0 0
    %1505 = vmatpush1.bf16.msra.mxu0 0
    %1506 = vmatprep.subr.bf16.mxu0 0
    %1507 = vmatpush1.bf16.msra.mxu0 0
    %1508 = vmatprep.subr.bf16.mxu0 0
    %1509 = vmatpush1.bf16.msra.mxu0 0
    %1510 = vmatprep.subr.bf16.mxu0 0
    %1511 = vmatpush1.bf16.msra.mxu0 0
    %1512 = vmatprep.subr.bf16.mxu0 0
    %1513 = vmatpush1.bf16.msra.mxu0 0
    %1514 = vmatprep.mubr.bf16.mxu0 0
    %1515 = vmatmul.mubr.bf16.gmra.mrb[0].mxu0 %v1248
    %v1516 = vpop.f32.mrb[0].mxu0
    %v1517 = vadd.f32 0.0, %v1516
    %v1518 = vpop.f32.mrb[0].mxu0
    %v1519 = vadd.f32 0.0, %v1518
    %v1520 = vpop.f32.mrb[0].mxu0
    %v1521 = vpop.f32.mrb[0].mxu0
    %1522 = vdwg.mxu0
    %v1523 = vadd.f32 %v1244, %v1476
    %v1524 = vadd.f32 %v1245, %v1478
    %v1525 = vadd.f32 %v1246, %v1517
    %v1526 = vadd.f32 %v1247, %v1519
    %v1527 = vxor.u32 %v1523, 2147483648
    %v1528 = vmul.f32 %v1527, 1.442695
    %v1529 = vpow.pop %v1528
    %v1530 = vadd.f32 %v1529, 1.0
    %v1531 = vrcp.pop %v1530
    %v1532 = vmul.f32 1.0, %v1531
    %v1533 = vxor.u32 %v1524, 2147483648
    %v1534 = vmul.f32 %v1533, 1.442695
    %v1535 = vpow.pop %v1534
    %v1536 = vadd.f32 %v1535, 1.0
    %v1537 = vrcp.pop %v1536
    %v1538 = vmul.f32 1.0, %v1537
    %v1539 = vtanh.pop %v1525
    %v1540 = vxor.u32 %v1526, 2147483648
    %v1541 = vmul.f32 %v1540, 1.442695
    %v1542 = vpow.pop %v1541
    %v1543 = vadd.f32 %v1542, 1.0
    %v1544 = vrcp.pop %v1543
    %v1545 = vmul.f32 1.0, %v1544
    %v1546 = vmul.f32 %v1538, %v112
    %v1547 = vmul.f32 %v1532, %v1539
    %v1548 = vadd.f32 %v1546, %v1547
    %v1549 = vtanh.pop %v1548
    %v1550 = vmul.f32 %v1545, %v1549
    %1551 = vst [vmem:[#allocation2] sm:$0xff] %v1550
    %1552 = vst [vmem:[#allocation3] sm:$0xff] %v1548
    %v1553 = vpack.c.bf16 %v1550, %v1550
    %1554 = vst [vmem:[#allocation15] sm:$0xf] %v1553
    %v1555 = vld [vmem:[#allocation2] sm:$0xff]
    %v1556 = vld [vmem:[#allocation3] sm:$0xff]
    %v1557 = vld [vmem:[#allocation7] sm:$0xf]
    %v1558 = vld [vmem:[#allocation7 + $0x4] sm:$0xf]
    %v1559 = vld [vmem:[#allocation7 + $0x8] sm:$0xf]
    %v1560 = vld [vmem:[#allocation7 + $0xc] sm:$0xf]
    %v1561 = vld [vmem:[#allocation7 + $0x10] sm:$0xf]
    %v1562 = vld [vmem:[#allocation7 + $0x14] sm:$0xf]
    %v1563 = vld [vmem:[#allocation7 + $0x18] sm:$0xf]
    %v1564 = vld [vmem:[#allocation7 + $0x1c] sm:$0xf]
    %v1565 = vunpack.c.l.bf16 %v1557
    %v1566 = vunpack.c.l.bf16 %v1558
    %v1567 = vunpack.c.l.bf16 %v1559
    %v1568 = vunpack.c.l.bf16 %v1560
    %v1569 = vunpack.c.l.bf16 %v1561
    %v1570 = vunpack.c.l.bf16 %v1562
    %v1571 = vunpack.c.l.bf16 %v1563
    %v1572 = vunpack.c.l.bf16 %v1564
    %v1574 = vcombine.high %v1555, %v1555
    %v1576 = vunpack.c.l.s4 1966171168
    %v1577 = vunpack.c.0.s8 %v1576
    %v1578 = vlaneseq
    %v1579 = vshrl.u32 %v1578, 7
    %v1580 = vsub.s32 %v1577, %v1579
    %v1581 = vrot.slane %v1555, %v1580
    %v1583 = vunpack.c.l.s4 1966171168
    %v1584 = vunpack.c.0.s8 %v1583
    %v1585 = vlaneseq
    %v1586 = vshrl.u32 %v1585, 7
    %v1587 = vsub.s32 %v1584, %v1586
    %v1588 = vrot.slane %v1574, %v1587
    %v1589 = vcombine.high %v1581, %v1581
    %v1590 = vcombine.high %v1588, %v1588
    %v1592 = vunpack.c.l.s4 1966171168
    %v1593 = vunpack.c.0.s8 %v1592
    %v1594 = vlaneseq
    %v1595 = vshrl.u32 %v1594, 7
    %v1596 = vsub.s32 %v1593, %v1595
    %v1597 = vrot.slane %v1581, %v1596
    %v1599 = vunpack.c.l.s4 1966171168
    %v1600 = vunpack.c.0.s8 %v1599
    %v1601 = vlaneseq
    %v1602 = vshrl.u32 %v1601, 7
    %v1603 = vsub.s32 %v1600, %v1602
    %v1604 = vrot.slane %v1588, %v1603
    %v1606 = vunpack.c.l.s4 1966171168
    %v1607 = vunpack.c.0.s8 %v1606
    %v1608 = vlaneseq
    %v1609 = vshrl.u32 %v1608, 7
    %v1610 = vsub.s32 %v1607, %v1609
    %v1611 = vrot.slane %v1589, %v1610
    %v1613 = vunpack.c.l.s4 1966171168
    %v1614 = vunpack.c.0.s8 %v1613
    %v1615 = vlaneseq
    %v1616 = vshrl.u32 %v1615, 7
    %v1617 = vsub.s32 %v1614, %v1616
    %v1618 = vrot.slane %v1590, %v1617
    %v1619 = vcombine.high %v1597, %v1597
    %v1620 = vcombine.high %v1604, %v1604
    %v1621 = vcombine.high %v1611, %v1611
    %v1622 = vcombine.high %v1618, %v1618
    %v1623 = vlaneseq
    %v1624 = vshrl.u32 %v1623, 7
    %v1625 = vsub.s32 0, %v1624
    %v1626 = vrot.slane %v1597, %v1625
    %v1627 = vlaneseq
    %v1628 = vshrl.u32 %v1627, 7
    %v1629 = vsub.s32 0, %v1628
    %v1630 = vrot.slane %v1611, %v1629
    %v1631 = vlaneseq
    %v1632 = vshrl.u32 %v1631, 7
    %v1633 = vsub.s32 0, %v1632
    %v1634 = vrot.slane %v1619, %v1633
    %v1635 = vlaneseq
    %v1636 = vshrl.u32 %v1635, 7
    %v1637 = vsub.s32 0, %v1636
    %v1638 = vrot.slane %v1621, %v1637
    %v1639 = vlaneseq
    %v1640 = vshrl.u32 %v1639, 7
    %v1641 = vsub.s32 0, %v1640
    %v1642 = vrot.slane %v1604, %v1641
    %v1643 = vlaneseq
    %v1644 = vshrl.u32 %v1643, 7
    %v1645 = vsub.s32 0, %v1644
    %v1646 = vrot.slane %v1618, %v1645
    %v1647 = vlaneseq
    %v1648 = vshrl.u32 %v1647, 7
    %v1649 = vsub.s32 0, %v1648
    %v1650 = vrot.slane %v1620, %v1649
    %v1651 = vlaneseq
    %v1652 = vshrl.u32 %v1651, 7
    %v1653 = vsub.s32 0, %v1652
    %v1654 = vrot.slane %v1622, %v1653
    %v1663 = vmul.f32 %v1565, %v1626
    %v1664 = vmul.f32 %v1566, %v1630
    %v1665 = vmul.f32 %v1567, %v1634
    %v1666 = vmul.f32 %v1568, %v1638
    %v1667 = vmul.f32 %v1569, %v1642
    %v1668 = vmul.f32 %v1570, %v1646
    %v1669 = vmul.f32 %v1571, %v1650
    %v1670 = vmul.f32 %v1572, %v1654
    %1671 = vadd.xlane.f32.xlu0 %v1663
    %v1672 = vpop.xlane.xlu0 %1671
    %1673 = vadd.xlane.f32.xlu0 %v1664
    %v1674 = vpop.xlane.xlu0 %1673
    %1675 = vadd.xlane.f32.xlu0 %v1665
    %v1676 = vpop.xlane.xlu0 %1675
    %1677 = vadd.xlane.f32.xlu0 %v1666
    %v1678 = vpop.xlane.xlu0 %1677
    %1679 = vadd.xlane.f32.xlu0 %v1667
    %v1680 = vpop.xlane.xlu0 %1679
    %1681 = vadd.xlane.f32.xlu0 %v1668
    %v1682 = vpop.xlane.xlu0 %1681
    %1683 = vadd.xlane.f32.xlu0 %v1669
    %v1684 = vpop.xlane.xlu0 %1683
    %1685 = vadd.xlane.f32.xlu0 %v1670
    %v1686 = vpop.xlane.xlu0 %1685
    %v1695 = vlaneseq
    %v1696 = vshrl.u32 %v1695, 7
    %v1697 = vsub.s32 %v252, %v1696
    %v1698 = vrot.slane %v1672, %v1697
    %v1699 = vlaneseq
    %v1700 = vshrl.u32 %v1699, 7
    %v1701 = vsub.s32 %v252, %v1700
    %v1702 = vrot.slane %v1674, %v1701
    %v1703 = vlaneseq
    %v1704 = vshrl.u32 %v1703, 7
    %v1705 = vsub.s32 %v252, %v1704
    %v1706 = vrot.slane %v1676, %v1705
    %v1707 = vlaneseq
    %v1708 = vshrl.u32 %v1707, 7
    %v1709 = vsub.s32 %v252, %v1708
    %v1710 = vrot.slane %v1678, %v1709
    %v1711 = vlaneseq
    %v1712 = vshrl.u32 %v1711, 7
    %v1713 = vsub.s32 %v252, %v1712
    %v1714 = vrot.slane %v1680, %v1713
    %v1715 = vlaneseq
    %v1716 = vshrl.u32 %v1715, 7
    %v1717 = vsub.s32 %v252, %v1716
    %v1718 = vrot.slane %v1682, %v1717
    %v1719 = vlaneseq
    %v1720 = vshrl.u32 %v1719, 7
    %v1721 = vsub.s32 %v252, %v1720
    %v1722 = vrot.slane %v1684, %v1721
    %v1723 = vlaneseq
    %v1724 = vshrl.u32 %v1723, 7
    %v1725 = vsub.s32 %v252, %v1724
    %v1726 = vrot.slane %v1686, %v1725
    %v1727 = vsel %vm285, %v1702, %v1698
    %v1728 = vsel %vm287, %v1706, %v1727
    %v1729 = vsel %vm289, %v1710, %v1728
    %v1730 = vsel %vm291, %v1714, %v1729
    %v1731 = vsel %vm293, %v1718, %v1730
    %v1732 = vsel %vm295, %v1722, %v1731
    %v1733 = vsel %vm297, %v1726, %v1732
    %v1735 = vsel %vm300, %v1733, -inf
    %1736 = vmax.xlane.f32.xlu0 %v1735
    %v1737 = vpop.xlane.xlu0 %1736
    %v1739 = vlaneseq
    %v1740 = vshrl.u32 %v1739, 7
    %v1741 = vsub.s32 0, %v1740
    %v1742 = vrot.slane %v1737, %v1741
    %v1743 = vlaneseq
    %v1744 = vshrl.u32 %v1743, 7
    %v1745 = vsub.s32 1, %v1744
    %v1746 = vrot.slane %v1737, %v1745
    %v1747 = vlaneseq
    %v1748 = vshrl.u32 %v1747, 7
    %v1749 = vsub.s32 2, %v1748
    %v1750 = vrot.slane %v1737, %v1749
    %v1751 = vlaneseq
    %v1752 = vshrl.u32 %v1751, 7
    %v1753 = vsub.s32 3, %v1752
    %v1754 = vrot.slane %v1737, %v1753
    %v1755 = vlaneseq
    %v1756 = vshrl.u32 %v1755, 7
    %v1757 = vsub.s32 4, %v1756
    %v1758 = vrot.slane %v1737, %v1757
    %v1759 = vlaneseq
    %v1760 = vshrl.u32 %v1759, 7
    %v1761 = vsub.s32 5, %v1760
    %v1762 = vrot.slane %v1737, %v1761
    %v1763 = vlaneseq
    %v1764 = vshrl.u32 %v1763, 7
    %v1765 = vsub.s32 6, %v1764
    %v1766 = vrot.slane %v1737, %v1765
    %v1767 = vlaneseq
    %v1768 = vshrl.u32 %v1767, 7
    %v1769 = vsub.s32 7, %v1768
    %v1770 = vrot.slane %v1737, %v1769
    %v1779 = vsub.f32 %v1672, %v1742
    %v1780 = vsub.f32 %v1674, %v1746
    %v1781 = vsub.f32 %v1676, %v1750
    %v1782 = vsub.f32 %v1678, %v1754
    %v1783 = vsub.f32 %v1680, %v1758
    %v1784 = vsub.f32 %v1682, %v1762
    %v1785 = vsub.f32 %v1684, %v1766
    %v1786 = vsub.f32 %v1686, %v1770
    %v1787 = vmul.f32 %v1779, 1.442695
    %v1788 = vpow.pop %v1787
    %v1789 = vmul.f32 %v1780, 1.442695
    %v1790 = vpow.pop %v1789
    %v1791 = vmul.f32 %v1781, 1.442695
    %v1792 = vpow.pop %v1791
    %v1793 = vmul.f32 %v1782, 1.442695
    %v1794 = vpow.pop %v1793
    %v1795 = vmul.f32 %v1783, 1.442695
    %v1796 = vpow.pop %v1795
    %v1797 = vmul.f32 %v1784, 1.442695
    %v1798 = vpow.pop %v1797
    %v1799 = vmul.f32 %v1785, 1.442695
    %v1800 = vpow.pop %v1799
    %v1801 = vmul.f32 %v1786, 1.442695
    %v1802 = vpow.pop %v1801
    %1811 = vset.pattern.permute.xlu0 0
    %1812 = vperm.xlu0 %1811, %v1788
    %v1813 = vpop.permute.xlu0 %1812
    %1814 = vset.pattern.permute.xlu0 0
    %1815 = vperm.xlu0 %1814, %v1790
    %v1816 = vpop.permute.xlu0 %1815
    %1817 = vset.pattern.permute.xlu0 0
    %1818 = vperm.xlu0 %1817, %v1792
    %v1819 = vpop.permute.xlu0 %1818
    %1820 = vset.pattern.permute.xlu0 0
    %1821 = vperm.xlu0 %1820, %v1794
    %v1822 = vpop.permute.xlu0 %1821
    %1823 = vset.pattern.permute.xlu0 0
    %1824 = vperm.xlu0 %1823, %v1796
    %v1825 = vpop.permute.xlu0 %1824
    %1826 = vset.pattern.permute.xlu0 0
    %1827 = vperm.xlu0 %1826, %v1798
    %v1828 = vpop.permute.xlu0 %1827
    %1829 = vset.pattern.permute.xlu0 0
    %1830 = vperm.xlu0 %1829, %v1800
    %v1831 = vpop.permute.xlu0 %1830
    %1832 = vset.pattern.permute.xlu0 0
    %1833 = vperm.xlu0 %1832, %v1802
    %v1834 = vpop.permute.xlu0 %1833
    %v1835 = vlaneseq
    %v1836 = vshrl.u32 %v1835, 7
    %v1837 = vsub.s32 %v252, %v1836
    %v1838 = vrot.slane %v1813, %v1837
    %v1839 = vlaneseq
    %v1840 = vshrl.u32 %v1839, 7
    %v1841 = vsub.s32 %v252, %v1840
    %v1842 = vrot.slane %v1816, %v1841
    %v1843 = vlaneseq
    %v1844 = vshrl.u32 %v1843, 7
    %v1845 = vsub.s32 %v252, %v1844
    %v1846 = vrot.slane %v1819, %v1845
    %v1847 = vlaneseq
    %v1848 = vshrl.u32 %v1847, 7
    %v1849 = vsub.s32 %v252, %v1848
    %v1850 = vrot.slane %v1822, %v1849
    %v1851 = vlaneseq
    %v1852 = vshrl.u32 %v1851, 7
    %v1853 = vsub.s32 %v252, %v1852
    %v1854 = vrot.slane %v1825, %v1853
    %v1855 = vlaneseq
    %v1856 = vshrl.u32 %v1855, 7
    %v1857 = vsub.s32 %v252, %v1856
    %v1858 = vrot.slane %v1828, %v1857
    %v1859 = vlaneseq
    %v1860 = vshrl.u32 %v1859, 7
    %v1861 = vsub.s32 %v252, %v1860
    %v1862 = vrot.slane %v1831, %v1861
    %v1863 = vlaneseq
    %v1864 = vshrl.u32 %v1863, 7
    %v1865 = vsub.s32 %v252, %v1864
    %v1866 = vrot.slane %v1834, %v1865
    %v1867 = vsel %vm285, %v1842, %v1838
    %v1868 = vsel %vm287, %v1846, %v1867
    %v1869 = vsel %vm289, %v1850, %v1868
    %v1870 = vsel %vm291, %v1854, %v1869
    %v1871 = vsel %vm293, %v1858, %v1870
    %v1872 = vsel %vm295, %v1862, %v1871
    %v1873 = vsel %vm297, %v1866, %v1872
    %v1875 = vsel %vm300, %v1873, 0.0
    %1876 = vadd.xlane.f32.xlu0 %v1875
    %v1877 = vpop.xlane.xlu0 %1876
    %v1878 = vrcp.pop %v1877
    %v1879 = vpack.c.bf16 %v1788, %v1788
    %v1880 = vpack.c.bf16 %v1790, %v1790
    %v1881 = vpack.c.bf16 %v1792, %v1792
    %v1882 = vpack.c.bf16 %v1794, %v1794
    %v1883 = vpack.c.bf16 %v1796, %v1796
    %v1884 = vpack.c.bf16 %v1798, %v1798
    %v1885 = vpack.c.bf16 %v1800, %v1800
    %v1886 = vpack.c.bf16 %v1802, %v1802
    %v1888 = vunpack.c.l.b16 %v1879
    %1889 = vset.pattern.permute.xlu0 0
    %1890 = vperm.xlu0 %1889, %v1888
    %v1891 = vpop.permute.xlu0 %1890
    %v1892 = vlaneseq
    %v1893 = vshrl.u32 %v1892, 7
    %v1894 = vsub.s32 %v252, %v1893
    %v1895 = vrot.slane %v1891, %v1894
    %v1896 = vpack.c.b16 %v1895, %v1895
    %v1898 = vsel %vm300, %v1896, 0
    %v1901 = vsel %vm466, %v1557, 0
    %1903 = vmatprep.subr.bf16.mxu0 0
    %1904 = vmatpush1.bf16.msra.mxu0 %v1901
    %1905 = vmatprep.subr.bf16.mxu0 0
    %1906 = vmatpush1.bf16.msra.mxu0 0
    %1907 = vmatprep.subr.bf16.mxu0 0
    %1908 = vmatpush1.bf16.msra.mxu0 0
    %1909 = vmatprep.subr.bf16.mxu0 0
    %1910 = vmatpush1.bf16.msra.mxu0 0
    %1911 = vmatprep.subr.bf16.mxu0 0
    %1912 = vmatpush1.bf16.msra.mxu0 0
    %1913 = vmatprep.subr.bf16.mxu0 0
    %1914 = vmatpush1.bf16.msra.mxu0 0
    %1915 = vmatprep.subr.bf16.mxu0 0
    %1916 = vmatpush1.bf16.msra.mxu0 0
    %1917 = vmatprep.subr.bf16.mxu0 0
    %1918 = vmatpush1.bf16.msra.mxu0 0
    %1919 = vmatprep.subr.bf16.mxu0 0
    %1920 = vmatpush1.bf16.msra.mxu0 0
    %1921 = vmatprep.subr.bf16.mxu0 0
    %1922 = vmatpush1.bf16.msra.mxu0 0
    %1923 = vmatprep.subr.bf16.mxu0 0
    %1924 = vmatpush1.bf16.msra.mxu0 0
    %1925 = vmatprep.subr.bf16.mxu0 0
    %1926 = vmatpush1.bf16.msra.mxu0 0
    %1927 = vmatprep.subr.bf16.mxu0 0
    %1928 = vmatpush1.bf16.msra.mxu0 0
    %1929 = vmatprep.subr.bf16.mxu0 0
    %1930 = vmatpush1.bf16.msra.mxu0 0
    %1931 = vmatprep.subr.bf16.mxu0 0
    %1932 = vmatpush1.bf16.msra.mxu0 0
    %1933 = vmatprep.subr.bf16.mxu0 0
    %1934 = vmatpush1.bf16.msra.mxu0 0
    %1935 = vmatprep.mubr.bf16.mxu0 0
    %1936 = vmatmul.mubr.bf16.gmra.mrb[0].mxu0 %v1898
    %v1937 = vpop.f32.mrb[0].mxu0
    %v1938 = vadd.f32 0.0, %v1937
    %v1939 = vpop.f32.mrb[0].mxu0
    %v1940 = vpop.f32.mrb[0].mxu0
    %v1941 = vpop.f32.mrb[0].mxu0
    %1942 = vdwg.mxu0
    %v1944 = vunpack.c.l.b16 %v1880
    %1945 = vset.pattern.permute.xlu0 0
    %1946 = vperm.xlu0 %1945, %v1944
    %v1947 = vpop.permute.xlu0 %1946
    %v1948 = vlaneseq
    %v1949 = vshrl.u32 %v1948, 7
    %v1950 = vsub.s32 %v252, %v1949
    %v1951 = vrot.slane %v1947, %v1950
    %v1952 = vpack.c.b16 %v1951, %v1951
    %v1954 = vsel %vm300, %v1952, 0
    %v1957 = vsel %vm466, %v1558, 0
    %1959 = vmatprep.subr.bf16.mxu0 0
    %1960 = vmatpush1.bf16.msra.mxu0 %v1957
    %1961 = vmatprep.subr.bf16.mxu0 0
    %1962 = vmatpush1.bf16.msra.mxu0 0
    %1963 = vmatprep.subr.bf16.mxu0 0
    %1964 = vmatpush1.bf16.msra.mxu0 0
    %1965 = vmatprep.subr.bf16.mxu0 0
    %1966 = vmatpush1.bf16.msra.mxu0 0
    %1967 = vmatprep.subr.bf16.mxu0 0
    %1968 = vmatpush1.bf16.msra.mxu0 0
    %1969 = vmatprep.subr.bf16.mxu0 0
    %1970 = vmatpush1.bf16.msra.mxu0 0
    %1971 = vmatprep.subr.bf16.mxu0 0
    %1972 = vmatpush1.bf16.msra.mxu0 0
    %1973 = vmatprep.subr.bf16.mxu0 0
    %1974 = vmatpush1.bf16.msra.mxu0 0
    %1975 = vmatprep.subr.bf16.mxu0 0
    %1976 = vmatpush1.bf16.msra.mxu0 0
    %1977 = vmatprep.subr.bf16.mxu0 0
    %1978 = vmatpush1.bf16.msra.mxu0 0
    %1979 = vmatprep.subr.bf16.mxu0 0
    %1980 = vmatpush1.bf16.msra.mxu0 0
    %1981 = vmatprep.subr.bf16.mxu0 0
    %1982 = vmatpush1.bf16.msra.mxu0 0
    %1983 = vmatprep.subr.bf16.mxu0 0
    %1984 = vmatpush1.bf16.msra.mxu0 0
    %1985 = vmatprep.subr.bf16.mxu0 0
    %1986 = vmatpush1.bf16.msra.mxu0 0
    %1987 = vmatprep.subr.bf16.mxu0 0
    %1988 = vmatpush1.bf16.msra.mxu0 0
    %1989 = vmatprep.subr.bf16.mxu0 0
    %1990 = vmatpush1.bf16.msra.mxu0 0
    %1991 = vmatprep.mubr.bf16.mxu0 0
    %1992 = vmatmul.mubr.bf16.gmra.mrb[0].mxu0 %v1954
    %v1993 = vpop.f32.mrb[0].mxu0
    %v1994 = vadd.f32 0.0, %v1993
    %v1995 = vpop.f32.mrb[0].mxu0
    %v1996 = vpop.f32.mrb[0].mxu0
    %v1997 = vpop.f32.mrb[0].mxu0
    %1998 = vdwg.mxu0
    %v2000 = vunpack.c.l.b16 %v1881
    %2001 = vset.pattern.permute.xlu0 0
    %2002 = vperm.xlu0 %2001, %v2000
    %v2003 = vpop.permute.xlu0 %2002
    %v2004 = vlaneseq
    %v2005 = vshrl.u32 %v2004, 7
    %v2006 = vsub.s32 %v252, %v2005
    %v2007 = vrot.slane %v2003, %v2006
    %v2008 = vpack.c.b16 %v2007, %v2007
    %v2010 = vsel %vm300, %v2008, 0
    %v2013 = vsel %vm466, %v1559, 0
    %2015 = vmatprep.subr.bf16.mxu0 0
    %2016 = vmatpush1.bf16.msra.mxu0 %v2013
    %2017 = vmatprep.subr.bf16.mxu0 0
    %2018 = vmatpush1.bf16.msra.mxu0 0
    %2019 = vmatprep.subr.bf16.mxu0 0
    %2020 = vmatpush1.bf16.msra.mxu0 0
    %2021 = vmatprep.subr.bf16.mxu0 0
    %2022 = vmatpush1.bf16.msra.mxu0 0
    %2023 = vmatprep.subr.bf16.mxu0 0
    %2024 = vmatpush1.bf16.msra.mxu0 0
    %2025 = vmatprep.subr.bf16.mxu0 0
    %2026 = vmatpush1.bf16.msra.mxu0 0
    %2027 = vmatprep.subr.bf16.mxu0 0
    %2028 = vmatpush1.bf16.msra.mxu0 0
    %2029 = vmatprep.subr.bf16.mxu0 0
    %2030 = vmatpush1.bf16.msra.mxu0 0
    %2031 = vmatprep.subr.bf16.mxu0 0
    %2032 = vmatpush1.bf16.msra.mxu0 0
    %2033 = vmatprep.subr.bf16.mxu0 0
    %2034 = vmatpush1.bf16.msra.mxu0 0
    %2035 = vmatprep.subr.bf16.mxu0 0
    %2036 = vmatpush1.bf16.msra.mxu0 0
    %2037 = vmatprep.subr.bf16.mxu0 0
    %2038 = vmatpush1.bf16.msra.mxu0 0
    %2039 = vmatprep.subr.bf16.mxu0 0
    %2040 = vmatpush1.bf16.msra.mxu0 0
    %2041 = vmatprep.subr.bf16.mxu0 0
    %2042 = vmatpush1.bf16.msra.mxu0 0
    %2043 = vmatprep.subr.bf16.mxu0 0
    %2044 = vmatpush1.bf16.msra.mxu0 0
    %2045 = vmatprep.subr.bf16.mxu0 0
    %2046 = vmatpush1.bf16.msra.mxu0 0
    %2047 = vmatprep.mubr.bf16.mxu0 0
    %2048 = vmatmul.mubr.bf16.gmra.mrb[0].mxu0 %v2010
    %v2049 = vpop.f32.mrb[0].mxu0
    %v2050 = vadd.f32 0.0, %v2049
    %v2051 = vpop.f32.mrb[0].mxu0
    %v2052 = vpop.f32.mrb[0].mxu0
    %v2053 = vpop.f32.mrb[0].mxu0
    %2054 = vdwg.mxu0
    %v2056 = vunpack.c.l.b16 %v1882
    %2057 = vset.pattern.permute.xlu0 0
    %2058 = vperm.xlu0 %2057, %v2056
    %v2059 = vpop.permute.xlu0 %2058
    %v2060 = vlaneseq
    %v2061 = vshrl.u32 %v2060, 7
    %v2062 = vsub.s32 %v252, %v2061
    %v2063 = vrot.slane %v2059, %v2062
    %v2064 = vpack.c.b16 %v2063, %v2063
    %v2066 = vsel %vm300, %v2064, 0
    %v2069 = vsel %vm466, %v1560, 0
    %2071 = vmatprep.subr.bf16.mxu0 0
    %2072 = vmatpush1.bf16.msra.mxu0 %v2069
    %2073 = vmatprep.subr.bf16.mxu0 0
    %2074 = vmatpush1.bf16.msra.mxu0 0
    %2075 = vmatprep.subr.bf16.mxu0 0
    %2076 = vmatpush1.bf16.msra.mxu0 0
    %2077 = vmatprep.subr.bf16.mxu0 0
    %2078 = vmatpush1.bf16.msra.mxu0 0
    %2079 = vmatprep.subr.bf16.mxu0 0
    %2080 = vmatpush1.bf16.msra.mxu0 0
    %2081 = vmatprep.subr.bf16.mxu0 0
    %2082 = vmatpush1.bf16.msra.mxu0 0
    %2083 = vmatprep.subr.bf16.mxu0 0
    %2084 = vmatpush1.bf16.msra.mxu0 0
    %2085 = vmatprep.subr.bf16.mxu0 0
    %2086 = vmatpush1.bf16.msra.mxu0 0
    %2087 = vmatprep.subr.bf16.mxu0 0
    %2088 = vmatpush1.bf16.msra.mxu0 0
    %2089 = vmatprep.subr.bf16.mxu0 0
    %2090 = vmatpush1.bf16.msra.mxu0 0
    %2091 = vmatprep.subr.bf16.mxu0 0
    %2092 = vmatpush1.bf16.msra.mxu0 0
    %2093 = vmatprep.subr.bf16.mxu0 0
    %2094 = vmatpush1.bf16.msra.mxu0 0
    %2095 = vmatprep.subr.bf16.mxu0 0
    %2096 = vmatpush1.bf16.msra.mxu0 0
    %2097 = vmatprep.subr.bf16.mxu0 0
    %2098 = vmatpush1.bf16.msra.mxu0 0
    %2099 = vmatprep.subr.bf16.mxu0 0
    %2100 = vmatpush1.bf16.msra.mxu0 0
    %2101 = vmatprep.subr.bf16.mxu0 0
    %2102 = vmatpush1.bf16.msra.mxu0 0
    %2103 = vmatprep.mubr.bf16.mxu0 0
    %2104 = vmatmul.mubr.bf16.gmra.mrb[0].mxu0 %v2066
    %v2105 = vpop.f32.mrb[0].mxu0
    %v2106 = vadd.f32 0.0, %v2105
    %v2107 = vpop.f32.mrb[0].mxu0
    %v2108 = vpop.f32.mrb[0].mxu0
    %v2109 = vpop.f32.mrb[0].mxu0
    %2110 = vdwg.mxu0
    %v2112 = vunpack.c.l.b16 %v1883
    %2113 = vset.pattern.permute.xlu0 0
    %2114 = vperm.xlu0 %2113, %v2112
    %v2115 = vpop.permute.xlu0 %2114
    %v2116 = vlaneseq
    %v2117 = vshrl.u32 %v2116, 7
    %v2118 = vsub.s32 %v252, %v2117
    %v2119 = vrot.slane %v2115, %v2118
    %v2120 = vpack.c.b16 %v2119, %v2119
    %v2122 = vsel %vm300, %v2120, 0
    %v2125 = vsel %vm466, %v1561, 0
    %2127 = vmatprep.subr.bf16.mxu0 0
    %2128 = vmatpush1.bf16.msra.mxu0 %v2125
    %2129 = vmatprep.subr.bf16.mxu0 0
    %2130 = vmatpush1.bf16.msra.mxu0 0
    %2131 = vmatprep.subr.bf16.mxu0 0
    %2132 = vmatpush1.bf16.msra.mxu0 0
    %2133 = vmatprep.subr.bf16.mxu0 0
    %2134 = vmatpush1.bf16.msra.mxu0 0
    %2135 = vmatprep.subr.bf16.mxu0 0
    %2136 = vmatpush1.bf16.msra.mxu0 0
    %2137 = vmatprep.subr.bf16.mxu0 0
    %2138 = vmatpush1.bf16.msra.mxu0 0
    %2139 = vmatprep.subr.bf16.mxu0 0
    %2140 = vmatpush1.bf16.msra.mxu0 0
    %2141 = vmatprep.subr.bf16.mxu0 0
    %2142 = vmatpush1.bf16.msra.mxu0 0
    %2143 = vmatprep.subr.bf16.mxu0 0
    %2144 = vmatpush1.bf16.msra.mxu0 0
    %2145 = vmatprep.subr.bf16.mxu0 0
    %2146 = vmatpush1.bf16.msra.mxu0 0
    %2147 = vmatprep.subr.bf16.mxu0 0
    %2148 = vmatpush1.bf16.msra.mxu0 0
    %2149 = vmatprep.subr.bf16.mxu0 0
    %2150 = vmatpush1.bf16.msra.mxu0 0
    %2151 = vmatprep.subr.bf16.mxu0 0
    %2152 = vmatpush1.bf16.msra.mxu0 0
    %2153 = vmatprep.subr.bf16.mxu0 0
    %2154 = vmatpush1.bf16.msra.mxu0 0
    %2155 = vmatprep.subr.bf16.mxu0 0
    %2156 = vmatpush1.bf16.msra.mxu0 0
    %2157 = vmatprep.subr.bf16.mxu0 0
    %2158 = vmatpush1.bf16.msra.mxu0 0
    %2159 = vmatprep.mubr.bf16.mxu0 0
    %2160 = vmatmul.mubr.bf16.gmra.mrb[0].mxu0 %v2122
    %v2161 = vpop.f32.mrb[0].mxu0
    %v2162 = vadd.f32 0.0, %v2161
    %v2163 = vpop.f32.mrb[0].mxu0
    %v2164 = vpop.f32.mrb[0].mxu0
    %v2165 = vpop.f32.mrb[0].mxu0
    %2166 = vdwg.mxu0
    %v2168 = vunpack.c.l.b16 %v1884
    %2169 = vset.pattern.permute.xlu0 0
    %2170 = vperm.xlu0 %2169, %v2168
    %v2171 = vpop.permute.xlu0 %2170
    %v2172 = vlaneseq
    %v2173 = vshrl.u32 %v2172, 7
    %v2174 = vsub.s32 %v252, %v2173
    %v2175 = vrot.slane %v2171, %v2174
    %v2176 = vpack.c.b16 %v2175, %v2175
    %v2178 = vsel %vm300, %v2176, 0
    %v2181 = vsel %vm466, %v1562, 0
    %2183 = vmatprep.subr.bf16.mxu0 0
    %2184 = vmatpush1.bf16.msra.mxu0 %v2181
    %2185 = vmatprep.subr.bf16.mxu0 0
    %2186 = vmatpush1.bf16.msra.mxu0 0
    %2187 = vmatprep.subr.bf16.mxu0 0
    %2188 = vmatpush1.bf16.msra.mxu0 0
    %2189 = vmatprep.subr.bf16.mxu0 0
    %2190 = vmatpush1.bf16.msra.mxu0 0
    %2191 = vmatprep.subr.bf16.mxu0 0
    %2192 = vmatpush1.bf16.msra.mxu0 0
    %2193 = vmatprep.subr.bf16.mxu0 0
    %2194 = vmatpush1.bf16.msra.mxu0 0
    %2195 = vmatprep.subr.bf16.mxu0 0
    %2196 = vmatpush1.bf16.msra.mxu0 0
    %2197 = vmatprep.subr.bf16.mxu0 0
    %2198 = vmatpush1.bf16.msra.mxu0 0
    %2199 = vmatprep.subr.bf16.mxu0 0
    %2200 = vmatpush1.bf16.msra.mxu0 0
    %2201 = vmatprep.subr.bf16.mxu0 0
    %2202 = vmatpush1.bf16.msra.mxu0 0
    %2203 = vmatprep.subr.bf16.mxu0 0
    %2204 = vmatpush1.bf16.msra.mxu0 0
    %2205 = vmatprep.subr.bf16.mxu0 0
    %2206 = vmatpush1.bf16.msra.mxu0 0
    %2207 = vmatprep.subr.bf16.mxu0 0
    %2208 = vmatpush1.bf16.msra.mxu0 0
    %2209 = vmatprep.subr.bf16.mxu0 0
    %2210 = vmatpush1.bf16.msra.mxu0 0
    %2211 = vmatprep.subr.bf16.mxu0 0
    %2212 = vmatpush1.bf16.msra.mxu0 0
    %2213 = vmatprep.subr.bf16.mxu0 0
    %2214 = vmatpush1.bf16.msra.mxu0 0
    %2215 = vmatprep.mubr.bf16.mxu0 0
    %2216 = vmatmul.mubr.bf16.gmra.mrb[0].mxu0 %v2178
    %v2217 = vpop.f32.mrb[0].mxu0
    %v2218 = vadd.f32 0.0, %v2217
    %v2219 = vpop.f32.mrb[0].mxu0
    %v2220 = vpop.f32.mrb[0].mxu0
    %v2221 = vpop.f32.mrb[0].mxu0
    %2222 = vdwg.mxu0
    %v2224 = vunpack.c.l.b16 %v1885
    %2225 = vset.pattern.permute.xlu0 0
    %2226 = vperm.xlu0 %2225, %v2224
    %v2227 = vpop.permute.xlu0 %2226
    %v2228 = vlaneseq
    %v2229 = vshrl.u32 %v2228, 7
    %v2230 = vsub.s32 %v252, %v2229
    %v2231 = vrot.slane %v2227, %v2230
    %v2232 = vpack.c.b16 %v2231, %v2231
    %v2234 = vsel %vm300, %v2232, 0
    %v2237 = vsel %vm466, %v1563, 0
    %2239 = vmatprep.subr.bf16.mxu0 0
    %2240 = vmatpush1.bf16.msra.mxu0 %v2237
    %2241 = vmatprep.subr.bf16.mxu0 0
    %2242 = vmatpush1.bf16.msra.mxu0 0
    %2243 = vmatprep.subr.bf16.mxu0 0
    %2244 = vmatpush1.bf16.msra.mxu0 0
    %2245 = vmatprep.subr.bf16.mxu0 0
    %2246 = vmatpush1.bf16.msra.mxu0 0
    %2247 = vmatprep.subr.bf16.mxu0 0
    %2248 = vmatpush1.bf16.msra.mxu0 0
    %2249 = vmatprep.subr.bf16.mxu0 0
    %2250 = vmatpush1.bf16.msra.mxu0 0
    %2251 = vmatprep.subr.bf16.mxu0 0
    %2252 = vmatpush1.bf16.msra.mxu0 0
    %2253 = vmatprep.subr.bf16.mxu0 0
    %2254 = vmatpush1.bf16.msra.mxu0 0
    %2255 = vmatprep.subr.bf16.mxu0 0
    %2256 = vmatpush1.bf16.msra.mxu0 0
    %2257 = vmatprep.subr.bf16.mxu0 0
    %2258 = vmatpush1.bf16.msra.mxu0 0
    %2259 = vmatprep.subr.bf16.mxu0 0
    %2260 = vmatpush1.bf16.msra.mxu0 0
    %2261 = vmatprep.subr.bf16.mxu0 0
    %2262 = vmatpush1.bf16.msra.mxu0 0
    %2263 = vmatprep.subr.bf16.mxu0 0
    %2264 = vmatpush1.bf16.msra.mxu0 0
    %2265 = vmatprep.subr.bf16.mxu0 0
    %2266 = vmatpush1.bf16.msra.mxu0 0
    %2267 = vmatprep.subr.bf16.mxu0 0
    %2268 = vmatpush1.bf16.msra.mxu0 0
    %2269 = vmatprep.subr.bf16.mxu0 0
    %2270 = vmatpush1.bf16.msra.mxu0 0
    %2271 = vmatprep.mubr.bf16.mxu0 0
    %2272 = vmatmul.mubr.bf16.gmra.mrb[0].mxu0 %v2234
    %v2273 = vpop.f32.mrb[0].mxu0
    %v2274 = vadd.f32 0.0, %v2273
    %v2275 = vpop.f32.mrb[0].mxu0
    %v2276 = vpop.f32.mrb[0].mxu0
    %v2277 = vpop.f32.mrb[0].mxu0
    %2278 = vdwg.mxu0
    %v2280 = vunpack.c.l.b16 %v1886
    %2281 = vset.pattern.permute.xlu0 0
    %2282 = vperm.xlu0 %2281, %v2280
    %v2283 = vpop.permute.xlu0 %2282
    %v2284 = vlaneseq
    %v2285 = vshrl.u32 %v2284, 7
    %v2286 = vsub.s32 %v252, %v2285
    %v2287 = vrot.slane %v2283, %v2286
    %v2288 = vpack.c.b16 %v2287, %v2287
    %v2290 = vsel %vm300, %v2288, 0
    %v2293 = vsel %vm466, %v1564, 0
    %2295 = vmatprep.subr.bf16.mxu0 0
    %2296 = vmatpush1.bf16.msra.mxu0 %v2293
    %2297 = vmatprep.subr.bf16.mxu0 0
    %2298 = vmatpush1.bf16.msra.mxu0 0
    %2299 = vmatprep.subr.bf16.mxu0 0
    %2300 = vmatpush1.bf16.msra.mxu0 0
    %2301 = vmatprep.subr.bf16.mxu0 0
    %2302 = vmatpush1.bf16.msra.mxu0 0
    %2303 = vmatprep.subr.bf16.mxu0 0
    %2304 = vmatpush1.bf16.msra.mxu0 0
    %2305 = vmatprep.subr.bf16.mxu0 0
    %2306 = vmatpush1.bf16.msra.mxu0 0
    %2307 = vmatprep.subr.bf16.mxu0 0
    %2308 = vmatpush1.bf16.msra.mxu0 0
    %2309 = vmatprep.subr.bf16.mxu0 0
    %2310 = vmatpush1.bf16.msra.mxu0 0
    %2311 = vmatprep.subr.bf16.mxu0 0
    %2312 = vmatpush1.bf16.msra.mxu0 0
    %2313 = vmatprep.subr.bf16.mxu0 0
    %2314 = vmatpush1.bf16.msra.mxu0 0
    %2315 = vmatprep.subr.bf16.mxu0 0
    %2316 = vmatpush1.bf16.msra.mxu0 0
    %2317 = vmatprep.subr.bf16.mxu0 0
    %2318 = vmatpush1.bf16.msra.mxu0 0
    %2319 = vmatprep.subr.bf16.mxu0 0
    %2320 = vmatpush1.bf16.msra.mxu0 0
    %2321 = vmatprep.subr.bf16.mxu0 0
    %2322 = vmatpush1.bf16.msra.mxu0 0
    %2323 = vmatprep.subr.bf16.mxu0 0
    %2324 = vmatpush1.bf16.msra.mxu0 0
    %2325 = vmatprep.subr.bf16.mxu0 0
    %2326 = vmatpush1.bf16.msra.mxu0 0
    %2327 = vmatprep.mubr.bf16.mxu0 0
    %2328 = vmatmul.mubr.bf16.gmra.mrb[0].mxu0 %v2290
    %v2329 = vpop.f32.mrb[0].mxu0
    %v2330 = vadd.f32 0.0, %v2329
    %v2331 = vpop.f32.mrb[0].mxu0
    %v2332 = vpop.f32.mrb[0].mxu0
    %v2333 = vpop.f32.mrb[0].mxu0
    %2334 = vdwg.mxu0
    %v2336 = vrot.slane %v1878, 1
    %v2337 = vrot.slane %v1878, 2
    %v2338 = vrot.slane %v1878, 3
    %v2339 = vrot.slane %v1878, 4
    %v2340 = vrot.slane %v1878, 5
    %v2341 = vrot.slane %v1878, 6
    %v2342 = vrot.slane %v1878, 7
    %v2351 = vmul.f32 %v1938, %v1878
    %v2352 = vmul.f32 %v1994, %v2336
    %v2353 = vmul.f32 %v2050, %v2337
    %v2354 = vmul.f32 %v2106, %v2338
    %v2355 = vmul.f32 %v2162, %v2339
    %v2356 = vmul.f32 %v2218, %v2340
    %v2357 = vmul.f32 %v2274, %v2341
    %v2358 = vmul.f32 %v2330, %v2342
    %s2359 = scalar_lea.vmem [#allocation4], 32
    %v2360 = vld [vmem:[%s2359] sm:$0xff]
    %v2361 = vld [vmem:[%s2359 + $0x8] sm:$0xff]
    %v2362 = vld [vmem:[%s2359 + $0x10] sm:$0xff]
    %v2363 = vld [vmem:[%s2359 + $0x18] sm:$0xff]
    %v2364 = vpack.c.bf16 %v2351, %v2351
    %v2365 = vpack.c.bf16 %v2352, %v2352
    %v2366 = vpack.c.bf16 %v2353, %v2353
    %v2367 = vpack.c.bf16 %v2354, %v2354
    %v2368 = vpack.c.bf16 %v2355, %v2355
    %v2369 = vpack.c.bf16 %v2356, %v2356
    %v2370 = vpack.c.bf16 %v2357, %v2357
    %v2371 = vpack.c.bf16 %v2358, %v2358
    %v2372 = vld [vmem:[#allocation12] sm:$0xff]
    %v2373 = vld [vmem:[#allocation12 + $0x8] sm:$0xff]
    %v2374 = vld [vmem:[#allocation12 + $0x10] sm:$0xff]
    %v2375 = vld [vmem:[#allocation12 + $0x18] sm:$0xff]
    %v2376 = vld [vmem:[#allocation12 + $0x20] sm:$0xff]
    %v2377 = vld [vmem:[#allocation12 + $0x28] sm:$0xff]
    %v2378 = vld [vmem:[#allocation12 + $0x30] sm:$0xff]
    %v2379 = vld [vmem:[#allocation12 + $0x38] sm:$0xff]
    %v2380 = vld [vmem:[#allocation12 + $0x40] sm:$0xff]
    %v2381 = vld [vmem:[#allocation12 + $0x48] sm:$0xff]
    %v2382 = vld [vmem:[#allocation12 + $0x50] sm:$0xff]
    %v2383 = vld [vmem:[#allocation12 + $0x58] sm:$0xff]
    %v2384 = vld [vmem:[#allocation12 + $0x60] sm:$0xff]
    %v2385 = vld [vmem:[#allocation12 + $0x68] sm:$0xff]
    %v2386 = vld [vmem:[#allocation12 + $0x70] sm:$0xff]
    %v2387 = vld [vmem:[#allocation12 + $0x78] sm:$0xff]
    %v2388 = vld [vmem:[#allocation12 + $0x80] sm:$0xff]
    %v2389 = vld [vmem:[#allocation12 + $0x88] sm:$0xff]
    %v2390 = vld [vmem:[#allocation12 + $0x90] sm:$0xff]
    %v2391 = vld [vmem:[#allocation12 + $0x98] sm:$0xff]
    %v2392 = vld [vmem:[#allocation12 + $0xa0] sm:$0xff]
    %v2393 = vld [vmem:[#allocation12 + $0xa8] sm:$0xff]
    %v2394 = vld [vmem:[#allocation12 + $0xb0] sm:$0xff]
    %v2395 = vld [vmem:[#allocation12 + $0xb8] sm:$0xff]
    %v2396 = vld [vmem:[#allocation12 + $0xc0] sm:$0xff]
    %v2397 = vld [vmem:[#allocation12 + $0xc8] sm:$0xff]
    %v2398 = vld [vmem:[#allocation12 + $0xd0] sm:$0xff]
    %v2399 = vld [vmem:[#allocation12 + $0xd8] sm:$0xff]
    %v2400 = vld [vmem:[#allocation12 + $0xe0] sm:$0xff]
    %v2401 = vld [vmem:[#allocation12 + $0xe8] sm:$0xff]
    %v2402 = vld [vmem:[#allocation12 + $0xf0] sm:$0xff]
    %v2403 = vld [vmem:[#allocation12 + $0xf8] sm:$0xff]
    %v2412 = vunpack.c.l.b16 %v2364
    %v2413 = vunpack.c.l.b16 %v2365
    %v2414 = vunpack.c.l.b16 %v2366
    %v2415 = vunpack.c.l.b16 %v2367
    %v2416 = vunpack.c.l.b16 %v2368
    %v2417 = vunpack.c.l.b16 %v2369
    %v2418 = vunpack.c.l.b16 %v2370
    %v2419 = vunpack.c.l.b16 %v2371
    %v2420 = vrot.slane %v2413, 7
    %v2421 = vsel %vm285, %v2420, %v2412
    %v2422 = vrot.slane %v2414, 6
    %v2423 = vsel %vm287, %v2422, %v2421
    %v2424 = vrot.slane %v2415, 5
    %v2425 = vsel %vm289, %v2424, %v2423
    %v2426 = vrot.slane %v2416, 4
    %v2427 = vsel %vm291, %v2426, %v2425
    %v2428 = vrot.slane %v2417, 3
    %v2429 = vsel %vm293, %v2428, %v2427
    %v2430 = vrot.slane %v2418, 2
    %v2431 = vsel %vm295, %v2430, %v2429
    %v2432 = vrot.slane %v2419, 1
    %v2433 = vsel %vm297, %v2432, %v2431
    %v2434 = vpack.c.b16 %v2433, %v2433
    %v2468 = vunpack.c.l.b16 %v2372
    %v2469 = vunpack.c.h.b16 %v2372
    %v2470 = vunpack.c.l.b16 %v2373
    %v2471 = vunpack.c.h.b16 %v2373
    %v2472 = vunpack.c.l.b16 %v2374
    %v2473 = vunpack.c.h.b16 %v2374
    %v2474 = vunpack.c.l.b16 %v2375
    %v2475 = vunpack.c.h.b16 %v2375
    %v2476 = vunpack.c.l.b16 %v2376
    %v2477 = vunpack.c.h.b16 %v2376
    %v2478 = vunpack.c.l.b16 %v2377
    %v2479 = vunpack.c.h.b16 %v2377
    %v2480 = vunpack.c.l.b16 %v2378
    %v2481 = vunpack.c.h.b16 %v2378
    %v2482 = vunpack.c.l.b16 %v2379
    %v2483 = vunpack.c.h.b16 %v2379
    %v2484 = vunpack.c.l.b16 %v2380
    %v2485 = vunpack.c.h.b16 %v2380
    %v2486 = vunpack.c.l.b16 %v2381
    %v2487 = vunpack.c.h.b16 %v2381
    %v2488 = vunpack.c.l.b16 %v2382
    %v2489 = vunpack.c.h.b16 %v2382
    %v2490 = vunpack.c.l.b16 %v2383
    %v2491 = vunpack.c.h.b16 %v2383
    %v2492 = vunpack.c.l.b16 %v2384
    %v2493 = vunpack.c.h.b16 %v2384
    %v2494 = vunpack.c.l.b16 %v2385
    %v2495 = vunpack.c.h.b16 %v2385
    %v2496 = vunpack.c.l.b16 %v2386
    %v2497 = vunpack.c.h.b16 %v2386
    %v2498 = vunpack.c.l.b16 %v2387
    %v2499 = vunpack.c.h.b16 %v2387
    %v2500 = vunpack.c.l.b16 %v2388
    %v2501 = vunpack.c.h.b16 %v2388
    %v2502 = vunpack.c.l.b16 %v2389
    %v2503 = vunpack.c.h.b16 %v2389
    %v2504 = vunpack.c.l.b16 %v2390
    %v2505 = vunpack.c.h.b16 %v2390
    %v2506 = vunpack.c.l.b16 %v2391
    %v2507 = vunpack.c.h.b16 %v2391
    %v2508 = vunpack.c.l.b16 %v2392
    %v2509 = vunpack.c.h.b16 %v2392
    %v2510 = vunpack.c.l.b16 %v2393
    %v2511 = vunpack.c.h.b16 %v2393
    %v2512 = vunpack.c.l.b16 %v2394
    %v2513 = vunpack.c.h.b16 %v2394
    %v2514 = vunpack.c.l.b16 %v2395
    %v2515 = vunpack.c.h.b16 %v2395
    %v2516 = vunpack.c.l.b16 %v2396
    %v2517 = vunpack.c.h.b16 %v2396
    %v2518 = vunpack.c.l.b16 %v2397
    %v2519 = vunpack.c.h.b16 %v2397
    %v2520 = vunpack.c.l.b16 %v2398
    %v2521 = vunpack.c.h.b16 %v2398
    %v2522 = vunpack.c.l.b16 %v2399
    %v2523 = vunpack.c.h.b16 %v2399
    %v2524 = vunpack.c.l.b16 %v2400
    %v2525 = vunpack.c.h.b16 %v2400
    %v2526 = vunpack.c.l.b16 %v2401
    %v2527 = vunpack.c.h.b16 %v2401
    %v2528 = vunpack.c.l.b16 %v2402
    %v2529 = vunpack.c.h.b16 %v2402
    %v2530 = vunpack.c.l.b16 %v2403
    %v2531 = vunpack.c.h.b16 %v2403
    %v2532 = vpack.c.b16 %v2472, %v2468
    %v2533 = vpack.c.b16 %v2473, %v2469
    %v2534 = vpack.c.b16 %v2474, %v2470
    %v2535 = vpack.c.b16 %v2475, %v2471
    %v2536 = vpack.c.b16 %v2480, %v2476
    %v2537 = vpack.c.b16 %v2481, %v2477
    %v2538 = vpack.c.b16 %v2482, %v2478
    %v2539 = vpack.c.b16 %v2483, %v2479
    %v2540 = vpack.c.b16 %v2488, %v2484
    %v2541 = vpack.c.b16 %v2489, %v2485
    %v2542 = vpack.c.b16 %v2490, %v2486
    %v2543 = vpack.c.b16 %v2491, %v2487
    %v2544 = vpack.c.b16 %v2496, %v2492
    %v2545 = vpack.c.b16 %v2497, %v2493
    %v2546 = vpack.c.b16 %v2498, %v2494
    %v2547 = vpack.c.b16 %v2499, %v2495
    %v2548 = vpack.c.b16 %v2504, %v2500
    %v2549 = vpack.c.b16 %v2505, %v2501
    %v2550 = vpack.c.b16 %v2506, %v2502
    %v2551 = vpack.c.b16 %v2507, %v2503
    %v2552 = vpack.c.b16 %v2512, %v2508
    %v2553 = vpack.c.b16 %v2513, %v2509
    %v2554 = vpack.c.b16 %v2514, %v2510
    %v2555 = vpack.c.b16 %v2515, %v2511
    %v2556 = vpack.c.b16 %v2520, %v2516
    %v2557 = vpack.c.b16 %v2521, %v2517
    %v2558 = vpack.c.b16 %v2522, %v2518
    %v2559 = vpack.c.b16 %v2523, %v2519
    %v2560 = vpack.c.b16 %v2528, %v2524
    %v2561 = vpack.c.b16 %v2529, %v2525
    %v2562 = vpack.c.b16 %v2530, %v2526
    %v2563 = vpack.c.b16 %v2531, %v2527
    %2596 = vmatprep.subr.bf16.mxu0 %v2533
    %2597 = vmatpush1.bf16.msra.mxu0 %v2532
    %2598 = vmatprep.subr.bf16.mxu0 %v2537
    %2599 = vmatpush1.bf16.msra.mxu0 %v2536
    %2600 = vmatprep.subr.bf16.mxu0 %v2541
    %2601 = vmatpush1.bf16.msra.mxu0 %v2540
    %2602 = vmatprep.subr.bf16.mxu0 %v2545
    %2603 = vmatpush1.bf16.msra.mxu0 %v2544
    %2604 = vmatprep.subr.bf16.mxu0 %v2549
    %2605 = vmatpush1.bf16.msra.mxu0 %v2548
    %2606 = vmatprep.subr.bf16.mxu0 %v2553
    %2607 = vmatpush1.bf16.msra.mxu0 %v2552
    %2608 = vmatprep.subr.bf16.mxu0 %v2557
    %2609 = vmatpush1.bf16.msra.mxu0 %v2556
    %2610 = vmatprep.subr.bf16.mxu0 %v2561
    %2611 = vmatpush1.bf16.msra.mxu0 %v2560
    %2612 = vmatprep.subr.bf16.mxu0 0
    %2613 = vmatpush1.bf16.msra.mxu0 0
    %2614 = vmatprep.subr.bf16.mxu0 0
    %2615 = vmatpush1.bf16.msra.mxu0 0
    %2616 = vmatprep.subr.bf16.mxu0 0
    %2617 = vmatpush1.bf16.msra.mxu0 0
    %2618 = vmatprep.subr.bf16.mxu0 0
    %2619 = vmatpush1.bf16.msra.mxu0 0
    %2620 = vmatprep.subr.bf16.mxu0 0
    %2621 = vmatpush1.bf16.msra.mxu0 0
    %2622 = vmatprep.subr.bf16.mxu0 0
    %2623 = vmatpush1.bf16.msra.mxu0 0
    %2624 = vmatprep.subr.bf16.mxu0 0
    %2625 = vmatpush1.bf16.msra.mxu0 0
    %2626 = vmatprep.subr.bf16.mxu0 0
    %2627 = vmatpush1.bf16.msra.mxu0 0
    %2628 = vmatprep.mubr.bf16.mxu0 0
    %2629 = vmatmul.mubr.bf16.gmra.mrb[0].mxu0 %v2434
    %v2630 = vpop.f32.mrb[0].mxu0
    %v2631 = vadd.f32 0.0, %v2630
    %v2632 = vpop.f32.mrb[0].mxu0
    %v2633 = vadd.f32 0.0, %v2632
    %v2634 = vpop.f32.mrb[0].mxu0
    %v2635 = vpop.f32.mrb[0].mxu0
    %2636 = vdwg.mxu0
    %2637 = vmatprep.subr.bf16.mxu0 %v2535
    %2638 = vmatpush1.bf16.msra.mxu0 %v2534
    %2639 = vmatprep.subr.bf16.mxu0 %v2539
    %2640 = vmatpush1.bf16.msra.mxu0 %v2538
    %2641 = vmatprep.subr.bf16.mxu0 %v2543
    %2642 = vmatpush1.bf16.msra.mxu0 %v2542
    %2643 = vmatprep.subr.bf16.mxu0 %v2547
    %2644 = vmatpush1.bf16.msra.mxu0 %v2546
    %2645 = vmatprep.subr.bf16.mxu0 %v2551
    %2646 = vmatpush1.bf16.msra.mxu0 %v2550
    %2647 = vmatprep.subr.bf16.mxu0 %v2555
    %2648 = vmatpush1.bf16.msra.mxu0 %v2554
    %2649 = vmatprep.subr.bf16.mxu0 %v2559
    %2650 = vmatpush1.bf16.msra.mxu0 %v2558
    %2651 = vmatprep.subr.bf16.mxu0 %v2563
    %2652 = vmatpush1.bf16.msra.mxu0 %v2562
    %2653 = vmatprep.subr.bf16.mxu0 0
    %2654 = vmatpush1.bf16.msra.mxu0 0
    %2655 = vmatprep.subr.bf16.mxu0 0
    %2656 = vmatpush1.bf16.msra.mxu0 0
    %2657 = vmatprep.subr.bf16.mxu0 0
    %2658 = vmatpush1.bf16.msra.mxu0 0
    %2659 = vmatprep.subr.bf16.mxu0 0
    %2660 = vmatpush1.bf16.msra.mxu0 0
    %2661 = vmatprep.subr.bf16.mxu0 0
    %2662 = vmatpush1.bf16.msra.mxu0 0
    %2663 = vmatprep.subr.bf16.mxu0 0
    %2664 = vmatpush1.bf16.msra.mxu0 0
    %2665 = vmatprep.subr.bf16.mxu0 0
    %2666 = vmatpush1.bf16.msra.mxu0 0
    %2667 = vmatprep.subr.bf16.mxu0 0
    %2668 = vmatpush1.bf16.msra.mxu0 0
    %2669 = vmatprep.mubr.bf16.mxu0 0
    %2670 = vmatmul.mubr.bf16.gmra.mrb[0].mxu0 %v2434
    %v2671 = vpop.f32.mrb[0].mxu0
    %v2672 = vadd.f32 0.0, %v2671
    %v2673 = vpop.f32.mrb[0].mxu0
    %v2674 = vadd.f32 0.0, %v2673
    %v2675 = vpop.f32.mrb[0].mxu0
    %v2676 = vpop.f32.mrb[0].mxu0
    %2677 = vdwg.mxu0
    %v2678 = vadd.f32 %v2360, %v2631
    %v2679 = vadd.f32 %v2361, %v2633
    %v2680 = vadd.f32 %v2362, %v2672
    %v2681 = vadd.f32 %v2363, %v2674
    %v2682 = vpack.c.bf16 %v1555, %v1555
    %v2683 = vld [vmem:[#allocation13] sm:$0xff]
    %v2684 = vld [vmem:[#allocation13 + $0x8] sm:$0xff]
    %v2685 = vld [vmem:[#allocation13 + $0x10] sm:$0xff]
    %v2686 = vld [vmem:[#allocation13 + $0x18] sm:$0xff]
    %v2687 = vld [vmem:[#allocation13 + $0x20] sm:$0xff]
    %v2688 = vld [vmem:[#allocation13 + $0x28] sm:$0xff]
    %v2689 = vld [vmem:[#allocation13 + $0x30] sm:$0xff]
    %v2690 = vld [vmem:[#allocation13 + $0x38] sm:$0xff]
    %v2691 = vld [vmem:[#allocation13 + $0x40] sm:$0xff]
    %v2692 = vld [vmem:[#allocation13 + $0x48] sm:$0xff]
    %v2693 = vld [vmem:[#allocation13 + $0x50] sm:$0xff]
    %v2694 = vld [vmem:[#allocation13 + $0x58] sm:$0xff]
    %v2695 = vld [vmem:[#allocation13 + $0x60] sm:$0xff]
    %v2696 = vld [vmem:[#allocation13 + $0x68] sm:$0xff]
    %v2697 = vld [vmem:[#allocation13 + $0x70] sm:$0xff]
    %v2698 = vld [vmem:[#allocation13 + $0x78] sm:$0xff]
    %v2699 = vld [vmem:[#allocation13 + $0x80] sm:$0xff]
    %v2700 = vld [vmem:[#allocation13 + $0x88] sm:$0xff]
    %v2701 = vld [vmem:[#allocation13 + $0x90] sm:$0xff]
    %v2702 = vld [vmem:[#allocation13 + $0x98] sm:$0xff]
    %v2703 = vld [vmem:[#allocation13 + $0xa0] sm:$0xff]
    %v2704 = vld [vmem:[#allocation13 + $0xa8] sm:$0xff]
    %v2705 = vld [vmem:[#allocation13 + $0xb0] sm:$0xff]
    %v2706 = vld [vmem:[#allocation13 + $0xb8] sm:$0xff]
    %v2707 = vld [vmem:[#allocation13 + $0xc0] sm:$0xff]
    %v2708 = vld [vmem:[#allocation13 + $0xc8] sm:$0xff]
    %v2709 = vld [vmem:[#allocation13 + $0xd0] sm:$0xff]
    %v2710 = vld [vmem:[#allocation13 + $0xd8] sm:$0xff]
    %v2711 = vld [vmem:[#allocation13 + $0xe0] sm:$0xff]
    %v2712 = vld [vmem:[#allocation13 + $0xe8] sm:$0xff]
    %v2713 = vld [vmem:[#allocation13 + $0xf0] sm:$0xff]
    %v2714 = vld [vmem:[#allocation13 + $0xf8] sm:$0xff]
    %v2747 = vunpack.c.l.b16 %v2683
    %v2748 = vunpack.c.h.b16 %v2683
    %v2749 = vunpack.c.l.b16 %v2684
    %v2750 = vunpack.c.h.b16 %v2684
    %v2751 = vunpack.c.l.b16 %v2685
    %v2752 = vunpack.c.h.b16 %v2685
    %v2753 = vunpack.c.l.b16 %v2686
    %v2754 = vunpack.c.h.b16 %v2686
    %v2755 = vunpack.c.l.b16 %v2687
    %v2756 = vunpack.c.h.b16 %v2687
    %v2757 = vunpack.c.l.b16 %v2688
    %v2758 = vunpack.c.h.b16 %v2688
    %v2759 = vunpack.c.l.b16 %v2689
    %v2760 = vunpack.c.h.b16 %v2689
    %v2761 = vunpack.c.l.b16 %v2690
    %v2762 = vunpack.c.h.b16 %v2690
    %v2763 = vunpack.c.l.b16 %v2691
    %v2764 = vunpack.c.h.b16 %v2691
    %v2765 = vunpack.c.l.b16 %v2692
    %v2766 = vunpack.c.h.b16 %v2692
    %v2767 = vunpack.c.l.b16 %v2693
    %v2768 = vunpack.c.h.b16 %v2693
    %v2769 = vunpack.c.l.b16 %v2694
    %v2770 = vunpack.c.h.b16 %v2694
    %v2771 = vunpack.c.l.b16 %v2695
    %v2772 = vunpack.c.h.b16 %v2695
    %v2773 = vunpack.c.l.b16 %v2696
    %v2774 = vunpack.c.h.b16 %v2696
    %v2775 = vunpack.c.l.b16 %v2697
    %v2776 = vunpack.c.h.b16 %v2697
    %v2777 = vunpack.c.l.b16 %v2698
    %v2778 = vunpack.c.h.b16 %v2698
    %v2779 = vunpack.c.l.b16 %v2699
    %v2780 = vunpack.c.h.b16 %v2699
    %v2781 = vunpack.c.l.b16 %v2700
    %v2782 = vunpack.c.h.b16 %v2700
    %v2783 = vunpack.c.l.b16 %v2701
    %v2784 = vunpack.c.h.b16 %v2701
    %v2785 = vunpack.c.l.b16 %v2702
    %v2786 = vunpack.c.h.b16 %v2702
    %v2787 = vunpack.c.l.b16 %v2703
    %v2788 = vunpack.c.h.b16 %v2703
    %v2789 = vunpack.c.l.b16 %v2704
    %v2790 = vunpack.c.h.b16 %v2704
    %v2791 = vunpack.c.l.b16 %v2705
    %v2792 = vunpack.c.h.b16 %v2705
    %v2793 = vunpack.c.l.b16 %v2706
    %v2794 = vunpack.c.h.b16 %v2706
    %v2795 = vunpack.c.l.b16 %v2707
    %v2796 = vunpack.c.h.b16 %v2707
    %v2797 = vunpack.c.l.b16 %v2708
    %v2798 = vunpack.c.h.b16 %v2708
    %v2799 = vunpack.c.l.b16 %v2709
    %v2800 = vunpack.c.h.b16 %v2709
    %v2801 = vunpack.c.l.b16 %v2710
    %v2802 = vunpack.c.h.b16 %v2710
    %v2803 = vunpack.c.l.b16 %v2711
    %v2804 = vunpack.c.h.b16 %v2711
    %v2805 = vunpack.c.l.b16 %v2712
    %v2806 = vunpack.c.h.b16 %v2712
    %v2807 = vunpack.c.l.b16 %v2713
    %v2808 = vunpack.c.h.b16 %v2713
    %v2809 = vunpack.c.l.b16 %v2714
    %v2810 = vunpack.c.h.b16 %v2714
    %v2811 = vpack.c.b16 %v2751, %v2747
    %v2812 = vpack.c.b16 %v2752, %v2748
    %v2813 = vpack.c.b16 %v2753, %v2749
    %v2814 = vpack.c.b16 %v2754, %v2750
    %v2815 = vpack.c.b16 %v2759, %v2755
    %v2816 = vpack.c.b16 %v2760, %v2756
    %v2817 = vpack.c.b16 %v2761, %v2757
    %v2818 = vpack.c.b16 %v2762, %v2758
    %v2819 = vpack.c.b16 %v2767, %v2763
    %v2820 = vpack.c.b16 %v2768, %v2764
    %v2821 = vpack.c.b16 %v2769, %v2765
    %v2822 = vpack.c.b16 %v2770, %v2766
    %v2823 = vpack.c.b16 %v2775, %v2771
    %v2824 = vpack.c.b16 %v2776, %v2772
    %v2825 = vpack.c.b16 %v2777, %v2773
    %v2826 = vpack.c.b16 %v2778, %v2774
    %v2827 = vpack.c.b16 %v2783, %v2779
    %v2828 = vpack.c.b16 %v2784, %v2780
    %v2829 = vpack.c.b16 %v2785, %v2781
    %v2830 = vpack.c.b16 %v2786, %v2782
    %v2831 = vpack.c.b16 %v2791, %v2787
    %v2832 = vpack.c.b16 %v2792, %v2788
    %v2833 = vpack.c.b16 %v2793, %v2789
    %v2834 = vpack.c.b16 %v2794, %v2790
    %v2835 = vpack.c.b16 %v2799, %v2795
    %v2836 = vpack.c.b16 %v2800, %v2796
    %v2837 = vpack.c.b16 %v2801, %v2797
    %v2838 = vpack.c.b16 %v2802, %v2798
    %v2839 = vpack.c.b16 %v2807, %v2803
    %v2840 = vpack.c.b16 %v2808, %v2804
    %v2841 = vpack.c.b16 %v2809, %v2805
    %v2842 = vpack.c.b16 %v2810, %v2806
    %2875 = vmatprep.subr.bf16.mxu0 %v2812
    %2876 = vmatpush1.bf16.msra.mxu0 %v2811
    %2877 = vmatprep.subr.bf16.mxu0 %v2816
    %2878 = vmatpush1.bf16.msra.mxu0 %v2815
    %2879 = vmatprep.subr.bf16.mxu0 %v2820
    %2880 = vmatpush1.bf16.msra.mxu0 %v2819
    %2881 = vmatprep.subr.bf16.mxu0 %v2824
    %2882 = vmatpush1.bf16.msra.mxu0 %v2823
    %2883 = vmatprep.subr.bf16.mxu0 %v2828
    %2884 = vmatpush1.bf16.msra.mxu0 %v2827
    %2885 = vmatprep.subr.bf16.mxu0 %v2832
    %2886 = vmatpush1.bf16.msra.mxu0 %v2831
    %2887 = vmatprep.subr.bf16.mxu0 %v2836
    %2888 = vmatpush1.bf16.msra.mxu0 %v2835
    %2889 = vmatprep.subr.bf16.mxu0 %v2840
    %2890 = vmatpush1.bf16.msra.mxu0 %v2839
    %2891 = vmatprep.subr.bf16.mxu0 0
    %2892 = vmatpush1.bf16.msra.mxu0 0
    %2893 = vmatprep.subr.bf16.mxu0 0
    %2894 = vmatpush1.bf16.msra.mxu0 0
    %2895 = vmatprep.subr.bf16.mxu0 0
    %2896 = vmatpush1.bf16.msra.mxu0 0
    %2897 = vmatprep.subr.bf16.mxu0 0
    %2898 = vmatpush1.bf16.msra.mxu0 0
    %2899 = vmatprep.subr.bf16.mxu0 0
    %2900 = vmatpush1.bf16.msra.mxu0 0
    %2901 = vmatprep.subr.bf16.mxu0 0
    %2902 = vmatpush1.bf16.msra.mxu0 0
    %2903 = vmatprep.subr.bf16.mxu0 0
    %2904 = vmatpush1.bf16.msra.mxu0 0
    %2905 = vmatprep.subr.bf16.mxu0 0
    %2906 = vmatpush1.bf16.msra.mxu0 0
    %2907 = vmatprep.mubr.bf16.mxu0 0
    %2908 = vmatmul.mubr.bf16.gmra.mrb[0].mxu0 %v2682
    %v2909 = vpop.f32.mrb[0].mxu0
    %v2910 = vadd.f32 0.0, %v2909
    %v2911 = vpop.f32.mrb[0].mxu0
    %v2912 = vadd.f32 0.0, %v2911
    %v2913 = vpop.f32.mrb[0].mxu0
    %v2914 = vpop.f32.mrb[0].mxu0
    %2915 = vdwg.mxu0
    %2916 = vmatprep.subr.bf16.mxu0 %v2814
    %2917 = vmatpush1.bf16.msra.mxu0 %v2813
    %2918 = vmatprep.subr.bf16.mxu0 %v2818
    %2919 = vmatpush1.bf16.msra.mxu0 %v2817
    %2920 = vmatprep.subr.bf16.mxu0 %v2822
    %2921 = vmatpush1.bf16.msra.mxu0 %v2821
    %2922 = vmatprep.subr.bf16.mxu0 %v2826
    %2923 = vmatpush1.bf16.msra.mxu0 %v2825
    %2924 = vmatprep.subr.bf16.mxu0 %v2830
    %2925 = vmatpush1.bf16.msra.mxu0 %v2829
    %2926 = vmatprep.subr.bf16.mxu0 %v2834
    %2927 = vmatpush1.bf16.msra.mxu0 %v2833
    %2928 = vmatprep.subr.bf16.mxu0 %v2838
    %2929 = vmatpush1.bf16.msra.mxu0 %v2837
    %2930 = vmatprep.subr.bf16.mxu0 %v2842
    %2931 = vmatpush1.bf16.msra.mxu0 %v2841
    %2932 = vmatprep.subr.bf16.mxu0 0
    %2933 = vmatpush1.bf16.msra.mxu0 0
    %2934 = vmatprep.subr.bf16.mxu0 0
    %2935 = vmatpush1.bf16.msra.mxu0 0
    %2936 = vmatprep.subr.bf16.mxu0 0
    %2937 = vmatpush1.bf16.msra.mxu0 0
    %2938 = vmatprep.subr.bf16.mxu0 0
    %2939 = vmatpush1.bf16.msra.mxu0 0
    %2940 = vmatprep.subr.bf16.mxu0 0
    %2941 = vmatpush1.bf16.msra.mxu0 0
    %2942 = vmatprep.subr.bf16.mxu0 0
    %2943 = vmatpush1.bf16.msra.mxu0 0
    %2944 = vmatprep.subr.bf16.mxu0 0
    %2945 = vmatpush1.bf16.msra.mxu0 0
    %2946 = vmatprep.subr.bf16.mxu0 0
    %2947 = vmatpush1.bf16.msra.mxu0 0
    %2948 = vmatprep.mubr.bf16.mxu0 0
    %2949 = vmatmul.mubr.bf16.gmra.mrb[0].mxu0 %v2682
    %v2950 = vpop.f32.mrb[0].mxu0
    %v2951 = vadd.f32 0.0, %v2950
    %v2952 = vpop.f32.mrb[0].mxu0
    %v2953 = vadd.f32 0.0, %v2952
    %v2954 = vpop.f32.mrb[0].mxu0
    %v2955 = vpop.f32.mrb[0].mxu0
    %2956 = vdwg.mxu0
    %v2957 = vadd.f32 %v2678, %v2910
    %v2958 = vadd.f32 %v2679, %v2912
    %v2959 = vadd.f32 %v2680, %v2951
    %v2960 = vadd.f32 %v2681, %v2953
    %v2961 = vxor.u32 %v2957, 2147483648
    %v2962 = vmul.f32 %v2961, 1.442695
    %v2963 = vpow.pop %v2962
    %v2964 = vadd.f32 %v2963, 1.0
    %v2965 = vrcp.pop %v2964
    %v2966 = vmul.f32 1.0, %v2965
    %v2967 = vxor.u32 %v2958, 2147483648
    %v2968 = vmul.f32 %v2967, 1.442695
    %v2969 = vpow.pop %v2968
    %v2970 = vadd.f32 %v2969, 1.0
    %v2971 = vrcp.pop %v2970
    %v2972 = vmul.f32 1.0, %v2971
    %v2973 = vtanh.pop %v2959
    %v2974 = vxor.u32 %v2960, 2147483648
    %v2975 = vmul.f32 %v2974, 1.442695
    %v2976 = vpow.pop %v2975
    %v2977 = vadd.f32 %v2976, 1.0
    %v2978 = vrcp.pop %v2977
    %v2979 = vmul.f32 1.0, %v2978
    %v2980 = vmul.f32 %v2972, %v1556
    %v2981 = vmul.f32 %v2966, %v2973
    %v2982 = vadd.f32 %v2980, %v2981
    %v2983 = vtanh.pop %v2982
    %v2984 = vmul.f32 %v2979, %v2983
    %2985 = vst [vmem:[#allocation2] sm:$0xff] %v2984
    %2986 = vst [vmem:[#allocation3] sm:$0xff] %v2982
    %v2987 = vpack.c.bf16 %v2984, %v2984
    %s2988 = scalar_lea.vmem [#allocation15], 4
    %2989 = vst [vmem:[%s2988] sm:$0xf] %v2987
    %v2990 = vld [vmem:[#allocation2] sm:$0xff]
    %v2991 = vld [vmem:[#allocation3] sm:$0xff]
    %v2992 = vld [vmem:[#allocation7] sm:$0xf]
    %v2993 = vld [vmem:[#allocation7 + $0x4] sm:$0xf]
    %v2994 = vld [vmem:[#allocation7 + $0x8] sm:$0xf]
    %v2995 = vld [vmem:[#allocation7 + $0xc] sm:$0xf]
    %v2996 = vld [vmem:[#allocation7 + $0x10] sm:$0xf]
    %v2997 = vld [vmem:[#allocation7 + $0x14] sm:$0xf]
    %v2998 = vld [vmem:[#allocation7 + $0x18] sm:$0xf]
    %v2999 = vld [vmem:[#allocation7 + $0x1c] sm:$0xf]
    %v3000 = vunpack.c.l.bf16 %v2992
    %v3001 = vunpack.c.l.bf16 %v2993
    %v3002 = vunpack.c.l.bf16 %v2994
    %v3003 = vunpack.c.l.bf16 %v2995
    %v3004 = vunpack.c.l.bf16 %v2996
    %v3005 = vunpack.c.l.bf16 %v2997
    %v3006 = vunpack.c.l.bf16 %v2998
    %v3007 = vunpack.c.l.bf16 %v2999
    %v3009 = vcombine.high %v2990, %v2990
    %v3011 = vunpack.c.l.s4 1966171168
    %v3012 = vunpack.c.0.s8 %v3011
    %v3013 = vlaneseq
    %v3014 = vshrl.u32 %v3013, 7
    %v3015 = vsub.s32 %v3012, %v3014
    %v3016 = vrot.slane %v2990, %v3015
    %v3018 = vunpack.c.l.s4 1966171168
    %v3019 = vunpack.c.0.s8 %v3018
    %v3020 = vlaneseq
    %v3021 = vshrl.u32 %v3020, 7
    %v3022 = vsub.s32 %v3019, %v3021
    %v3023 = vrot.slane %v3009, %v3022
    %v3024 = vcombine.high %v3016, %v3016
    %v3025 = vcombine.high %v3023, %v3023
    %v3027 = vunpack.c.l.s4 1966171168
    %v3028 = vunpack.c.0.s8 %v3027
    %v3029 = vlaneseq
    %v3030 = vshrl.u32 %v3029, 7
    %v3031 = vsub.s32 %v3028, %v3030
    %v3032 = vrot.slane %v3016, %v3031
    %v3034 = vunpack.c.l.s4 1966171168
    %v3035 = vunpack.c.0.s8 %v3034
    %v3036 = vlaneseq
    %v3037 = vshrl.u32 %v3036, 7
    %v3038 = vsub.s32 %v3035, %v3037
    %v3039 = vrot.slane %v3023, %v3038
    %v3041 = vunpack.c.l.s4 1966171168
    %v3042 = vunpack.c.0.s8 %v3041
    %v3043 = vlaneseq
    %v3044 = vshrl.u32 %v3043, 7
    %v3045 = vsub.s32 %v3042, %v3044
    %v3046 = vrot.slane %v3024, %v3045
    %v3048 = vunpack.c.l.s4 1966171168
    %v3049 = vunpack.c.0.s8 %v3048
    %v3050 = vlaneseq
    %v3051 = vshrl.u32 %v3050, 7
    %v3052 = vsub.s32 %v3049, %v3051
    %v3053 = vrot.slane %v3025, %v3052
    %v3054 = vcombine.high %v3032, %v3032
    %v3055 = vcombine.high %v3039, %v3039
    %v3056 = vcombine.high %v3046, %v3046
    %v3057 = vcombine.high %v3053, %v3053
    %v3058 = vlaneseq
    %v3059 = vshrl.u32 %v3058, 7
    %v3060 = vsub.s32 0, %v3059
    %v3061 = vrot.slane %v3032, %v3060
    %v3062 = vlaneseq
    %v3063 = vshrl.u32 %v3062, 7
    %v3064 = vsub.s32 0, %v3063
    %v3065 = vrot.slane %v3046, %v3064
    %v3066 = vlaneseq
    %v3067 = vshrl.u32 %v3066, 7
    %v3068 = vsub.s32 0, %v3067
    %v3069 = vrot.slane %v3054, %v3068
    %v3070 = vlaneseq
    %v3071 = vshrl.u32 %v3070, 7
    %v3072 = vsub.s32 0, %v3071
    %v3073 = vrot.slane %v3056, %v3072
    %v3074 = vlaneseq
    %v3075 = vshrl.u32 %v3074, 7
    %v3076 = vsub.s32 0, %v3075
    %v3077 = vrot.slane %v3039, %v3076
    %v3078 = vlaneseq
    %v3079 = vshrl.u32 %v3078, 7
    %v3080 = vsub.s32 0, %v3079
    %v3081 = vrot.slane %v3053, %v3080
    %v3082 = vlaneseq
    %v3083 = vshrl.u32 %v3082, 7
    %v3084 = vsub.s32 0, %v3083
    %v3085 = vrot.slane %v3055, %v3084
    %v3086 = vlaneseq
    %v3087 = vshrl.u32 %v3086, 7
    %v3088 = vsub.s32 0, %v3087
    %v3089 = vrot.slane %v3057, %v3088
    %v3098 = vmul.f32 %v3000, %v3061
    %v3099 = vmul.f32 %v3001, %v3065
    %v3100 = vmul.f32 %v3002, %v3069
    %v3101 = vmul.f32 %v3003, %v3073
    %v3102 = vmul.f32 %v3004, %v3077
    %v3103 = vmul.f32 %v3005, %v3081
    %v3104 = vmul.f32 %v3006, %v3085
    %v3105 = vmul.f32 %v3007, %v3089
    %3106 = vadd.xlane.f32.xlu0 %v3098
    %v3107 = vpop.xlane.xlu0 %3106
    %3108 = vadd.xlane.f32.xlu0 %v3099
    %v3109 = vpop.xlane.xlu0 %3108
    %3110 = vadd.xlane.f32.xlu0 %v3100
    %v3111 = vpop.xlane.xlu0 %3110
    %3112 = vadd.xlane.f32.xlu0 %v3101
    %v3113 = vpop.xlane.xlu0 %3112
    %3114 = vadd.xlane.f32.xlu0 %v3102
    %v3115 = vpop.xlane.xlu0 %3114
    %3116 = vadd.xlane.f32.xlu0 %v3103
    %v3117 = vpop.xlane.xlu0 %3116
    %3118 = vadd.xlane.f32.xlu0 %v3104
    %v3119 = vpop.xlane.xlu0 %3118
    %3120 = vadd.xlane.f32.xlu0 %v3105
    %v3121 = vpop.xlane.xlu0 %3120
    %v3130 = vlaneseq
    %v3131 = vshrl.u32 %v3130, 7
    %v3132 = vsub.s32 %v252, %v3131
    %v3133 = vrot.slane %v3107, %v3132
    %v3134 = vlaneseq
    %v3135 = vshrl.u32 %v3134, 7
    %v3136 = vsub.s32 %v252, %v3135
    %v3137 = vrot.slane %v3109, %v3136
    %v3138 = vlaneseq
    %v3139 = vshrl.u32 %v3138, 7
    %v3140 = vsub.s32 %v252, %v3139
    %v3141 = vrot.slane %v3111, %v3140
    %v3142 = vlaneseq
    %v3143 = vshrl.u32 %v3142, 7
    %v3144 = vsub.s32 %v252, %v3143
    %v3145 = vrot.slane %v3113, %v3144
    %v3146 = vlaneseq
    %v3147 = vshrl.u32 %v3146, 7
    %v3148 = vsub.s32 %v252, %v3147
    %v3149 = vrot.slane %v3115, %v3148
    %v3150 = vlaneseq
    %v3151 = vshrl.u32 %v3150, 7
    %v3152 = vsub.s32 %v252, %v3151
    %v3153 = vrot.slane %v3117, %v3152
    %v3154 = vlaneseq
    %v3155 = vshrl.u32 %v3154, 7
    %v3156 = vsub.s32 %v252, %v3155
    %v3157 = vrot.slane %v3119, %v3156
    %v3158 = vlaneseq
    %v3159 = vshrl.u32 %v3158, 7
    %v3160 = vsub.s32 %v252, %v3159
    %v3161 = vrot.slane %v3121, %v3160
    %v3162 = vsel %vm285, %v3137, %v3133
    %v3163 = vsel %vm287, %v3141, %v3162
    %v3164 = vsel %vm289, %v3145, %v3163
    %v3165 = vsel %vm291, %v3149, %v3164
    %v3166 = vsel %vm293, %v3153, %v3165
    %v3167 = vsel %vm295, %v3157, %v3166
    %v3168 = vsel %vm297, %v3161, %v3167
    %v3170 = vsel %vm300, %v3168, -inf
    %3171 = vmax.xlane.f32.xlu0 %v3170
    %v3172 = vpop.xlane.xlu0 %3171
    %v3174 = vlaneseq
    %v3175 = vshrl.u32 %v3174, 7
    %v3176 = vsub.s32 0, %v3175
    %v3177 = vrot.slane %v3172, %v3176
    %v3178 = vlaneseq
    %v3179 = vshrl.u32 %v3178, 7
    %v3180 = vsub.s32 1, %v3179
    %v3181 = vrot.slane %v3172, %v3180
    %v3182 = vlaneseq
    %v3183 = vshrl.u32 %v3182, 7
    %v3184 = vsub.s32 2, %v3183
    %v3185 = vrot.slane %v3172, %v3184
    %v3186 = vlaneseq
    %v3187 = vshrl.u32 %v3186, 7
    %v3188 = vsub.s32 3, %v3187
    %v3189 = vrot.slane %v3172, %v3188
    %v3190 = vlaneseq
    %v3191 = vshrl.u32 %v3190, 7
    %v3192 = vsub.s32 4, %v3191
    %v3193 = vrot.slane %v3172, %v3192
    %v3194 = vlaneseq
    %v3195 = vshrl.u32 %v3194, 7
    %v3196 = vsub.s32 5, %v3195
    %v3197 = vrot.slane %v3172, %v3196
    %v3198 = vlaneseq
    %v3199 = vshrl.u32 %v3198, 7
    %v3200 = vsub.s32 6, %v3199
    %v3201 = vrot.slane %v3172, %v3200
    %v3202 = vlaneseq
    %v3203 = vshrl.u32 %v3202, 7
    %v3204 = vsub.s32 7, %v3203
    %v3205 = vrot.slane %v3172, %v3204
    %v3214 = vsub.f32 %v3107, %v3177
    %v3215 = vsub.f32 %v3109, %v3181
    %v3216 = vsub.f32 %v3111, %v3185
    %v3217 = vsub.f32 %v3113, %v3189
    %v3218 = vsub.f32 %v3115, %v3193
    %v3219 = vsub.f32 %v3117, %v3197
    %v3220 = vsub.f32 %v3119, %v3201
    %v3221 = vsub.f32 %v3121, %v3205
    %v3222 = vmul.f32 %v3214, 1.442695
    %v3223 = vpow.pop %v3222
    %v3224 = vmul.f32 %v3215, 1.442695
    %v3225 = vpow.pop %v3224
    %v3226 = vmul.f32 %v3216, 1.442695
    %v3227 = vpow.pop %v3226
    %v3228 = vmul.f32 %v3217, 1.442695
    %v3229 = vpow.pop %v3228
    %v3230 = vmul.f32 %v3218, 1.442695
    %v3231 = vpow.pop %v3230
    %v3232 = vmul.f32 %v3219, 1.442695
    %v3233 = vpow.pop %v3232
    %v3234 = vmul.f32 %v3220, 1.442695
    %v3235 = vpow.pop %v3234
    %v3236 = vmul.f32 %v3221, 1.442695
    %v3237 = vpow.pop %v3236
    %3246 = vset.pattern.permute.xlu0 0
    %3247 = vperm.xlu0 %3246, %v3223
    %v3248 = vpop.permute.xlu0 %3247
    %3249 = vset.pattern.permute.xlu0 0
    %3250 = vperm.xlu0 %3249, %v3225
    %v3251 = vpop.permute.xlu0 %3250
    %3252 = vset.pattern.permute.xlu0 0
    %3253 = vperm.xlu0 %3252, %v3227
    %v3254 = vpop.permute.xlu0 %3253
    %3255 = vset.pattern.permute.xlu0 0
    %3256 = vperm.xlu0 %3255, %v3229
    %v3257 = vpop.permute.xlu0 %3256
    %3258 = vset.pattern.permute.xlu0 0
    %3259 = vperm.xlu0 %3258, %v3231
    %v3260 = vpop.permute.xlu0 %3259
    %3261 = vset.pattern.permute.xlu0 0
    %3262 = vperm.xlu0 %3261, %v3233
    %v3263 = vpop.permute.xlu0 %3262
    %3264 = vset.pattern.permute.xlu0 0
    %3265 = vperm.xlu0 %3264, %v3235
    %v3266 = vpop.permute.xlu0 %3265
    %3267 = vset.pattern.permute.xlu0 0
    %3268 = vperm.xlu0 %3267, %v3237
    %v3269 = vpop.permute.xlu0 %3268
    %v3270 = vlaneseq
    %v3271 = vshrl.u32 %v3270, 7
    %v3272 = vsub.s32 %v252, %v3271
    %v3273 = vrot.slane %v3248, %v3272
    %v3274 = vlaneseq
    %v3275 = vshrl.u32 %v3274, 7
    %v3276 = vsub.s32 %v252, %v3275
    %v3277 = vrot.slane %v3251, %v3276
    %v3278 = vlaneseq
    %v3279 = vshrl.u32 %v3278, 7
    %v3280 = vsub.s32 %v252, %v3279
    %v3281 = vrot.slane %v3254, %v3280
    %v3282 = vlaneseq
    %v3283 = vshrl.u32 %v3282, 7
    %v3284 = vsub.s32 %v252, %v3283
    %v3285 = vrot.slane %v3257, %v3284
    %v3286 = vlaneseq
    %v3287 = vshrl.u32 %v3286, 7
    %v3288 = vsub.s32 %v252, %v3287
    %v3289 = vrot.slane %v3260, %v3288
    %v3290 = vlaneseq
    %v3291 = vshrl.u32 %v3290, 7
    %v3292 = vsub.s32 %v252, %v3291
    %v3293 = vrot.slane %v3263, %v3292
    %v3294 = vlaneseq
    %v3295 = vshrl.u32 %v3294, 7
    %v3296 = vsub.s32 %v252, %v3295
    %v3297 = vrot.slane %v3266, %v3296
    %v3298 = vlaneseq
    %v3299 = vshrl.u32 %v3298, 7
    %v3300 = vsub.s32 %v252, %v3299
    %v3301 = vrot.slane %v3269, %v3300
    %v3302 = vsel %vm285, %v3277, %v3273
    %v3303 = vsel %vm287, %v3281, %v3302
    %v3304 = vsel %vm289, %v3285, %v3303
    %v3305 = vsel %vm291, %v3289, %v3304
    %v3306 = vsel %vm293, %v3293, %v3305
    %v3307 = vsel %vm295, %v3297, %v3306
    %v3308 = vsel %vm297, %v3301, %v3307
    %v3310 = vsel %vm300, %v3308, 0.0
    %3311 = vadd.xlane.f32.xlu0 %v3310
    %v3312 = vpop.xlane.xlu0 %3311
    %v3313 = vrcp.pop %v3312
    %v3314 = vpack.c.bf16 %v3223, %v3223
    %v3315 = vpack.c.bf16 %v3225, %v3225
    %v3316 = vpack.c.bf16 %v3227, %v3227
    %v3317 = vpack.c.bf16 %v3229, %v3229
    %v3318 = vpack.c.bf16 %v3231, %v3231
    %v3319 = vpack.c.bf16 %v3233, %v3233
    %v3320 = vpack.c.bf16 %v3235, %v3235
    %v3321 = vpack.c.bf16 %v3237, %v3237
    %v3323 = vunpack.c.l.b16 %v3314
    %3324 = vset.pattern.permute.xlu0 0
    %3325 = vperm.xlu0 %3324, %v3323
    %v3326 = vpop.permute.xlu0 %3325
    %v3327 = vlaneseq
    %v3328 = vshrl.u32 %v3327, 7
    %v3329 = vsub.s32 %v252, %v3328
    %v3330 = vrot.slane %v3326, %v3329
    %v3331 = vpack.c.b16 %v3330, %v3330
    %v3333 = vsel %vm300, %v3331, 0
    %v3336 = vsel %vm466, %v2992, 0
    %3338 = vmatprep.subr.bf16.mxu0 0
    %3339 = vmatpush1.bf16.msra.mxu0 %v3336
    %3340 = vmatprep.subr.bf16.mxu0 0
    %3341 = vmatpush1.bf16.msra.mxu0 0
    %3342 = vmatprep.subr.bf16.mxu0 0
    %3343 = vmatpush1.bf16.msra.mxu0 0
    %3344 = vmatprep.subr.bf16.mxu0 0
    %3345 = vmatpush1.bf16.msra.mxu0 0
    %3346 = vmatprep.subr.bf16.mxu0 0
    %3347 = vmatpush1.bf16.msra.mxu0 0
    %3348 = vmatprep.subr.bf16.mxu0 0
    %3349 = vmatpush1.bf16.msra.mxu0 0
    %3350 = vmatprep.subr.bf16.mxu0 0
    %3351 = vmatpush1.bf16.msra.mxu0 0
    %3352 = vmatprep.subr.bf16.mxu0 0
    %3353 = vmatpush1.bf16.msra.mxu0 0
    %3354 = vmatprep.subr.bf16.mxu0 0
    %3355 = vmatpush1.bf16.msra.mxu0 0
    %3356 = vmatprep.subr.bf16.mxu0 0
    %3357 = vmatpush1.bf16.msra.mxu0 0
    %3358 = vmatprep.subr.bf16.mxu0 0
    %3359 = vmatpush1.bf16.msra.mxu0 0
    %3360 = vmatprep.subr.bf16.mxu0 0
    %3361 = vmatpush1.bf16.msra.mxu0 0
    %3362 = vmatprep.subr.bf16.mxu0 0
    %3363 = vmatpush1.bf16.msra.mxu0 0
    %3364 = vmatprep.subr.bf16.mxu0 0
    %3365 = vmatpush1.bf16.msra.mxu0 0
    %3366 = vmatprep.subr.bf16.mxu0 0
    %3367 = vmatpush1.bf16.msra.mxu0 0
    %3368 = vmatprep.subr.bf16.mxu0 0
    %3369 = vmatpush1.bf16.msra.mxu0 0
    %3370 = vmatprep.mubr.bf16.mxu0 0
    %3371 = vmatmul.mubr.bf16.gmra.mrb[0].mxu0 %v3333
    %v3372 = vpop.f32.mrb[0].mxu0
    %v3373 = vadd.f32 0.0, %v3372
    %v3374 = vpop.f32.mrb[0].mxu0
    %v3375 = vpop.f32.mrb[0].mxu0
    %v3376 = vpop.f32.mrb[0].mxu0
    %3377 = vdwg.mxu0
    %v3379 = vunpack.c.l.b16 %v3315
    %3380 = vset.pattern.permute.xlu0 0
    %3381 = vperm.xlu0 %3380, %v3379
    %v3382 = vpop.permute.xlu0 %3381
    %v3383 = vlaneseq
    %v3384 = vshrl.u32 %v3383, 7
    %v3385 = vsub.s32 %v252, %v3384
    %v3386 = vrot.slane %v3382, %v3385
    %v3387 = vpack.c.b16 %v3386, %v3386
    %v3389 = vsel %vm300, %v3387, 0
    %v3392 = vsel %vm466, %v2993, 0
    %3394 = vmatprep.subr.bf16.mxu0 0
    %3395 = vmatpush1.bf16.msra.mxu0 %v3392
    %3396 = vmatprep.subr.bf16.mxu0 0
    %3397 = vmatpush1.bf16.msra.mxu0 0
    %3398 = vmatprep.subr.bf16.mxu0 0
    %3399 = vmatpush1.bf16.msra.mxu0 0
    %3400 = vmatprep.subr.bf16.mxu0 0
    %3401 = vmatpush1.bf16.msra.mxu0 0
    %3402 = vmatprep.subr.bf16.mxu0 0
    %3403 = vmatpush1.bf16.msra.mxu0 0
    %3404 = vmatprep.subr.bf16.mxu0 0
    %3405 = vmatpush1.bf16.msra.mxu0 0
    %3406 = vmatprep.subr.bf16.mxu0 0
    %3407 = vmatpush1.bf16.msra.mxu0 0
    %3408 = vmatprep.subr.bf16.mxu0 0
    %3409 = vmatpush1.bf16.msra.mxu0 0
    %3410 = vmatprep.subr.bf16.mxu0 0
    %3411 = vmatpush1.bf16.msra.mxu0 0
    %3412 = vmatprep.subr.bf16.mxu0 0
    %3413 = vmatpush1.bf16.msra.mxu0 0
    %3414 = vmatprep.subr.bf16.mxu0 0
    %3415 = vmatpush1.bf16.msra.mxu0 0
    %3416 = vmatprep.subr.bf16.mxu0 0
    %3417 = vmatpush1.bf16.msra.mxu0 0
    %3418 = vmatprep.subr.bf16.mxu0 0
    %3419 = vmatpush1.bf16.msra.mxu0 0
    %3420 = vmatprep.subr.bf16.mxu0 0
    %3421 = vmatpush1.bf16.msra.mxu0 0
    %3422 = vmatprep.subr.bf16.mxu0 0
    %3423 = vmatpush1.bf16.msra.mxu0 0
    %3424 = vmatprep.subr.bf16.mxu0 0
    %3425 = vmatpush1.bf16.msra.mxu0 0
    %3426 = vmatprep.mubr.bf16.mxu0 0
    %3427 = vmatmul.mubr.bf16.gmra.mrb[0].mxu0 %v3389
    %v3428 = vpop.f32.mrb[0].mxu0
    %v3429 = vadd.f32 0.0, %v3428
    %v3430 = vpop.f32.mrb[0].mxu0
    %v3431 = vpop.f32.mrb[0].mxu0
    %v3432 = vpop.f32.mrb[0].mxu0
    %3433 = vdwg.mxu0
    %v3435 = vunpack.c.l.b16 %v3316
    %3436 = vset.pattern.permute.xlu0 0
    %3437 = vperm.xlu0 %3436, %v3435
    %v3438 = vpop.permute.xlu0 %3437
    %v3439 = vlaneseq
    %v3440 = vshrl.u32 %v3439, 7
    %v3441 = vsub.s32 %v252, %v3440
    %v3442 = vrot.slane %v3438, %v3441
    %v3443 = vpack.c.b16 %v3442, %v3442
    %v3445 = vsel %vm300, %v3443, 0
    %v3448 = vsel %vm466, %v2994, 0
    %3450 = vmatprep.subr.bf16.mxu0 0
    %3451 = vmatpush1.bf16.msra.mxu0 %v3448
    %3452 = vmatprep.subr.bf16.mxu0 0
    %3453 = vmatpush1.bf16.msra.mxu0 0
    %3454 = vmatprep.subr.bf16.mxu0 0
    %3455 = vmatpush1.bf16.msra.mxu0 0
    %3456 = vmatprep.subr.bf16.mxu0 0
    %3457 = vmatpush1.bf16.msra.mxu0 0
    %3458 = vmatprep.subr.bf16.mxu0 0
    %3459 = vmatpush1.bf16.msra.mxu0 0
    %3460 = vmatprep.subr.bf16.mxu0 0
    %3461 = vmatpush1.bf16.msra.mxu0 0
    %3462 = vmatprep.subr.bf16.mxu0 0
    %3463 = vmatpush1.bf16.msra.mxu0 0
    %3464 = vmatprep.subr.bf16.mxu0 0
    %3465 = vmatpush1.bf16.msra.mxu0 0
    %3466 = vmatprep.subr.bf16.mxu0 0
    %3467 = vmatpush1.bf16.msra.mxu0 0
    %3468 = vmatprep.subr.bf16.mxu0 0
    %3469 = vmatpush1.bf16.msra.mxu0 0
    %3470 = vmatprep.subr.bf16.mxu0 0
    %3471 = vmatpush1.bf16.msra.mxu0 0
    %3472 = vmatprep.subr.bf16.mxu0 0
    %3473 = vmatpush1.bf16.msra.mxu0 0
    %3474 = vmatprep.subr.bf16.mxu0 0
    %3475 = vmatpush1.bf16.msra.mxu0 0
    %3476 = vmatprep.subr.bf16.mxu0 0
    %3477 = vmatpush1.bf16.msra.mxu0 0
    %3478 = vmatprep.subr.bf16.mxu0 0
    %3479 = vmatpush1.bf16.msra.mxu0 0
    %3480 = vmatprep.subr.bf16.mxu0 0
    %3481 = vmatpush1.bf16.msra.mxu0 0
    %3482 = vmatprep.mubr.bf16.mxu0 0
    %3483 = vmatmul.mubr.bf16.gmra.mrb[0].mxu0 %v3445
    %v3484 = vpop.f32.mrb[0].mxu0
    %v3485 = vadd.f32 0.0, %v3484
    %v3486 = vpop.f32.mrb[0].mxu0
    %v3487 = vpop.f32.mrb[0].mxu0
    %v3488 = vpop.f32.mrb[0].mxu0
    %3489 = vdwg.mxu0
    %v3491 = vunpack.c.l.b16 %v3317
    %3492 = vset.pattern.permute.xlu0 0
    %3493 = vperm.xlu0 %3492, %v3491
    %v3494 = vpop.permute.xlu0 %3493
    %v3495 = vlaneseq
    %v3496 = vshrl.u32 %v3495, 7
    %v3497 = vsub.s32 %v252, %v3496
    %v3498 = vrot.slane %v3494, %v3497
    %v3499 = vpack.c.b16 %v3498, %v3498
    %v3501 = vsel %vm300, %v3499, 0
    %v3504 = vsel %vm466, %v2995, 0
    %3506 = vmatprep.subr.bf16.mxu0 0
    %3507 = vmatpush1.bf16.msra.mxu0 %v3504
    %3508 = vmatprep.subr.bf16.mxu0 0
    %3509 = vmatpush1.bf16.msra.mxu0 0
    %3510 = vmatprep.subr.bf16.mxu0 0
    %3511 = vmatpush1.bf16.msra.mxu0 0
    %3512 = vmatprep.subr.bf16.mxu0 0
    %3513 = vmatpush1.bf16.msra.mxu0 0
    %3514 = vmatprep.subr.bf16.mxu0 0
    %3515 = vmatpush1.bf16.msra.mxu0 0
    %3516 = vmatprep.subr.bf16.mxu0 0
    %3517 = vmatpush1.bf16.msra.mxu0 0
    %3518 = vmatprep.subr.bf16.mxu0 0
    %3519 = vmatpush1.bf16.msra.mxu0 0
    %3520 = vmatprep.subr.bf16.mxu0 0
    %3521 = vmatpush1.bf16.msra.mxu0 0
    %3522 = vmatprep.subr.bf16.mxu0 0
    %3523 = vmatpush1.bf16.msra.mxu0 0
    %3524 = vmatprep.subr.bf16.mxu0 0
    %3525 = vmatpush1.bf16.msra.mxu0 0
    %3526 = vmatprep.subr.bf16.mxu0 0
    %3527 = vmatpush1.bf16.msra.mxu0 0
    %3528 = vmatprep.subr.bf16.mxu0 0
    %3529 = vmatpush1.bf16.msra.mxu0 0
    %3530 = vmatprep.subr.bf16.mxu0 0
    %3531 = vmatpush1.bf16.msra.mxu0 0
    %3532 = vmatprep.subr.bf16.mxu0 0
    %3533 = vmatpush1.bf16.msra.mxu0 0
    %3534 = vmatprep.subr.bf16.mxu0 0
    %3535 = vmatpush1.bf16.msra.mxu0 0
    %3536 = vmatprep.subr.bf16.mxu0 0
    %3537 = vmatpush1.bf16.msra.mxu0 0
    %3538 = vmatprep.mubr.bf16.mxu0 0
    %3539 = vmatmul.mubr.bf16.gmra.mrb[0].mxu0 %v3501
    %v3540 = vpop.f32.mrb[0].mxu0
    %v3541 = vadd.f32 0.0, %v3540
    %v3542 = vpop.f32.mrb[0].mxu0
    %v3543 = vpop.f32.mrb[0].mxu0
    %v3544 = vpop.f32.mrb[0].mxu0
    %3545 = vdwg.mxu0
    %v3547 = vunpack.c.l.b16 %v3318
    %3548 = vset.pattern.permute.xlu0 0
    %3549 = vperm.xlu0 %3548, %v3547
    %v3550 = vpop.permute.xlu0 %3549
    %v3551 = vlaneseq
    %v3552 = vshrl.u32 %v3551, 7
    %v3553 = vsub.s32 %v252, %v3552
    %v3554 = vrot.slane %v3550, %v3553
    %v3555 = vpack.c.b16 %v3554, %v3554
    %v3557 = vsel %vm300, %v3555, 0
    %v3560 = vsel %vm466, %v2996, 0
    %3562 = vmatprep.subr.bf16.mxu0 0
    %3563 = vmatpush1.bf16.msra.mxu0 %v3560
    %3564 = vmatprep.subr.bf16.mxu0 0
    %3565 = vmatpush1.bf16.msra.mxu0 0
    %3566 = vmatprep.subr.bf16.mxu0 0
    %3567 = vmatpush1.bf16.msra.mxu0 0
    %3568 = vmatprep.subr.bf16.mxu0 0
    %3569 = vmatpush1.bf16.msra.mxu0 0
    %3570 = vmatprep.subr.bf16.mxu0 0
    %3571 = vmatpush1.bf16.msra.mxu0 0
    %3572 = vmatprep.subr.bf16.mxu0 0
    %3573 = vmatpush1.bf16.msra.mxu0 0
    %3574 = vmatprep.subr.bf16.mxu0 0
    %3575 = vmatpush1.bf16.msra.mxu0 0
    %3576 = vmatprep.subr.bf16.mxu0 0
    %3577 = vmatpush1.bf16.msra.mxu0 0
    %3578 = vmatprep.subr.bf16.mxu0 0
    %3579 = vmatpush1.bf16.msra.mxu0 0
    %3580 = vmatprep.subr.bf16.mxu0 0
    %3581 = vmatpush1.bf16.msra.mxu0 0
    %3582 = vmatprep.subr.bf16.mxu0 0
    %3583 = vmatpush1.bf16.msra.mxu0 0
    %3584 = vmatprep.subr.bf16.mxu0 0
    %3585 = vmatpush1.bf16.msra.mxu0 0
    %3586 = vmatprep.subr.bf16.mxu0 0
    %3587 = vmatpush1.bf16.msra.mxu0 0
    %3588 = vmatprep.subr.bf16.mxu0 0
    %3589 = vmatpush1.bf16.msra.mxu0 0
    %3590 = vmatprep.subr.bf16.mxu0 0
    %3591 = vmatpush1.bf16.msra.mxu0 0
    %3592 = vmatprep.subr.bf16.mxu0 0
    %3593 = vmatpush1.bf16.msra.mxu0 0
    %3594 = vmatprep.mubr.bf16.mxu0 0
    %3595 = vmatmul.mubr.bf16.gmra.mrb[0].mxu0 %v3557
    %v3596 = vpop.f32.mrb[0].mxu0
    %v3597 = vadd.f32 0.0, %v3596
    %v3598 = vpop.f32.mrb[0].mxu0
    %v3599 = vpop.f32.mrb[0].mxu0
    %v3600 = vpop.f32.mrb[0].mxu0
    %3601 = vdwg.mxu0
    %v3603 = vunpack.c.l.b16 %v3319
    %3604 = vset.pattern.permute.xlu0 0
    %3605 = vperm.xlu0 %3604, %v3603
    %v3606 = vpop.permute.xlu0 %3605
    %v3607 = vlaneseq
    %v3608 = vshrl.u32 %v3607, 7
    %v3609 = vsub.s32 %v252, %v3608
    %v3610 = vrot.slane %v3606, %v3609
    %v3611 = vpack.c.b16 %v3610, %v3610
    %v3613 = vsel %vm300, %v3611, 0
    %v3616 = vsel %vm466, %v2997, 0
    %3618 = vmatprep.subr.bf16.mxu0 0
    %3619 = vmatpush1.bf16.msra.mxu0 %v3616
    %3620 = vmatprep.subr.bf16.mxu0 0
    %3621 = vmatpush1.bf16.msra.mxu0 0
    %3622 = vmatprep.subr.bf16.mxu0 0
    %3623 = vmatpush1.bf16.msra.mxu0 0
    %3624 = vmatprep.subr.bf16.mxu0 0
    %3625 = vmatpush1.bf16.msra.mxu0 0
    %3626 = vmatprep.subr.bf16.mxu0 0
    %3627 = vmatpush1.bf16.msra.mxu0 0
    %3628 = vmatprep.subr.bf16.mxu0 0
    %3629 = vmatpush1.bf16.msra.mxu0 0
    %3630 = vmatprep.subr.bf16.mxu0 0
    %3631 = vmatpush1.bf16.msra.mxu0 0
    %3632 = vmatprep.subr.bf16.mxu0 0
    %3633 = vmatpush1.bf16.msra.mxu0 0
    %3634 = vmatprep.subr.bf16.mxu0 0
    %3635 = vmatpush1.bf16.msra.mxu0 0
    %3636 = vmatprep.subr.bf16.mxu0 0
    %3637 = vmatpush1.bf16.msra.mxu0 0
    %3638 = vmatprep.subr.bf16.mxu0 0
    %3639 = vmatpush1.bf16.msra.mxu0 0
    %3640 = vmatprep.subr.bf16.mxu0 0
    %3641 = vmatpush1.bf16.msra.mxu0 0
    %3642 = vmatprep.subr.bf16.mxu0 0
    %3643 = vmatpush1.bf16.msra.mxu0 0
    %3644 = vmatprep.subr.bf16.mxu0 0
    %3645 = vmatpush1.bf16.msra.mxu0 0
    %3646 = vmatprep.subr.bf16.mxu0 0
    %3647 = vmatpush1.bf16.msra.mxu0 0
    %3648 = vmatprep.subr.bf16.mxu0 0
    %3649 = vmatpush1.bf16.msra.mxu0 0
    %3650 = vmatprep.mubr.bf16.mxu0 0
    %3651 = vmatmul.mubr.bf16.gmra.mrb[0].mxu0 %v3613
    %v3652 = vpop.f32.mrb[0].mxu0
    %v3653 = vadd.f32 0.0, %v3652
    %v3654 = vpop.f32.mrb[0].mxu0
    %v3655 = vpop.f32.mrb[0].mxu0
    %v3656 = vpop.f32.mrb[0].mxu0
    %3657 = vdwg.mxu0
    %v3659 = vunpack.c.l.b16 %v3320
    %3660 = vset.pattern.permute.xlu0 0
    %3661 = vperm.xlu0 %3660, %v3659
    %v3662 = vpop.permute.xlu0 %3661
    %v3663 = vlaneseq
    %v3664 = vshrl.u32 %v3663, 7
    %v3665 = vsub.s32 %v252, %v3664
    %v3666 = vrot.slane %v3662, %v3665
    %v3667 = vpack.c.b16 %v3666, %v3666
    %v3669 = vsel %vm300, %v3667, 0
    %v3672 = vsel %vm466, %v2998, 0
    %3674 = vmatprep.subr.bf16.mxu0 0
    %3675 = vmatpush1.bf16.msra.mxu0 %v3672
    %3676 = vmatprep.subr.bf16.mxu0 0
    %3677 = vmatpush1.bf16.msra.mxu0 0
    %3678 = vmatprep.subr.bf16.mxu0 0
    %3679 = vmatpush1.bf16.msra.mxu0 0
    %3680 = vmatprep.subr.bf16.mxu0 0
    %3681 = vmatpush1.bf16.msra.mxu0 0
    %3682 = vmatprep.subr.bf16.mxu0 0
    %3683 = vmatpush1.bf16.msra.mxu0 0
    %3684 = vmatprep.subr.bf16.mxu0 0
    %3685 = vmatpush1.bf16.msra.mxu0 0
    %3686 = vmatprep.subr.bf16.mxu0 0
    %3687 = vmatpush1.bf16.msra.mxu0 0
    %3688 = vmatprep.subr.bf16.mxu0 0
    %3689 = vmatpush1.bf16.msra.mxu0 0
    %3690 = vmatprep.subr.bf16.mxu0 0
    %3691 = vmatpush1.bf16.msra.mxu0 0
    %3692 = vmatprep.subr.bf16.mxu0 0
    %3693 = vmatpush1.bf16.msra.mxu0 0
    %3694 = vmatprep.subr.bf16.mxu0 0
    %3695 = vmatpush1.bf16.msra.mxu0 0
    %3696 = vmatprep.subr.bf16.mxu0 0
    %3697 = vmatpush1.bf16.msra.mxu0 0
    %3698 = vmatprep.subr.bf16.mxu0 0
    %3699 = vmatpush1.bf16.msra.mxu0 0
    %3700 = vmatprep.subr.bf16.mxu0 0
    %3701 = vmatpush1.bf16.msra.mxu0 0
    %3702 = vmatprep.subr.bf16.mxu0 0
    %3703 = vmatpush1.bf16.msra.mxu0 0
    %3704 = vmatprep.subr.bf16.mxu0 0
    %3705 = vmatpush1.bf16.msra.mxu0 0
    %3706 = vmatprep.mubr.bf16.mxu0 0
    %3707 = vmatmul.mubr.bf16.gmra.mrb[0].mxu0 %v3669
    %v3708 = vpop.f32.mrb[0].mxu0
    %v3709 = vadd.f32 0.0, %v3708
    %v3710 = vpop.f32.mrb[0].mxu0
    %v3711 = vpop.f32.mrb[0].mxu0
    %v3712 = vpop.f32.mrb[0].mxu0
    %3713 = vdwg.mxu0
    %v3715 = vunpack.c.l.b16 %v3321
    %3716 = vset.pattern.permute.xlu0 0
    %3717 = vperm.xlu0 %3716, %v3715
    %v3718 = vpop.permute.xlu0 %3717
    %v3719 = vlaneseq
    %v3720 = vshrl.u32 %v3719, 7
    %v3721 = vsub.s32 %v252, %v3720
    %v3722 = vrot.slane %v3718, %v3721
    %v3723 = vpack.c.b16 %v3722, %v3722
    %v3725 = vsel %vm300, %v3723, 0
    %v3728 = vsel %vm466, %v2999, 0
    %3730 = vmatprep.subr.bf16.mxu0 0
    %3731 = vmatpush1.bf16.msra.mxu0 %v3728
    %3732 = vmatprep.subr.bf16.mxu0 0
    %3733 = vmatpush1.bf16.msra.mxu0 0
    %3734 = vmatprep.subr.bf16.mxu0 0
    %3735 = vmatpush1.bf16.msra.mxu0 0
    %3736 = vmatprep.subr.bf16.mxu0 0
    %3737 = vmatpush1.bf16.msra.mxu0 0
    %3738 = vmatprep.subr.bf16.mxu0 0
    %3739 = vmatpush1.bf16.msra.mxu0 0
    %3740 = vmatprep.subr.bf16.mxu0 0
    %3741 = vmatpush1.bf16.msra.mxu0 0
    %3742 = vmatprep.subr.bf16.mxu0 0
    %3743 = vmatpush1.bf16.msra.mxu0 0
    %3744 = vmatprep.subr.bf16.mxu0 0
    %3745 = vmatpush1.bf16.msra.mxu0 0
    %3746 = vmatprep.subr.bf16.mxu0 0
    %3747 = vmatpush1.bf16.msra.mxu0 0
    %3748 = vmatprep.subr.bf16.mxu0 0
    %3749 = vmatpush1.bf16.msra.mxu0 0
    %3750 = vmatprep.subr.bf16.mxu0 0
    %3751 = vmatpush1.bf16.msra.mxu0 0
    %3752 = vmatprep.subr.bf16.mxu0 0
    %3753 = vmatpush1.bf16.msra.mxu0 0
    %3754 = vmatprep.subr.bf16.mxu0 0
    %3755 = vmatpush1.bf16.msra.mxu0 0
    %3756 = vmatprep.subr.bf16.mxu0 0
    %3757 = vmatpush1.bf16.msra.mxu0 0
    %3758 = vmatprep.subr.bf16.mxu0 0
    %3759 = vmatpush1.bf16.msra.mxu0 0
    %3760 = vmatprep.subr.bf16.mxu0 0
    %3761 = vmatpush1.bf16.msra.mxu0 0
    %3762 = vmatprep.mubr.bf16.mxu0 0
    %3763 = vmatmul.mubr.bf16.gmra.mrb[0].mxu0 %v3725
    %v3764 = vpop.f32.mrb[0].mxu0
    %v3765 = vadd.f32 0.0, %v3764
    %v3766 = vpop.f32.mrb[0].mxu0
    %v3767 = vpop.f32.mrb[0].mxu0
    %v3768 = vpop.f32.mrb[0].mxu0
    %3769 = vdwg.mxu0
    %v3771 = vrot.slane %v3313, 1
    %v3772 = vrot.slane %v3313, 2
    %v3773 = vrot.slane %v3313, 3
    %v3774 = vrot.slane %v3313, 4
    %v3775 = vrot.slane %v3313, 5
    %v3776 = vrot.slane %v3313, 6
    %v3777 = vrot.slane %v3313, 7
    %v3786 = vmul.f32 %v3373, %v3313
    %v3787 = vmul.f32 %v3429, %v3771
    %v3788 = vmul.f32 %v3485, %v3772
    %v3789 = vmul.f32 %v3541, %v3773
    %v3790 = vmul.f32 %v3597, %v3774
    %v3791 = vmul.f32 %v3653, %v3775
    %v3792 = vmul.f32 %v3709, %v3776
    %v3793 = vmul.f32 %v3765, %v3777
    %s3794 = scalar_lea.vmem [#allocation4], 64
    %v3795 = vld [vmem:[%s3794] sm:$0xff]
    %v3796 = vld [vmem:[%s3794 + $0x8] sm:$0xff]
    %v3797 = vld [vmem:[%s3794 + $0x10] sm:$0xff]
    %v3798 = vld [vmem:[%s3794 + $0x18] sm:$0xff]
    %v3799 = vpack.c.bf16 %v3786, %v3786
    %v3800 = vpack.c.bf16 %v3787, %v3787
    %v3801 = vpack.c.bf16 %v3788, %v3788
    %v3802 = vpack.c.bf16 %v3789, %v3789
    %v3803 = vpack.c.bf16 %v3790, %v3790
    %v3804 = vpack.c.bf16 %v3791, %v3791
    %v3805 = vpack.c.bf16 %v3792, %v3792
    %v3806 = vpack.c.bf16 %v3793, %v3793
    %v3807 = vld [vmem:[#allocation12] sm:$0xff]
    %v3808 = vld [vmem:[#allocation12 + $0x8] sm:$0xff]
    %v3809 = vld [vmem:[#allocation12 + $0x10] sm:$0xff]
    %v3810 = vld [vmem:[#allocation12 + $0x18] sm:$0xff]
    %v3811 = vld [vmem:[#allocation12 + $0x20] sm:$0xff]
    %v3812 = vld [vmem:[#allocation12 + $0x28] sm:$0xff]
    %v3813 = vld [vmem:[#allocation12 + $0x30] sm:$0xff]
    %v3814 = vld [vmem:[#allocation12 + $0x38] sm:$0xff]
    %v3815 = vld [vmem:[#allocation12 + $0x40] sm:$0xff]
    %v3816 = vld [vmem:[#allocation12 + $0x48] sm:$0xff]
    %v3817 = vld [vmem:[#allocation12 + $0x50] sm:$0xff]
    %v3818 = vld [vmem:[#allocation12 + $0x58] sm:$0xff]
    %v3819 = vld [vmem:[#allocation12 + $0x60] sm:$0xff]
    %v3820 = vld [vmem:[#allocation12 + $0x68] sm:$0xff]
    %v3821 = vld [vmem:[#allocation12 + $0x70] sm:$0xff]
    %v3822 = vld [vmem:[#allocation12 + $0x78] sm:$0xff]
    %v3823 = vld [vmem:[#allocation12 + $0x80] sm:$0xff]
    %v3824 = vld [vmem:[#allocation12 + $0x88] sm:$0xff]
    %v3825 = vld [vmem:[#allocation12 + $0x90] sm:$0xff]
    %v3826 = vld [vmem:[#allocation12 + $0x98] sm:$0xff]
    %v3827 = vld [vmem:[#allocation12 + $0xa0] sm:$0xff]
    %v3828 = vld [vmem:[#allocation12 + $0xa8] sm:$0xff]
    %v3829 = vld [vmem:[#allocation12 + $0xb0] sm:$0xff]
    %v3830 = vld [vmem:[#allocation12 + $0xb8] sm:$0xff]
    %v3831 = vld [vmem:[#allocation12 + $0xc0] sm:$0xff]
    %v3832 = vld [vmem:[#allocation12 + $0xc8] sm:$0xff]
    %v3833 = vld [vmem:[#allocation12 + $0xd0] sm:$0xff]
    %v3834 = vld [vmem:[#allocation12 + $0xd8] sm:$0xff]
    %v3835 = vld [vmem:[#allocation12 + $0xe0] sm:$0xff]
    %v3836 = vld [vmem:[#allocation12 + $0xe8] sm:$0xff]
    %v3837 = vld [vmem:[#allocation12 + $0xf0] sm:$0xff]
    %v3838 = vld [vmem:[#allocation12 + $0xf8] sm:$0xff]
    %v3847 = vunpack.c.l.b16 %v3799
    %v3848 = vunpack.c.l.b16 %v3800
    %v3849 = vunpack.c.l.b16 %v3801
    %v3850 = vunpack.c.l.b16 %v3802
    %v3851 = vunpack.c.l.b16 %v3803
    %v3852 = vunpack.c.l.b16 %v3804
    %v3853 = vunpack.c.l.b16 %v3805
    %v3854 = vunpack.c.l.b16 %v3806
    %v3855 = vrot.slane %v3848, 7
    %v3856 = vsel %vm285, %v3855, %v3847
    %v3857 = vrot.slane %v3849, 6
    %v3858 = vsel %vm287, %v3857, %v3856
    %v3859 = vrot.slane %v3850, 5
    %v3860 = vsel %vm289, %v3859, %v3858
    %v3861 = vrot.slane %v3851, 4
    %v3862 = vsel %vm291, %v3861, %v3860
    %v3863 = vrot.slane %v3852, 3
    %v3864 = vsel %vm293, %v3863, %v3862
    %v3865 = vrot.slane %v3853, 2
    %v3866 = vsel %vm295, %v3865, %v3864
    %v3867 = vrot.slane %v3854, 1
    %v3868 = vsel %vm297, %v3867, %v3866
    %v3869 = vpack.c.b16 %v3868, %v3868
    %v3903 = vunpack.c.l.b16 %v3807
    %v3904 = vunpack.c.h.b16 %v3807
    %v3905 = vunpack.c.l.b16 %v3808
    %v3906 = vunpack.c.h.b16 %v3808
    %v3907 = vunpack.c.l.b16 %v3809
    %v3908 = vunpack.c.h.b16 %v3809
    %v3909 = vunpack.c.l.b16 %v3810
    %v3910 = vunpack.c.h.b16 %v3810
    %v3911 = vunpack.c.l.b16 %v3811
    %v3912 = vunpack.c.h.b16 %v3811
    %v3913 = vunpack.c.l.b16 %v3812
    %v3914 = vunpack.c.h.b16 %v3812
    %v3915 = vunpack.c.l.b16 %v3813
    %v3916 = vunpack.c.h.b16 %v3813
    %v3917 = vunpack.c.l.b16 %v3814
    %v3918 = vunpack.c.h.b16 %v3814
    %v3919 = vunpack.c.l.b16 %v3815
    %v3920 = vunpack.c.h.b16 %v3815
    %v3921 = vunpack.c.l.b16 %v3816
    %v3922 = vunpack.c.h.b16 %v3816
    %v3923 = vunpack.c.l.b16 %v3817
    %v3924 = vunpack.c.h.b16 %v3817
    %v3925 = vunpack.c.l.b16 %v3818
    %v3926 = vunpack.c.h.b16 %v3818
    %v3927 = vunpack.c.l.b16 %v3819
    %v3928 = vunpack.c.h.b16 %v3819
    %v3929 = vunpack.c.l.b16 %v3820
    %v3930 = vunpack.c.h.b16 %v3820
    %v3931 = vunpack.c.l.b16 %v3821
    %v3932 = vunpack.c.h.b16 %v3821
    %v3933 = vunpack.c.l.b16 %v3822
    %v3934 = vunpack.c.h.b16 %v3822
    %v3935 = vunpack.c.l.b16 %v3823
    %v3936 = vunpack.c.h.b16 %v3823
    %v3937 = vunpack.c.l.b16 %v3824
    %v3938 = vunpack.c.h.b16 %v3824
    %v3939 = vunpack.c.l.b16 %v3825
    %v3940 = vunpack.c.h.b16 %v3825
    %v3941 = vunpack.c.l.b16 %v3826
    %v3942 = vunpack.c.h.b16 %v3826
    %v3943 = vunpack.c.l.b16 %v3827
    %v3944 = vunpack.c.h.b16 %v3827
    %v3945 = vunpack.c.l.b16 %v3828
    %v3946 = vunpack.c.h.b16 %v3828
    %v3947 = vunpack.c.l.b16 %v3829
    %v3948 = vunpack.c.h.b16 %v3829
    %v3949 = vunpack.c.l.b16 %v3830
    %v3950 = vunpack.c.h.b16 %v3830
    %v3951 = vunpack.c.l.b16 %v3831
    %v3952 = vunpack.c.h.b16 %v3831
    %v3953 = vunpack.c.l.b16 %v3832
    %v3954 = vunpack.c.h.b16 %v3832
    %v3955 = vunpack.c.l.b16 %v3833
    %v3956 = vunpack.c.h.b16 %v3833
    %v3957 = vunpack.c.l.b16 %v3834
    %v3958 = vunpack.c.h.b16 %v3834
    %v3959 = vunpack.c.l.b16 %v3835
    %v3960 = vunpack.c.h.b16 %v3835
    %v3961 = vunpack.c.l.b16 %v3836
    %v3962 = vunpack.c.h.b16 %v3836
    %v3963 = vunpack.c.l.b16 %v3837
    %v3964 = vunpack.c.h.b16 %v3837
    %v3965 = vunpack.c.l.b16 %v3838
    %v3966 = vunpack.c.h.b16 %v3838
    %v3967 = vpack.c.b16 %v3907, %v3903
    %v3968 = vpack.c.b16 %v3908, %v3904
    %v3969 = vpack.c.b16 %v3909, %v3905
    %v3970 = vpack.c.b16 %v3910, %v3906
    %v3971 = vpack.c.b16 %v3915, %v3911
    %v3972 = vpack.c.b16 %v3916, %v3912
    %v3973 = vpack.c.b16 %v3917, %v3913
    %v3974 = vpack.c.b16 %v3918, %v3914
    %v3975 = vpack.c.b16 %v3923, %v3919
    %v3976 = vpack.c.b16 %v3924, %v3920
    %v3977 = vpack.c.b16 %v3925, %v3921
    %v3978 = vpack.c.b16 %v3926, %v3922
    %v3979 = vpack.c.b16 %v3931, %v3927
    %v3980 = vpack.c.b16 %v3932, %v3928
    %v3981 = vpack.c.b16 %v3933, %v3929
    %v3982 = vpack.c.b16 %v3934, %v3930
    %v3983 = vpack.c.b16 %v3939, %v3935
    %v3984 = vpack.c.b16 %v3940, %v3936
    %v3985 = vpack.c.b16 %v3941, %v3937
    %v3986 = vpack.c.b16 %v3942, %v3938
    %v3987 = vpack.c.b16 %v3947, %v3943
    %v3988 = vpack.c.b16 %v3948, %v3944
    %v3989 = vpack.c.b16 %v3949, %v3945
    %v3990 = vpack.c.b16 %v3950, %v3946
    %v3991 = vpack.c.b16 %v3955, %v3951
    %v3992 = vpack.c.b16 %v3956, %v3952
    %v3993 = vpack.c.b16 %v3957, %v3953
    %v3994 = vpack.c.b16 %v3958, %v3954
    %v3995 = vpack.c.b16 %v3963, %v3959
    %v3996 = vpack.c.b16 %v3964, %v3960
    %v3997 = vpack.c.b16 %v3965, %v3961
    %v3998 = vpack.c.b16 %v3966, %v3962
    %4031 = vmatprep.subr.bf16.mxu0 %v3968
    %4032 = vmatpush1.bf16.msra.mxu0 %v3967
    %4033 = vmatprep.subr.bf16.mxu0 %v3972
    %4034 = vmatpush1.bf16.msra.mxu0 %v3971
    %4035 = vmatprep.subr.bf16.mxu0 %v3976
    %4036 = vmatpush1.bf16.msra.mxu0 %v3975
    %4037 = vmatprep.subr.bf16.mxu0 %v3980
    %4038 = vmatpush1.bf16.msra.mxu0 %v3979
    %4039 = vmatprep.subr.bf16.mxu0 %v3984
    %4040 = vmatpush1.bf16.msra.mxu0 %v3983
    %4041 = vmatprep.subr.bf16.mxu0 %v3988
    %4042 = vmatpush1.bf16.msra.mxu0 %v3987
    %4043 = vmatprep.subr.bf16.mxu0 %v3992
    %4044 = vmatpush1.bf16.msra.mxu0 %v3991
    %4045 = vmatprep.subr.bf16.mxu0 %v3996
    %4046 = vmatpush1.bf16.msra.mxu0 %v3995
    %4047 = vmatprep.subr.bf16.mxu0 0
    %4048 = vmatpush1.bf16.msra.mxu0 0
    %4049 = vmatprep.subr.bf16.mxu0 0
    %4050 = vmatpush1.bf16.msra.mxu0 0
    %4051 = vmatprep.subr.bf16.mxu0 0
    %4052 = vmatpush1.bf16.msra.mxu0 0
    %4053 = vmatprep.subr.bf16.mxu0 0
    %4054 = vmatpush1.bf16.msra.mxu0 0
    %4055 = vmatprep.subr.bf16.mxu0 0
    %4056 = vmatpush1.bf16.msra.mxu0 0
    %4057 = vmatprep.subr.bf16.mxu0 0
    %4058 = vmatpush1.bf16.msra.mxu0 0
    %4059 = vmatprep.subr.bf16.mxu0 0
    %4060 = vmatpush1.bf16.msra.mxu0 0
    %4061 = vmatprep.subr.bf16.mxu0 0
    %4062 = vmatpush1.bf16.msra.mxu0 0
    %4063 = vmatprep.mubr.bf16.mxu0 0
    %4064 = vmatmul.mubr.bf16.gmra.mrb[0].mxu0 %v3869
    %v4065 = vpop.f32.mrb[0].mxu0
    %v4066 = vadd.f32 0.0, %v4065
    %v4067 = vpop.f32.mrb[0].mxu0
    %v4068 = vadd.f32 0.0, %v4067
    %v4069 = vpop.f32.mrb[0].mxu0
    %v4070 = vpop.f32.mrb[0].mxu0
    %4071 = vdwg.mxu0
    %4072 = vmatprep.subr.bf16.mxu0 %v3970
    %4073 = vmatpush1.bf16.msra.mxu0 %v3969
    %4074 = vmatprep.subr.bf16.mxu0 %v3974
    %4075 = vmatpush1.bf16.msra.mxu0 %v3973
    %4076 = vmatprep.subr.bf16.mxu0 %v3978
    %4077 = vmatpush1.bf16.msra.mxu0 %v3977
    %4078 = vmatprep.subr.bf16.mxu0 %v3982
    %4079 = vmatpush1.bf16.msra.mxu0 %v3981
    %4080 = vmatprep.subr.bf16.mxu0 %v3986
    %4081 = vmatpush1.bf16.msra.mxu0 %v3985
    %4082 = vmatprep.subr.bf16.mxu0 %v3990
    %4083 = vmatpush1.bf16.msra.mxu0 %v3989
    %4084 = vmatprep.subr.bf16.mxu0 %v3994
    %4085 = vmatpush1.bf16.msra.mxu0 %v3993
    %4086 = vmatprep.subr.bf16.mxu0 %v3998
    %4087 = vmatpush1.bf16.msra.mxu0 %v3997
    %4088 = vmatprep.subr.bf16.mxu0 0
    %4089 = vmatpush1.bf16.msra.mxu0 0
    %4090 = vmatprep.subr.bf16.mxu0 0
    %4091 = vmatpush1.bf16.msra.mxu0 0
    %4092 = vmatprep.subr.bf16.mxu0 0
    %4093 = vmatpush1.bf16.msra.mxu0 0
    %4094 = vmatprep.subr.bf16.mxu0 0
    %4095 = vmatpush1.bf16.msra.mxu0 0
    %4096 = vmatprep.subr.bf16.mxu0 0
    %4097 = vmatpush1.bf16.msra.mxu0 0
    %4098 = vmatprep.subr.bf16.mxu0 0
    %4099 = vmatpush1.bf16.msra.mxu0 0
    %4100 = vmatprep.subr.bf16.mxu0 0
    %4101 = vmatpush1.bf16.msra.mxu0 0
    %4102 = vmatprep.subr.bf16.mxu0 0
    %4103 = vmatpush1.bf16.msra.mxu0 0
    %4104 = vmatprep.mubr.bf16.mxu0 0
    %4105 = vmatmul.mubr.bf16.gmra.mrb[0].mxu0 %v3869
    %v4106 = vpop.f32.mrb[0].mxu0
    %v4107 = vadd.f32 0.0, %v4106
    %v4108 = vpop.f32.mrb[0].mxu0
    %v4109 = vadd.f32 0.0, %v4108
    %v4110 = vpop.f32.mrb[0].mxu0
    %v4111 = vpop.f32.mrb[0].mxu0
    %4112 = vdwg.mxu0
    %v4113 = vadd.f32 %v3795, %v4066
    %v4114 = vadd.f32 %v3796, %v4068
    %v4115 = vadd.f32 %v3797, %v4107
    %v4116 = vadd.f32 %v3798, %v4109
    %v4117 = vpack.c.bf16 %v2990, %v2990
    %v4118 = vld [vmem:[#allocation13] sm:$0xff]
    %v4119 = vld [vmem:[#allocation13 + $0x8] sm:$0xff]
    %v4120 = vld [vmem:[#allocation13 + $0x10] sm:$0xff]
    %v4121 = vld [vmem:[#allocation13 + $0x18] sm:$0xff]
    %v4122 = vld [vmem:[#allocation13 + $0x20] sm:$0xff]
    %v4123 = vld [vmem:[#allocation13 + $0x28] sm:$0xff]
    %v4124 = vld [vmem:[#allocation13 + $0x30] sm:$0xff]
    %v4125 = vld [vmem:[#allocation13 + $0x38] sm:$0xff]
    %v4126 = vld [vmem:[#allocation13 + $0x40] sm:$0xff]
    %v4127 = vld [vmem:[#allocation13 + $0x48] sm:$0xff]
    %v4128 = vld [vmem:[#allocation13 + $0x50] sm:$0xff]
    %v4129 = vld [vmem:[#allocation13 + $0x58] sm:$0xff]
    %v4130 = vld [vmem:[#allocation13 + $0x60] sm:$0xff]
    %v4131 = vld [vmem:[#allocation13 + $0x68] sm:$0xff]
    %v4132 = vld [vmem:[#allocation13 + $0x70] sm:$0xff]
    %v4133 = vld [vmem:[#allocation13 + $0x78] sm:$0xff]
    %v4134 = vld [vmem:[#allocation13 + $0x80] sm:$0xff]
    %v4135 = vld [vmem:[#allocation13 + $0x88] sm:$0xff]
    %v4136 = vld [vmem:[#allocation13 + $0x90] sm:$0xff]
    %v4137 = vld [vmem:[#allocation13 + $0x98] sm:$0xff]
    %v4138 = vld [vmem:[#allocation13 + $0xa0] sm:$0xff]
    %v4139 = vld [vmem:[#allocation13 + $0xa8] sm:$0xff]
    %v4140 = vld [vmem:[#allocation13 + $0xb0] sm:$0xff]
    %v4141 = vld [vmem:[#allocation13 + $0xb8] sm:$0xff]
    %v4142 = vld [vmem:[#allocation13 + $0xc0] sm:$0xff]
    %v4143 = vld [vmem:[#allocation13 + $0xc8] sm:$0xff]
    %v4144 = vld [vmem:[#allocation13 + $0xd0] sm:$0xff]
    %v4145 = vld [vmem:[#allocation13 + $0xd8] sm:$0xff]
    %v4146 = vld [vmem:[#allocation13 + $0xe0] sm:$0xff]
    %v4147 = vld [vmem:[#allocation13 + $0xe8] sm:$0xff]
    %v4148 = vld [vmem:[#allocation13 + $0xf0] sm:$0xff]
    %v4149 = vld [vmem:[#allocation13 + $0xf8] sm:$0xff]
    %v4182 = vunpack.c.l.b16 %v4118
    %v4183 = vunpack.c.h.b16 %v4118
    %v4184 = vunpack.c.l.b16 %v4119
    %v4185 = vunpack.c.h.b16 %v4119
    %v4186 = vunpack.c.l.b16 %v4120
    %v4187 = vunpack.c.h.b16 %v4120
    %v4188 = vunpack.c.l.b16 %v4121
    %v4189 = vunpack.c.h.b16 %v4121
    %v4190 = vunpack.c.l.b16 %v4122
    %v4191 = vunpack.c.h.b16 %v4122
    %v4192 = vunpack.c.l.b16 %v4123
    %v4193 = vunpack.c.h.b16 %v4123
    %v4194 = vunpack.c.l.b16 %v4124
    %v4195 = vunpack.c.h.b16 %v4124
    %v4196 = vunpack.c.l.b16 %v4125
    %v4197 = vunpack.c.h.b16 %v4125
    %v4198 = vunpack.c.l.b16 %v4126
    %v4199 = vunpack.c.h.b16 %v4126
    %v4200 = vunpack.c.l.b16 %v4127
    %v4201 = vunpack.c.h.b16 %v4127
    %v4202 = vunpack.c.l.b16 %v4128
    %v4203 = vunpack.c.h.b16 %v4128
    %v4204 = vunpack.c.l.b16 %v4129
    %v4205 = vunpack.c.h.b16 %v4129
    %v4206 = vunpack.c.l.b16 %v4130
    %v4207 = vunpack.c.h.b16 %v4130
    %v4208 = vunpack.c.l.b16 %v4131
    %v4209 = vunpack.c.h.b16 %v4131
    %v4210 = vunpack.c.l.b16 %v4132
    %v4211 = vunpack.c.h.b16 %v4132
    %v4212 = vunpack.c.l.b16 %v4133
    %v4213 = vunpack.c.h.b16 %v4133
    %v4214 = vunpack.c.l.b16 %v4134
    %v4215 = vunpack.c.h.b16 %v4134
    %v4216 = vunpack.c.l.b16 %v4135
    %v4217 = vunpack.c.h.b16 %v4135
    %v4218 = vunpack.c.l.b16 %v4136
    %v4219 = vunpack.c.h.b16 %v4136
    %v4220 = vunpack.c.l.b16 %v4137
    %v4221 = vunpack.c.h.b16 %v4137
    %v4222 = vunpack.c.l.b16 %v4138
    %v4223 = vunpack.c.h.b16 %v4138
    %v4224 = vunpack.c.l.b16 %v4139
    %v4225 = vunpack.c.h.b16 %v4139
    %v4226 = vunpack.c.l.b16 %v4140
    %v4227 = vunpack.c.h.b16 %v4140
    %v4228 = vunpack.c.l.b16 %v4141
    %v4229 = vunpack.c.h.b16 %v4141
    %v4230 = vunpack.c.l.b16 %v4142
    %v4231 = vunpack.c.h.b16 %v4142
    %v4232 = vunpack.c.l.b16 %v4143
    %v4233 = vunpack.c.h.b16 %v4143
    %v4234 = vunpack.c.l.b16 %v4144
    %v4235 = vunpack.c.h.b16 %v4144
    %v4236 = vunpack.c.l.b16 %v4145
    %v4237 = vunpack.c.h.b16 %v4145
    %v4238 = vunpack.c.l.b16 %v4146
    %v4239 = vunpack.c.h.b16 %v4146
    %v4240 = vunpack.c.l.b16 %v4147
    %v4241 = vunpack.c.h.b16 %v4147
    %v4242 = vunpack.c.l.b16 %v4148
    %v4243 = vunpack.c.h.b16 %v4148
    %v4244 = vunpack.c.l.b16 %v4149
    %v4245 = vunpack.c.h.b16 %v4149
    %v4246 = vpack.c.b16 %v4186, %v4182
    %v4247 = vpack.c.b16 %v4187, %v4183
    %v4248 = vpack.c.b16 %v4188, %v4184
    %v4249 = vpack.c.b16 %v4189, %v4185
    %v4250 = vpack.c.b16 %v4194, %v4190
    %v4251 = vpack.c.b16 %v4195, %v4191
    %v4252 = vpack.c.b16 %v4196, %v4192
    %v4253 = vpack.c.b16 %v4197, %v4193
    %v4254 = vpack.c.b16 %v4202, %v4198
    %v4255 = vpack.c.b16 %v4203, %v4199
    %v4256 = vpack.c.b16 %v4204, %v4200
    %v4257 = vpack.c.b16 %v4205, %v4201
    %v4258 = vpack.c.b16 %v4210, %v4206
    %v4259 = vpack.c.b16 %v4211, %v4207
    %v4260 = vpack.c.b16 %v4212, %v4208
    %v4261 = vpack.c.b16 %v4213, %v4209
    %v4262 = vpack.c.b16 %v4218, %v4214
    %v4263 = vpack.c.b16 %v4219, %v4215
    %v4264 = vpack.c.b16 %v4220, %v4216
    %v4265 = vpack.c.b16 %v4221, %v4217
    %v4266 = vpack.c.b16 %v4226, %v4222
    %v4267 = vpack.c.b16 %v4227, %v4223
    %v4268 = vpack.c.b16 %v4228, %v4224
    %v4269 = vpack.c.b16 %v4229, %v4225
    %v4270 = vpack.c.b16 %v4234, %v4230
    %v4271 = vpack.c.b16 %v4235, %v4231
    %v4272 = vpack.c.b16 %v4236, %v4232
    %v4273 = vpack.c.b16 %v4237, %v4233
    %v4274 = vpack.c.b16 %v4242, %v4238
    %v4275 = vpack.c.b16 %v4243, %v4239
    %v4276 = vpack.c.b16 %v4244, %v4240
    %v4277 = vpack.c.b16 %v4245, %v4241
    %4310 = vmatprep.subr.bf16.mxu0 %v4247
    %4311 = vmatpush1.bf16.msra.mxu0 %v4246
    %4312 = vmatprep.subr.bf16.mxu0 %v4251
    %4313 = vmatpush1.bf16.msra.mxu0 %v4250
    %4314 = vmatprep.subr.bf16.mxu0 %v4255
    %4315 = vmatpush1.bf16.msra.mxu0 %v4254
    %4316 = vmatprep.subr.bf16.mxu0 %v4259
    %4317 = vmatpush1.bf16.msra.mxu0 %v4258
    %4318 = vmatprep.subr.bf16.mxu0 %v4263
    %4319 = vmatpush1.bf16.msra.mxu0 %v4262
    %4320 = vmatprep.subr.bf16.mxu0 %v4267
    %4321 = vmatpush1.bf16.msra.mxu0 %v4266
    %4322 = vmatprep.subr.bf16.mxu0 %v4271
    %4323 = vmatpush1.bf16.msra.mxu0 %v4270
    %4324 = vmatprep.subr.bf16.mxu0 %v4275
    %4325 = vmatpush1.bf16.msra.mxu0 %v4274
    %4326 = vmatprep.subr.bf16.mxu0 0
    %4327 = vmatpush1.bf16.msra.mxu0 0
    %4328 = vmatprep.subr.bf16.mxu0 0
    %4329 = vmatpush1.bf16.msra.mxu0 0
    %4330 = vmatprep.subr.bf16.mxu0 0
    %4331 = vmatpush1.bf16.msra.mxu0 0
    %4332 = vmatprep.subr.bf16.mxu0 0
    %4333 = vmatpush1.bf16.msra.mxu0 0
    %4334 = vmatprep.subr.bf16.mxu0 0
    %4335 = vmatpush1.bf16.msra.mxu0 0
    %4336 = vmatprep.subr.bf16.mxu0 0
    %4337 = vmatpush1.bf16.msra.mxu0 0
    %4338 = vmatprep.subr.bf16.mxu0 0
    %4339 = vmatpush1.bf16.msra.mxu0 0
    %4340 = vmatprep.subr.bf16.mxu0 0
    %4341 = vmatpush1.bf16.msra.mxu0 0
    %4342 = vmatprep.mubr.bf16.mxu0 0
    %4343 = vmatmul.mubr.bf16.gmra.mrb[0].mxu0 %v4117
    %v4344 = vpop.f32.mrb[0].mxu0
    %v4345 = vadd.f32 0.0, %v4344
    %v4346 = vpop.f32.mrb[0].mxu0
    %v4347 = vadd.f32 0.0, %v4346
    %v4348 = vpop.f32.mrb[0].mxu0
    %v4349 = vpop.f32.mrb[0].mxu0
    %4350 = vdwg.mxu0
    %4351 = vmatprep.subr.bf16.mxu0 %v4249
    %4352 = vmatpush1.bf16.msra.mxu0 %v4248
    %4353 = vmatprep.subr.bf16.mxu0 %v4253
    %4354 = vmatpush1.bf16.msra.mxu0 %v4252
    %4355 = vmatprep.subr.bf16.mxu0 %v4257
    %4356 = vmatpush1.bf16.msra.mxu0 %v4256
    %4357 = vmatprep.subr.bf16.mxu0 %v4261
    %4358 = vmatpush1.bf16.msra.mxu0 %v4260
    %4359 = vmatprep.subr.bf16.mxu0 %v4265
    %4360 = vmatpush1.bf16.msra.mxu0 %v4264
    %4361 = vmatprep.subr.bf16.mxu0 %v4269
    %4362 = vmatpush1.bf16.msra.mxu0 %v4268
    %4363 = vmatprep.subr.bf16.mxu0 %v4273
    %4364 = vmatpush1.bf16.msra.mxu0 %v4272
    %4365 = vmatprep.subr.bf16.mxu0 %v4277
    %4366 = vmatpush1.bf16.msra.mxu0 %v4276
    %4367 = vmatprep.subr.bf16.mxu0 0
    %4368 = vmatpush1.bf16.msra.mxu0 0
    %4369 = vmatprep.subr.bf16.mxu0 0
    %4370 = vmatpush1.bf16.msra.mxu0 0
    %4371 = vmatprep.subr.bf16.mxu0 0
    %4372 = vmatpush1.bf16.msra.mxu0 0
    %4373 = vmatprep.subr.bf16.mxu0 0
    %4374 = vmatpush1.bf16.msra.mxu0 0
    %4375 = vmatprep.subr.bf16.mxu0 0
    %4376 = vmatpush1.bf16.msra.mxu0 0
    %4377 = vmatprep.subr.bf16.mxu0 0
    %4378 = vmatpush1.bf16.msra.mxu0 0
    %4379 = vmatprep.subr.bf16.mxu0 0
    %4380 = vmatpush1.bf16.msra.mxu0 0
    %4381 = vmatprep.subr.bf16.mxu0 0
    %4382 = vmatpush1.bf16.msra.mxu0 0
    %4383 = vmatprep.mubr.bf16.mxu0 0
    %4384 = vmatmul.mubr.bf16.gmra.mrb[0].mxu0 %v4117
    %v4385 = vpop.f32.mrb[0].mxu0
    %v4386 = vadd.f32 0.0, %v4385
    %v4387 = vpop.f32.mrb[0].mxu0
    %v4388 = vadd.f32 0.0, %v4387
    %v4389 = vpop.f32.mrb[0].mxu0
    %v4390 = vpop.f32.mrb[0].mxu0
    %4391 = vdwg.mxu0
    %v4392 = vadd.f32 %v4113, %v4345
    %v4393 = vadd.f32 %v4114, %v4347
    %v4394 = vadd.f32 %v4115, %v4386
    %v4395 = vadd.f32 %v4116, %v4388
    %v4396 = vxor.u32 %v4392, 2147483648
    %v4397 = vmul.f32 %v4396, 1.442695
    %v4398 = vpow.pop %v4397
    %v4399 = vadd.f32 %v4398, 1.0
    %v4400 = vrcp.pop %v4399
    %v4401 = vmul.f32 1.0, %v4400
    %v4402 = vxor.u32 %v4393, 2147483648
    %v4403 = vmul.f32 %v4402, 1.442695
    %v4404 = vpow.pop %v4403
    %v4405 = vadd.f32 %v4404, 1.0
    %v4406 = vrcp.pop %v4405
    %v4407 = vmul.f32 1.0, %v4406
    %v4408 = vtanh.pop %v4394
    %v4409 = vxor.u32 %v4395, 2147483648
    %v4410 = vmul.f32 %v4409, 1.442695
    %v4411 = vpow.pop %v4410
    %v4412 = vadd.f32 %v4411, 1.0
    %v4413 = vrcp.pop %v4412
    %v4414 = vmul.f32 1.0, %v4413
    %v4415 = vmul.f32 %v4407, %v2991
    %v4416 = vmul.f32 %v4401, %v4408
    %v4417 = vadd.f32 %v4415, %v4416
    %v4418 = vtanh.pop %v4417
    %v4419 = vmul.f32 %v4414, %v4418
    %4420 = vst [vmem:[#allocation2] sm:$0xff] %v4419
    %4421 = vst [vmem:[#allocation3] sm:$0xff] %v4417
    %v4422 = vpack.c.bf16 %v4419, %v4419
    %s4423 = scalar_lea.vmem [#allocation15], 8
    %4424 = vst [vmem:[%s4423] sm:$0xf] %v4422
    %v4425 = vld [vmem:[#allocation2] sm:$0xff]
    %v4426 = vld [vmem:[#allocation3] sm:$0xff]
    %v4427 = vld [vmem:[#allocation7] sm:$0xf]
    %v4428 = vld [vmem:[#allocation7 + $0x4] sm:$0xf]
    %v4429 = vld [vmem:[#allocation7 + $0x8] sm:$0xf]
    %v4430 = vld [vmem:[#allocation7 + $0xc] sm:$0xf]
    %v4431 = vld [vmem:[#allocation7 + $0x10] sm:$0xf]
    %v4432 = vld [vmem:[#allocation7 + $0x14] sm:$0xf]
    %v4433 = vld [vmem:[#allocation7 + $0x18] sm:$0xf]
    %v4434 = vld [vmem:[#allocation7 + $0x1c] sm:$0xf]
    %v4435 = vunpack.c.l.bf16 %v4427
    %v4436 = vunpack.c.l.bf16 %v4428
    %v4437 = vunpack.c.l.bf16 %v4429
    %v4438 = vunpack.c.l.bf16 %v4430
    %v4439 = vunpack.c.l.bf16 %v4431
    %v4440 = vunpack.c.l.bf16 %v4432
    %v4441 = vunpack.c.l.bf16 %v4433
    %v4442 = vunpack.c.l.bf16 %v4434
    %v4444 = vcombine.high %v4425, %v4425
    %v4446 = vunpack.c.l.s4 1966171168
    %v4447 = vunpack.c.0.s8 %v4446
    %v4448 = vlaneseq
    %v4449 = vshrl.u32 %v4448, 7
    %v4450 = vsub.s32 %v4447, %v4449
    %v4451 = vrot.slane %v4425, %v4450
    %v4453 = vunpack.c.l.s4 1966171168
    %v4454 = vunpack.c.0.s8 %v4453
    %v4455 = vlaneseq
    %v4456 = vshrl.u32 %v4455, 7
    %v4457 = vsub.s32 %v4454, %v4456
    %v4458 = vrot.slane %v4444, %v4457
    %v4459 = vcombine.high %v4451, %v4451
    %v4460 = vcombine.high %v4458, %v4458
    %v4462 = vunpack.c.l.s4 1966171168
    %v4463 = vunpack.c.0.s8 %v4462
    %v4464 = vlaneseq
    %v4465 = vshrl.u32 %v4464, 7
    %v4466 = vsub.s32 %v4463, %v4465
    %v4467 = vrot.slane %v4451, %v4466
    %v4469 = vunpack.c.l.s4 1966171168
    %v4470 = vunpack.c.0.s8 %v4469
    %v4471 = vlaneseq
    %v4472 = vshrl.u32 %v4471, 7
    %v4473 = vsub.s32 %v4470, %v4472
    %v4474 = vrot.slane %v4458, %v4473
    %v4476 = vunpack.c.l.s4 1966171168
    %v4477 = vunpack.c.0.s8 %v4476
    %v4478 = vlaneseq
    %v4479 = vshrl.u32 %v4478, 7
    %v4480 = vsub.s32 %v4477, %v4479
    %v4481 = vrot.slane %v4459, %v4480
    %v4483 = vunpack.c.l.s4 1966171168
    %v4484 = vunpack.c.0.s8 %v4483
    %v4485 = vlaneseq
    %v4486 = vshrl.u32 %v4485, 7
    %v4487 = vsub.s32 %v4484, %v4486
    %v4488 = vrot.slane %v4460, %v4487
    %v4489 = vcombine.high %v4467, %v4467
    %v4490 = vcombine.high %v4474, %v4474
    %v4491 = vcombine.high %v4481, %v4481
    %v4492 = vcombine.high %v4488, %v4488
    %v4493 = vlaneseq
    %v4494 = vshrl.u32 %v4493, 7
    %v4495 = vsub.s32 0, %v4494
    %v4496 = vrot.slane %v4467, %v4495
    %v4497 = vlaneseq
    %v4498 = vshrl.u32 %v4497, 7
    %v4499 = vsub.s32 0, %v4498
    %v4500 = vrot.slane %v4481, %v4499
    %v4501 = vlaneseq
    %v4502 = vshrl.u32 %v4501, 7
    %v4503 = vsub.s32 0, %v4502
    %v4504 = vrot.slane %v4489, %v4503
    %v4505 = vlaneseq
    %v4506 = vshrl.u32 %v4505, 7
    %v4507 = vsub.s32 0, %v4506
    %v4508 = vrot.slane %v4491, %v4507
    %v4509 = vlaneseq
    %v4510 = vshrl.u32 %v4509, 7
    %v4511 = vsub.s32 0, %v4510
    %v4512 = vrot.slane %v4474, %v4511
    %v4513 = vlaneseq
    %v4514 = vshrl.u32 %v4513, 7
    %v4515 = vsub.s32 0, %v4514
    %v4516 = vrot.slane %v4488, %v4515
    %v4517 = vlaneseq
    %v4518 = vshrl.u32 %v4517, 7
    %v4519 = vsub.s32 0, %v4518
    %v4520 = vrot.slane %v4490, %v4519
    %v4521 = vlaneseq
    %v4522 = vshrl.u32 %v4521, 7
    %v4523 = vsub.s32 0, %v4522
    %v4524 = vrot.slane %v4492, %v4523
    %v4533 = vmul.f32 %v4435, %v4496
    %v4534 = vmul.f32 %v4436, %v4500
    %v4535 = vmul.f32 %v4437, %v4504
    %v4536 = vmul.f32 %v4438, %v4508
    %v4537 = vmul.f32 %v4439, %v4512
    %v4538 = vmul.f32 %v4440, %v4516
    %v4539 = vmul.f32 %v4441, %v4520
    %v4540 = vmul.f32 %v4442, %v4524
    %4541 = vadd.xlane.f32.xlu0 %v4533
    %v4542 = vpop.xlane.xlu0 %4541
    %4543 = vadd.xlane.f32.xlu0 %v4534
    %v4544 = vpop.xlane.xlu0 %4543
    %4545 = vadd.xlane.f32.xlu0 %v4535
    %v4546 = vpop.xlane.xlu0 %4545
    %4547 = vadd.xlane.f32.xlu0 %v4536
    %v4548 = vpop.xlane.xlu0 %4547
    %4549 = vadd.xlane.f32.xlu0 %v4537
    %v4550 = vpop.xlane.xlu0 %4549
    %4551 = vadd.xlane.f32.xlu0 %v4538
    %v4552 = vpop.xlane.xlu0 %4551
    %4553 = vadd.xlane.f32.xlu0 %v4539
    %v4554 = vpop.xlane.xlu0 %4553
    %4555 = vadd.xlane.f32.xlu0 %v4540
    %v4556 = vpop.xlane.xlu0 %4555
    %v4565 = vlaneseq
    %v4566 = vshrl.u32 %v4565, 7
    %v4567 = vsub.s32 %v252, %v4566
    %v4568 = vrot.slane %v4542, %v4567
    %v4569 = vlaneseq
    %v4570 = vshrl.u32 %v4569, 7
    %v4571 = vsub.s32 %v252, %v4570
    %v4572 = vrot.slane %v4544, %v4571
    %v4573 = vlaneseq
    %v4574 = vshrl.u32 %v4573, 7
    %v4575 = vsub.s32 %v252, %v4574
    %v4576 = vrot.slane %v4546, %v4575
    %v4577 = vlaneseq
    %v4578 = vshrl.u32 %v4577, 7
    %v4579 = vsub.s32 %v252, %v4578
    %v4580 = vrot.slane %v4548, %v4579
    %v4581 = vlaneseq
    %v4582 = vshrl.u32 %v4581, 7
    %v4583 = vsub.s32 %v252, %v4582
    %v4584 = vrot.slane %v4550, %v4583
    %v4585 = vlaneseq
    %v4586 = vshrl.u32 %v4585, 7
    %v4587 = vsub.s32 %v252, %v4586
    %v4588 = vrot.slane %v4552, %v4587
    %v4589 = vlaneseq
    %v4590 = vshrl.u32 %v4589, 7
    %v4591 = vsub.s32 %v252, %v4590
    %v4592 = vrot.slane %v4554, %v4591
    %v4593 = vlaneseq
    %v4594 = vshrl.u32 %v4593, 7
    %v4595 = vsub.s32 %v252, %v4594
    %v4596 = vrot.slane %v4556, %v4595
    %v4597 = vsel %vm285, %v4572, %v4568
    %v4598 = vsel %vm287, %v4576, %v4597
    %v4599 = vsel %vm289, %v4580, %v4598
    %v4600 = vsel %vm291, %v4584, %v4599
    %v4601 = vsel %vm293, %v4588, %v4600
    %v4602 = vsel %vm295, %v4592, %v4601
    %v4603 = vsel %vm297, %v4596, %v4602
    %v4605 = vsel %vm300, %v4603, -inf
    %4606 = vmax.xlane.f32.xlu0 %v4605
    %v4607 = vpop.xlane.xlu0 %4606
    %v4609 = vlaneseq
    %v4610 = vshrl.u32 %v4609, 7
    %v4611 = vsub.s32 0, %v4610
    %v4612 = vrot.slane %v4607, %v4611
    %v4613 = vlaneseq
    %v4614 = vshrl.u32 %v4613, 7
    %v4615 = vsub.s32 1, %v4614
    %v4616 = vrot.slane %v4607, %v4615
    %v4617 = vlaneseq
    %v4618 = vshrl.u32 %v4617, 7
    %v4619 = vsub.s32 2, %v4618
    %v4620 = vrot.slane %v4607, %v4619
    %v4621 = vlaneseq
    %v4622 = vshrl.u32 %v4621, 7
    %v4623 = vsub.s32 3, %v4622
    %v4624 = vrot.slane %v4607, %v4623
    %v4625 = vlaneseq
    %v4626 = vshrl.u32 %v4625, 7
    %v4627 = vsub.s32 4, %v4626
    %v4628 = vrot.slane %v4607, %v4627
    %v4629 = vlaneseq
    %v4630 = vshrl.u32 %v4629, 7
    %v4631 = vsub.s32 5, %v4630
    %v4632 = vrot.slane %v4607, %v4631
    %v4633 = vlaneseq
    %v4634 = vshrl.u32 %v4633, 7
    %v4635 = vsub.s32 6, %v4634
    %v4636 = vrot.slane %v4607, %v4635
    %v4637 = vlaneseq
    %v4638 = vshrl.u32 %v4637, 7
    %v4639 = vsub.s32 7, %v4638
    %v4640 = vrot.slane %v4607, %v4639
    %v4649 = vsub.f32 %v4542, %v4612
    %v4650 = vsub.f32 %v4544, %v4616
    %v4651 = vsub.f32 %v4546, %v4620
    %v4652 = vsub.f32 %v4548, %v4624
    %v4653 = vsub.f32 %v4550, %v4628
    %v4654 = vsub.f32 %v4552, %v4632
    %v4655 = vsub.f32 %v4554, %v4636
    %v4656 = vsub.f32 %v4556, %v4640
    %v4657 = vmul.f32 %v4649, 1.442695
    %v4658 = vpow.pop %v4657
    %v4659 = vmul.f32 %v4650, 1.442695
    %v4660 = vpow.pop %v4659
    %v4661 = vmul.f32 %v4651, 1.442695
    %v4662 = vpow.pop %v4661
    %v4663 = vmul.f32 %v4652, 1.442695
    %v4664 = vpow.pop %v4663
    %v4665 = vmul.f32 %v4653, 1.442695
    %v4666 = vpow.pop %v4665
    %v4667 = vmul.f32 %v4654, 1.442695
    %v4668 = vpow.pop %v4667
    %v4669 = vmul.f32 %v4655, 1.442695
    %v4670 = vpow.pop %v4669
    %v4671 = vmul.f32 %v4656, 1.442695
    %v4672 = vpow.pop %v4671
    %4681 = vset.pattern.permute.xlu0 0
    %4682 = vperm.xlu0 %4681, %v4658
    %v4683 = vpop.permute.xlu0 %4682
    %4684 = vset.pattern.permute.xlu0 0
    %4685 = vperm.xlu0 %4684, %v4660
    %v4686 = vpop.permute.xlu0 %4685
    %4687 = vset.pattern.permute.xlu0 0
    %4688 = vperm.xlu0 %4687, %v4662
    %v4689 = vpop.permute.xlu0 %4688
    %4690 = vset.pattern.permute.xlu0 0
    %4691 = vperm.xlu0 %4690, %v4664
    %v4692 = vpop.permute.xlu0 %4691
    %4693 = vset.pattern.permute.xlu0 0
    %4694 = vperm.xlu0 %4693, %v4666
    %v4695 = vpop.permute.xlu0 %4694
    %4696 = vset.pattern.permute.xlu0 0
    %4697 = vperm.xlu0 %4696, %v4668
    %v4698 = vpop.permute.xlu0 %4697
    %4699 = vset.pattern.permute.xlu0 0
    %4700 = vperm.xlu0 %4699, %v4670
    %v4701 = vpop.permute.xlu0 %4700
    %4702 = vset.pattern.permute.xlu0 0
    %4703 = vperm.xlu0 %4702, %v4672
    %v4704 = vpop.permute.xlu0 %4703
    %v4705 = vlaneseq
    %v4706 = vshrl.u32 %v4705, 7
    %v4707 = vsub.s32 %v252, %v4706
    %v4708 = vrot.slane %v4683, %v4707
    %v4709 = vlaneseq
    %v4710 = vshrl.u32 %v4709, 7
    %v4711 = vsub.s32 %v252, %v4710
    %v4712 = vrot.slane %v4686, %v4711
    %v4713 = vlaneseq
    %v4714 = vshrl.u32 %v4713, 7
    %v4715 = vsub.s32 %v252, %v4714
    %v4716 = vrot.slane %v4689, %v4715
    %v4717 = vlaneseq
    %v4718 = vshrl.u32 %v4717, 7
    %v4719 = vsub.s32 %v252, %v4718
    %v4720 = vrot.slane %v4692, %v4719
    %v4721 = vlaneseq
    %v4722 = vshrl.u32 %v4721, 7
    %v4723 = vsub.s32 %v252, %v4722
    %v4724 = vrot.slane %v4695, %v4723
    %v4725 = vlaneseq
    %v4726 = vshrl.u32 %v4725, 7
    %v4727 = vsub.s32 %v252, %v4726
    %v4728 = vrot.slane %v4698, %v4727
    %v4729 = vlaneseq
    %v4730 = vshrl.u32 %v4729, 7
    %v4731 = vsub.s32 %v252, %v4730
    %v4732 = vrot.slane %v4701, %v4731
    %v4733 = vlaneseq
    %v4734 = vshrl.u32 %v4733, 7
    %v4735 = vsub.s32 %v252, %v4734
    %v4736 = vrot.slane %v4704, %v4735
    %v4737 = vsel %vm285, %v4712, %v4708
    %v4738 = vsel %vm287, %v4716, %v4737
    %v4739 = vsel %vm289, %v4720, %v4738
    %v4740 = vsel %vm291, %v4724, %v4739
    %v4741 = vsel %vm293, %v4728, %v4740
    %v4742 = vsel %vm295, %v4732, %v4741
    %v4743 = vsel %vm297, %v4736, %v4742
    %v4745 = vsel %vm300, %v4743, 0.0
    %4746 = vadd.xlane.f32.xlu0 %v4745
    %v4747 = vpop.xlane.xlu0 %4746
    %v4748 = vrcp.pop %v4747
    %v4749 = vpack.c.bf16 %v4658, %v4658
    %v4750 = vpack.c.bf16 %v4660, %v4660
    %v4751 = vpack.c.bf16 %v4662, %v4662
    %v4752 = vpack.c.bf16 %v4664, %v4664
    %v4753 = vpack.c.bf16 %v4666, %v4666
    %v4754 = vpack.c.bf16 %v4668, %v4668
    %v4755 = vpack.c.bf16 %v4670, %v4670
    %v4756 = vpack.c.bf16 %v4672, %v4672
    %v4758 = vunpack.c.l.b16 %v4749
    %4759 = vset.pattern.permute.xlu0 0
    %4760 = vperm.xlu0 %4759, %v4758
    %v4761 = vpop.permute.xlu0 %4760
    %v4762 = vlaneseq
    %v4763 = vshrl.u32 %v4762, 7
    %v4764 = vsub.s32 %v252, %v4763
    %v4765 = vrot.slane %v4761, %v4764
    %v4766 = vpack.c.b16 %v4765, %v4765
    %v4768 = vsel %vm300, %v4766, 0
    %v4771 = vsel %vm466, %v4427, 0
    %4773 = vmatprep.subr.bf16.mxu0 0
    %4774 = vmatpush1.bf16.msra.mxu0 %v4771
    %4775 = vmatprep.subr.bf16.mxu0 0
    %4776 = vmatpush1.bf16.msra.mxu0 0
    %4777 = vmatprep.subr.bf16.mxu0 0
    %4778 = vmatpush1.bf16.msra.mxu0 0
    %4779 = vmatprep.subr.bf16.mxu0 0
    %4780 = vmatpush1.bf16.msra.mxu0 0
    %4781 = vmatprep.subr.bf16.mxu0 0
    %4782 = vmatpush1.bf16.msra.mxu0 0
    %4783 = vmatprep.subr.bf16.mxu0 0
    %4784 = vmatpush1.bf16.msra.mxu0 0
    %4785 = vmatprep.subr.bf16.mxu0 0
    %4786 = vmatpush1.bf16.msra.mxu0 0
    %4787 = vmatprep.subr.bf16.mxu0 0
    %4788 = vmatpush1.bf16.msra.mxu0 0
    %4789 = vmatprep.subr.bf16.mxu0 0
    %4790 = vmatpush1.bf16.msra.mxu0 0
    %4791 = vmatprep.subr.bf16.mxu0 0
    %4792 = vmatpush1.bf16.msra.mxu0 0
    %4793 = vmatprep.subr.bf16.mxu0 0
    %4794 = vmatpush1.bf16.msra.mxu0 0
    %4795 = vmatprep.subr.bf16.mxu0 0
    %4796 = vmatpush1.bf16.msra.mxu0 0
    %4797 = vmatprep.subr.bf16.mxu0 0
    %4798 = vmatpush1.bf16.msra.mxu0 0
    %4799 = vmatprep.subr.bf16.mxu0 0
    %4800 = vmatpush1.bf16.msra.mxu0 0
    %4801 = vmatprep.subr.bf16.mxu0 0
    %4802 = vmatpush1.bf16.msra.mxu0 0
    %4803 = vmatprep.subr.bf16.mxu0 0
    %4804 = vmatpush1.bf16.msra.mxu0 0
    %4805 = vmatprep.mubr.bf16.mxu0 0
    %4806 = vmatmul.mubr.bf16.gmra.mrb[0].mxu0 %v4768
    %v4807 = vpop.f32.mrb[0].mxu0
    %v4808 = vadd.f32 0.0, %v4807
    %v4809 = vpop.f32.mrb[0].mxu0
    %v4810 = vpop.f32.mrb[0].mxu0
    %v4811 = vpop.f32.mrb[0].mxu0
    %4812 = vdwg.mxu0
    %v4814 = vunpack.c.l.b16 %v4750
    %4815 = vset.pattern.permute.xlu0 0
    %4816 = vperm.xlu0 %4815, %v4814
    %v4817 = vpop.permute.xlu0 %4816
    %v4818 = vlaneseq
    %v4819 = vshrl.u32 %v4818, 7
    %v4820 = vsub.s32 %v252, %v4819
    %v4821 = vrot.slane %v4817, %v4820
    %v4822 = vpack.c.b16 %v4821, %v4821
    %v4824 = vsel %vm300, %v4822, 0
    %v4827 = vsel %vm466, %v4428, 0
    %4829 = vmatprep.subr.bf16.mxu0 0
    %4830 = vmatpush1.bf16.msra.mxu0 %v4827
    %4831 = vmatprep.subr.bf16.mxu0 0
    %4832 = vmatpush1.bf16.msra.mxu0 0
    %4833 = vmatprep.subr.bf16.mxu0 0
    %4834 = vmatpush1.bf16.msra.mxu0 0
    %4835 = vmatprep.subr.bf16.mxu0 0
    %4836 = vmatpush1.bf16.msra.mxu0 0
    %4837 = vmatprep.subr.bf16.mxu0 0
    %4838 = vmatpush1.bf16.msra.mxu0 0
    %4839 = vmatprep.subr.bf16.mxu0 0
    %4840 = vmatpush1.bf16.msra.mxu0 0
    %4841 = vmatprep.subr.bf16.mxu0 0
    %4842 = vmatpush1.bf16.msra.mxu0 0
    %4843 = vmatprep.subr.bf16.mxu0 0
    %4844 = vmatpush1.bf16.msra.mxu0 0
    %4845 = vmatprep.subr.bf16.mxu0 0
    %4846 = vmatpush1.bf16.msra.mxu0 0
    %4847 = vmatprep.subr.bf16.mxu0 0
    %4848 = vmatpush1.bf16.msra.mxu0 0
    %4849 = vmatprep.subr.bf16.mxu0 0
    %4850 = vmatpush1.bf16.msra.mxu0 0
    %4851 = vmatprep.subr.bf16.mxu0 0
    %4852 = vmatpush1.bf16.msra.mxu0 0
    %4853 = vmatprep.subr.bf16.mxu0 0
    %4854 = vmatpush1.bf16.msra.mxu0 0
    %4855 = vmatprep.subr.bf16.mxu0 0
    %4856 = vmatpush1.bf16.msra.mxu0 0
    %4857 = vmatprep.subr.bf16.mxu0 0
    %4858 = vmatpush1.bf16.msra.mxu0 0
    %4859 = vmatprep.subr.bf16.mxu0 0
    %4860 = vmatpush1.bf16.msra.mxu0 0
    %4861 = vmatprep.mubr.bf16.mxu0 0
    %4862 = vmatmul.mubr.bf16.gmra.mrb[0].mxu0 %v4824
    %v4863 = vpop.f32.mrb[0].mxu0
    %v4864 = vadd.f32 0.0, %v4863
    %v4865 = vpop.f32.mrb[0].mxu0
    %v4866 = vpop.f32.mrb[0].mxu0
    %v4867 = vpop.f32.mrb[0].mxu0
    %4868 = vdwg.mxu0
    %v4870 = vunpack.c.l.b16 %v4751
    %4871 = vset.pattern.permute.xlu0 0
    %4872 = vperm.xlu0 %4871, %v4870
    %v4873 = vpop.permute.xlu0 %4872
    %v4874 = vlaneseq
    %v4875 = vshrl.u32 %v4874, 7
    %v4876 = vsub.s32 %v252, %v4875
    %v4877 = vrot.slane %v4873, %v4876
    %v4878 = vpack.c.b16 %v4877, %v4877
    %v4880 = vsel %vm300, %v4878, 0
    %v4883 = vsel %vm466, %v4429, 0
    %4885 = vmatprep.subr.bf16.mxu0 0
    %4886 = vmatpush1.bf16.msra.mxu0 %v4883
    %4887 = vmatprep.subr.bf16.mxu0 0
    %4888 = vmatpush1.bf16.msra.mxu0 0
    %4889 = vmatprep.subr.bf16.mxu0 0
    %4890 = vmatpush1.bf16.msra.mxu0 0
    %4891 = vmatprep.subr.bf16.mxu0 0
    %4892 = vmatpush1.bf16.msra.mxu0 0
    %4893 = vmatprep.subr.bf16.mxu0 0
    %4894 = vmatpush1.bf16.msra.mxu0 0
    %4895 = vmatprep.subr.bf16.mxu0 0
    %4896 = vmatpush1.bf16.msra.mxu0 0
    %4897 = vmatprep.subr.bf16.mxu0 0
    %4898 = vmatpush1.bf16.msra.mxu0 0
    %4899 = vmatprep.subr.bf16.mxu0 0
    %4900 = vmatpush1.bf16.msra.mxu0 0
    %4901 = vmatprep.subr.bf16.mxu0 0
    %4902 = vmatpush1.bf16.msra.mxu0 0
    %4903 = vmatprep.subr.bf16.mxu0 0
    %4904 = vmatpush1.bf16.msra.mxu0 0
    %4905 = vmatprep.subr.bf16.mxu0 0
    %4906 = vmatpush1.bf16.msra.mxu0 0
    %4907 = vmatprep.subr.bf16.mxu0 0
    %4908 = vmatpush1.bf16.msra.mxu0 0
    %4909 = vmatprep.subr.bf16.mxu0 0
    %4910 = vmatpush1.bf16.msra.mxu0 0
    %4911 = vmatprep.subr.bf16.mxu0 0
    %4912 = vmatpush1.bf16.msra.mxu0 0
    %4913 = vmatprep.subr.bf16.mxu0 0
    %4914 = vmatpush1.bf16.msra.mxu0 0
    %4915 = vmatprep.subr.bf16.mxu0 0
    %4916 = vmatpush1.bf16.msra.mxu0 0
    %4917 = vmatprep.mubr.bf16.mxu0 0
    %4918 = vmatmul.mubr.bf16.gmra.mrb[0].mxu0 %v4880
    %v4919 = vpop.f32.mrb[0].mxu0
    %v4920 = vadd.f32 0.0, %v4919
    %v4921 = vpop.f32.mrb[0].mxu0
    %v4922 = vpop.f32.mrb[0].mxu0
    %v4923 = vpop.f32.mrb[0].mxu0
    %4924 = vdwg.mxu0
    %v4926 = vunpack.c.l.b16 %v4752
    %4927 = vset.pattern.permute.xlu0 0
    %4928 = vperm.xlu0 %4927, %v4926
    %v4929 = vpop.permute.xlu0 %4928
    %v4930 = vlaneseq
    %v4931 = vshrl.u32 %v4930, 7
    %v4932 = vsub.s32 %v252, %v4931
    %v4933 = vrot.slane %v4929, %v4932
    %v4934 = vpack.c.b16 %v4933, %v4933
    %v4936 = vsel %vm300, %v4934, 0
    %v4939 = vsel %vm466, %v4430, 0
    %4941 = vmatprep.subr.bf16.mxu0 0
    %4942 = vmatpush1.bf16.msra.mxu0 %v4939
    %4943 = vmatprep.subr.bf16.mxu0 0
    %4944 = vmatpush1.bf16.msra.mxu0 0
    %4945 = vmatprep.subr.bf16.mxu0 0
    %4946 = vmatpush1.bf16.msra.mxu0 0
    %4947 = vmatprep.subr.bf16.mxu0 0
    %4948 = vmatpush1.bf16.msra.mxu0 0
    %4949 = vmatprep.subr.bf16.mxu0 0
    %4950 = vmatpush1.bf16.msra.mxu0 0
    %4951 = vmatprep.subr.bf16.mxu0 0
    %4952 = vmatpush1.bf16.msra.mxu0 0
    %4953 = vmatprep.subr.bf16.mxu0 0
    %4954 = vmatpush1.bf16.msra.mxu0 0
    %4955 = vmatprep.subr.bf16.mxu0 0
    %4956 = vmatpush1.bf16.msra.mxu0 0
    %4957 = vmatprep.subr.bf16.mxu0 0
    %4958 = vmatpush1.bf16.msra.mxu0 0
    %4959 = vmatprep.subr.bf16.mxu0 0
    %4960 = vmatpush1.bf16.msra.mxu0 0
    %4961 = vmatprep.subr.bf16.mxu0 0
    %4962 = vmatpush1.bf16.msra.mxu0 0
    %4963 = vmatprep.subr.bf16.mxu0 0
    %4964 = vmatpush1.bf16.msra.mxu0 0
    %4965 = vmatprep.subr.bf16.mxu0 0
    %4966 = vmatpush1.bf16.msra.mxu0 0
    %4967 = vmatprep.subr.bf16.mxu0 0
    %4968 = vmatpush1.bf16.msra.mxu0 0
    %4969 = vmatprep.subr.bf16.mxu0 0
    %4970 = vmatpush1.bf16.msra.mxu0 0
    %4971 = vmatprep.subr.bf16.mxu0 0
    %4972 = vmatpush1.bf16.msra.mxu0 0
    %4973 = vmatprep.mubr.bf16.mxu0 0
    %4974 = vmatmul.mubr.bf16.gmra.mrb[0].mxu0 %v4936
    %v4975 = vpop.f32.mrb[0].mxu0
    %v4976 = vadd.f32 0.0, %v4975
    %v4977 = vpop.f32.mrb[0].mxu0
    %v4978 = vpop.f32.mrb[0].mxu0
    %v4979 = vpop.f32.mrb[0].mxu0
    %4980 = vdwg.mxu0
    %v4982 = vunpack.c.l.b16 %v4753
    %4983 = vset.pattern.permute.xlu0 0
    %4984 = vperm.xlu0 %4983, %v4982
    %v4985 = vpop.permute.xlu0 %4984
    %v4986 = vlaneseq
    %v4987 = vshrl.u32 %v4986, 7
    %v4988 = vsub.s32 %v252, %v4987
    %v4989 = vrot.slane %v4985, %v4988
    %v4990 = vpack.c.b16 %v4989, %v4989
    %v4992 = vsel %vm300, %v4990, 0
    %v4995 = vsel %vm466, %v4431, 0
    %4997 = vmatprep.subr.bf16.mxu0 0
    %4998 = vmatpush1.bf16.msra.mxu0 %v4995
    %4999 = vmatprep.subr.bf16.mxu0 0
    %5000 = vmatpush1.bf16.msra.mxu0 0
    %5001 = vmatprep.subr.bf16.mxu0 0
    %5002 = vmatpush1.bf16.msra.mxu0 0
    %5003 = vmatprep.subr.bf16.mxu0 0
    %5004 = vmatpush1.bf16.msra.mxu0 0
    %5005 = vmatprep.subr.bf16.mxu0 0
    %5006 = vmatpush1.bf16.msra.mxu0 0
    %5007 = vmatprep.subr.bf16.mxu0 0
    %5008 = vmatpush1.bf16.msra.mxu0 0
    %5009 = vmatprep.subr.bf16.mxu0 0
    %5010 = vmatpush1.bf16.msra.mxu0 0
    %5011 = vmatprep.subr.bf16.mxu0 0
    %5012 = vmatpush1.bf16.msra.mxu0 0
    %5013 = vmatprep.subr.bf16.mxu0 0
    %5014 = vmatpush1.bf16.msra.mxu0 0
    %5015 = vmatprep.subr.bf16.mxu0 0
    %5016 = vmatpush1.bf16.msra.mxu0 0
    %5017 = vmatprep.subr.bf16.mxu0 0
    %5018 = vmatpush1.bf16.msra.mxu0 0
    %5019 = vmatprep.subr.bf16.mxu0 0
    %5020 = vmatpush1.bf16.msra.mxu0 0
    %5021 = vmatprep.subr.bf16.mxu0 0
    %5022 = vmatpush1.bf16.msra.mxu0 0
    %5023 = vmatprep.subr.bf16.mxu0 0
    %5024 = vmatpush1.bf16.msra.mxu0 0
    %5025 = vmatprep.subr.bf16.mxu0 0
    %5026 = vmatpush1.bf16.msra.mxu0 0
    %5027 = vmatprep.subr.bf16.mxu0 0
    %5028 = vmatpush1.bf16.msra.mxu0 0
    %5029 = vmatprep.mubr.bf16.mxu0 0
    %5030 = vmatmul.mubr.bf16.gmra.mrb[0].mxu0 %v4992
    %v5031 = vpop.f32.mrb[0].mxu0
    %v5032 = vadd.f32 0.0, %v5031
    %v5033 = vpop.f32.mrb[0].mxu0
    %v5034 = vpop.f32.mrb[0].mxu0
    %v5035 = vpop.f32.mrb[0].mxu0
    %5036 = vdwg.mxu0
    %v5038 = vunpack.c.l.b16 %v4754
    %5039 = vset.pattern.permute.xlu0 0
    %5040 = vperm.xlu0 %5039, %v5038
    %v5041 = vpop.permute.xlu0 %5040
    %v5042 = vlaneseq
    %v5043 = vshrl.u32 %v5042, 7
    %v5044 = vsub.s32 %v252, %v5043
    %v5045 = vrot.slane %v5041, %v5044
    %v5046 = vpack.c.b16 %v5045, %v5045
    %v5048 = vsel %vm300, %v5046, 0
    %v5051 = vsel %vm466, %v4432, 0
    %5053 = vmatprep.subr.bf16.mxu0 0
    %5054 = vmatpush1.bf16.msra.mxu0 %v5051
    %5055 = vmatprep.subr.bf16.mxu0 0
    %5056 = vmatpush1.bf16.msra.mxu0 0
    %5057 = vmatprep.subr.bf16.mxu0 0
    %5058 = vmatpush1.bf16.msra.mxu0 0
    %5059 = vmatprep.subr.bf16.mxu0 0
    %5060 = vmatpush1.bf16.msra.mxu0 0
    %5061 = vmatprep.subr.bf16.mxu0 0
    %5062 = vmatpush1.bf16.msra.mxu0 0
    %5063 = vmatprep.subr.bf16.mxu0 0
    %5064 = vmatpush1.bf16.msra.mxu0 0
    %5065 = vmatprep.subr.bf16.mxu0 0
    %5066 = vmatpush1.bf16.msra.mxu0 0
    %5067 = vmatprep.subr.bf16.mxu0 0
    %5068 = vmatpush1.bf16.msra.mxu0 0
    %5069 = vmatprep.subr.bf16.mxu0 0
    %5070 = vmatpush1.bf16.msra.mxu0 0
    %5071 = vmatprep.subr.bf16.mxu0 0
    %5072 = vmatpush1.bf16.msra.mxu0 0
    %5073 = vmatprep.subr.bf16.mxu0 0
    %5074 = vmatpush1.bf16.msra.mxu0 0
    %5075 = vmatprep.subr.bf16.mxu0 0
    %5076 = vmatpush1.bf16.msra.mxu0 0
    %5077 = vmatprep.subr.bf16.mxu0 0
    %5078 = vmatpush1.bf16.msra.mxu0 0
    %5079 = vmatprep.subr.bf16.mxu0 0
    %5080 = vmatpush1.bf16.msra.mxu0 0
    %5081 = vmatprep.subr.bf16.mxu0 0
    %5082 = vmatpush1.bf16.msra.mxu0 0
    %5083 = vmatprep.subr.bf16.mxu0 0
    %5084 = vmatpush1.bf16.msra.mxu0 0
    %5085 = vmatprep.mubr.bf16.mxu0 0
    %5086 = vmatmul.mubr.bf16.gmra.mrb[0].mxu0 %v5048
    %v5087 = vpop.f32.mrb[0].mxu0
    %v5088 = vadd.f32 0.0, %v5087
    %v5089 = vpop.f32.mrb[0].mxu0
    %v5090 = vpop.f32.mrb[0].mxu0
    %v5091 = vpop.f32.mrb[0].mxu0
    %5092 = vdwg.mxu0
    %v5094 = vunpack.c.l.b16 %v4755
    %5095 = vset.pattern.permute.xlu0 0
    %5096 = vperm.xlu0 %5095, %v5094
    %v5097 = vpop.permute.xlu0 %5096
    %v5098 = vlaneseq
    %v5099 = vshrl.u32 %v5098, 7
    %v5100 = vsub.s32 %v252, %v5099
    %v5101 = vrot.slane %v5097, %v5100
    %v5102 = vpack.c.b16 %v5101, %v5101
    %v5104 = vsel %vm300, %v5102, 0
    %v5107 = vsel %vm466, %v4433, 0
    %5109 = vmatprep.subr.bf16.mxu0 0
    %5110 = vmatpush1.bf16.msra.mxu0 %v5107
    %5111 = vmatprep.subr.bf16.mxu0 0
    %5112 = vmatpush1.bf16.msra.mxu0 0
    %5113 = vmatprep.subr.bf16.mxu0 0
    %5114 = vmatpush1.bf16.msra.mxu0 0
    %5115 = vmatprep.subr.bf16.mxu0 0
    %5116 = vmatpush1.bf16.msra.mxu0 0
    %5117 = vmatprep.subr.bf16.mxu0 0
    %5118 = vmatpush1.bf16.msra.mxu0 0
    %5119 = vmatprep.subr.bf16.mxu0 0
    %5120 = vmatpush1.bf16.msra.mxu0 0
    %5121 = vmatprep.subr.bf16.mxu0 0
    %5122 = vmatpush1.bf16.msra.mxu0 0
    %5123 = vmatprep.subr.bf16.mxu0 0
    %5124 = vmatpush1.bf16.msra.mxu0 0
    %5125 = vmatprep.subr.bf16.mxu0 0
    %5126 = vmatpush1.bf16.msra.mxu0 0
    %5127 = vmatprep.subr.bf16.mxu0 0
    %5128 = vmatpush1.bf16.msra.mxu0 0
    %5129 = vmatprep.subr.bf16.mxu0 0
    %5130 = vmatpush1.bf16.msra.mxu0 0
    %5131 = vmatprep.subr.bf16.mxu0 0
    %5132 = vmatpush1.bf16.msra.mxu0 0
    %5133 = vmatprep.subr.bf16.mxu0 0
    %5134 = vmatpush1.bf16.msra.mxu0 0
    %5135 = vmatprep.subr.bf16.mxu0 0
    %5136 = vmatpush1.bf16.msra.mxu0 0
    %5137 = vmatprep.subr.bf16.mxu0 0
    %5138 = vmatpush1.bf16.msra.mxu0 0
    %5139 = vmatprep.subr.bf16.mxu0 0
    %5140 = vmatpush1.bf16.msra.mxu0 0
    %5141 = vmatprep.mubr.bf16.mxu0 0
    %5142 = vmatmul.mubr.bf16.gmra.mrb[0].mxu0 %v5104
    %v5143 = vpop.f32.mrb[0].mxu0
    %v5144 = vadd.f32 0.0, %v5143
    %v5145 = vpop.f32.mrb[0].mxu0
    %v5146 = vpop.f32.mrb[0].mxu0
    %v5147 = vpop.f32.mrb[0].mxu0
    %5148 = vdwg.mxu0
    %v5150 = vunpack.c.l.b16 %v4756
    %5151 = vset.pattern.permute.xlu0 0
    %5152 = vperm.xlu0 %5151, %v5150
    %v5153 = vpop.permute.xlu0 %5152
    %v5154 = vlaneseq
    %v5155 = vshrl.u32 %v5154, 7
    %v5156 = vsub.s32 %v252, %v5155
    %v5157 = vrot.slane %v5153, %v5156
    %v5158 = vpack.c.b16 %v5157, %v5157
    %v5160 = vsel %vm300, %v5158, 0
    %v5163 = vsel %vm466, %v4434, 0
    %5165 = vmatprep.subr.bf16.mxu0 0
    %5166 = vmatpush1.bf16.msra.mxu0 %v5163
    %5167 = vmatprep.subr.bf16.mxu0 0
    %5168 = vmatpush1.bf16.msra.mxu0 0
    %5169 = vmatprep.subr.bf16.mxu0 0
    %5170 = vmatpush1.bf16.msra.mxu0 0
    %5171 = vmatprep.subr.bf16.mxu0 0
    %5172 = vmatpush1.bf16.msra.mxu0 0
    %5173 = vmatprep.subr.bf16.mxu0 0
    %5174 = vmatpush1.bf16.msra.mxu0 0
    %5175 = vmatprep.subr.bf16.mxu0 0
    %5176 = vmatpush1.bf16.msra.mxu0 0
    %5177 = vmatprep.subr.bf16.mxu0 0
    %5178 = vmatpush1.bf16.msra.mxu0 0
    %5179 = vmatprep.subr.bf16.mxu0 0
    %5180 = vmatpush1.bf16.msra.mxu0 0
    %5181 = vmatprep.subr.bf16.mxu0 0
    %5182 = vmatpush1.bf16.msra.mxu0 0
    %5183 = vmatprep.subr.bf16.mxu0 0
    %5184 = vmatpush1.bf16.msra.mxu0 0
    %5185 = vmatprep.subr.bf16.mxu0 0
    %5186 = vmatpush1.bf16.msra.mxu0 0
    %5187 = vmatprep.subr.bf16.mxu0 0
    %5188 = vmatpush1.bf16.msra.mxu0 0
    %5189 = vmatprep.subr.bf16.mxu0 0
    %5190 = vmatpush1.bf16.msra.mxu0 0
    %5191 = vmatprep.subr.bf16.mxu0 0
    %5192 = vmatpush1.bf16.msra.mxu0 0
    %5193 = vmatprep.subr.bf16.mxu0 0
    %5194 = vmatpush1.bf16.msra.mxu0 0
    %5195 = vmatprep.subr.bf16.mxu0 0
    %5196 = vmatpush1.bf16.msra.mxu0 0
    %5197 = vmatprep.mubr.bf16.mxu0 0
    %5198 = vmatmul.mubr.bf16.gmra.mrb[0].mxu0 %v5160
    %v5199 = vpop.f32.mrb[0].mxu0
    %v5200 = vadd.f32 0.0, %v5199
    %v5201 = vpop.f32.mrb[0].mxu0
    %v5202 = vpop.f32.mrb[0].mxu0
    %v5203 = vpop.f32.mrb[0].mxu0
    %5204 = vdwg.mxu0
    %v5206 = vrot.slane %v4748, 1
    %v5207 = vrot.slane %v4748, 2
    %v5208 = vrot.slane %v4748, 3
    %v5209 = vrot.slane %v4748, 4
    %v5210 = vrot.slane %v4748, 5
    %v5211 = vrot.slane %v4748, 6
    %v5212 = vrot.slane %v4748, 7
    %v5221 = vmul.f32 %v4808, %v4748
    %v5222 = vmul.f32 %v4864, %v5206
    %v5223 = vmul.f32 %v4920, %v5207
    %v5224 = vmul.f32 %v4976, %v5208
    %v5225 = vmul.f32 %v5032, %v5209
    %v5226 = vmul.f32 %v5088, %v5210
    %v5227 = vmul.f32 %v5144, %v5211
    %v5228 = vmul.f32 %v5200, %v5212
    %s5229 = scalar_lea.vmem [#allocation4], 96
    %v5230 = vld [vmem:[%s5229] sm:$0xff]
    %v5231 = vld [vmem:[%s5229 + $0x8] sm:$0xff]
    %v5232 = vld [vmem:[%s5229 + $0x10] sm:$0xff]
    %v5233 = vld [vmem:[%s5229 + $0x18] sm:$0xff]
    %v5234 = vpack.c.bf16 %v5221, %v5221
    %v5235 = vpack.c.bf16 %v5222, %v5222
    %v5236 = vpack.c.bf16 %v5223, %v5223
    %v5237 = vpack.c.bf16 %v5224, %v5224
    %v5238 = vpack.c.bf16 %v5225, %v5225
    %v5239 = vpack.c.bf16 %v5226, %v5226
    %v5240 = vpack.c.bf16 %v5227, %v5227
    %v5241 = vpack.c.bf16 %v5228, %v5228
    %v5242 = vld [vmem:[#allocation12] sm:$0xff]
    %v5243 = vld [vmem:[#allocation12 + $0x8] sm:$0xff]
    %v5244 = vld [vmem:[#allocation12 + $0x10] sm:$0xff]
    %v5245 = vld [vmem:[#allocation12 + $0x18] sm:$0xff]
    %v5246 = vld [vmem:[#allocation12 + $0x20] sm:$0xff]
    %v5247 = vld [vmem:[#allocation12 + $0x28] sm:$0xff]
    %v5248 = vld [vmem:[#allocation12 + $0x30] sm:$0xff]
    %v5249 = vld [vmem:[#allocation12 + $0x38] sm:$0xff]
    %v5250 = vld [vmem:[#allocation12 + $0x40] sm:$0xff]
    %v5251 = vld [vmem:[#allocation12 + $0x48] sm:$0xff]
    %v5252 = vld [vmem:[#allocation12 + $0x50] sm:$0xff]
    %v5253 = vld [vmem:[#allocation12 + $0x58] sm:$0xff]
    %v5254 = vld [vmem:[#allocation12 + $0x60] sm:$0xff]
    %v5255 = vld [vmem:[#allocation12 + $0x68] sm:$0xff]
    %v5256 = vld [vmem:[#allocation12 + $0x70] sm:$0xff]
    %v5257 = vld [vmem:[#allocation12 + $0x78] sm:$0xff]
    %v5258 = vld [vmem:[#allocation12 + $0x80] sm:$0xff]
    %v5259 = vld [vmem:[#allocation12 + $0x88] sm:$0xff]
    %v5260 = vld [vmem:[#allocation12 + $0x90] sm:$0xff]
    %v5261 = vld [vmem:[#allocation12 + $0x98] sm:$0xff]
    %v5262 = vld [vmem:[#allocation12 + $0xa0] sm:$0xff]
    %v5263 = vld [vmem:[#allocation12 + $0xa8] sm:$0xff]
    %v5264 = vld [vmem:[#allocation12 + $0xb0] sm:$0xff]
    %v5265 = vld [vmem:[#allocation12 + $0xb8] sm:$0xff]
    %v5266 = vld [vmem:[#allocation12 + $0xc0] sm:$0xff]
    %v5267 = vld [vmem:[#allocation12 + $0xc8] sm:$0xff]
    %v5268 = vld [vmem:[#allocation12 + $0xd0] sm:$0xff]
    %v5269 = vld [vmem:[#allocation12 + $0xd8] sm:$0xff]
    %v5270 = vld [vmem:[#allocation12 + $0xe0] sm:$0xff]
    %v5271 = vld [vmem:[#allocation12 + $0xe8] sm:$0xff]
    %v5272 = vld [vmem:[#allocation12 + $0xf0] sm:$0xff]
    %v5273 = vld [vmem:[#allocation12 + $0xf8] sm:$0xff]
    %v5282 = vunpack.c.l.b16 %v5234
    %v5283 = vunpack.c.l.b16 %v5235
    %v5284 = vunpack.c.l.b16 %v5236
    %v5285 = vunpack.c.l.b16 %v5237
    %v5286 = vunpack.c.l.b16 %v5238
    %v5287 = vunpack.c.l.b16 %v5239
    %v5288 = vunpack.c.l.b16 %v5240
    %v5289 = vunpack.c.l.b16 %v5241
    %v5290 = vrot.slane %v5283, 7
    %v5291 = vsel %vm285, %v5290, %v5282
    %v5292 = vrot.slane %v5284, 6
    %v5293 = vsel %vm287, %v5292, %v5291
    %v5294 = vrot.slane %v5285, 5
    %v5295 = vsel %vm289, %v5294, %v5293
    %v5296 = vrot.slane %v5286, 4
    %v5297 = vsel %vm291, %v5296, %v5295
    %v5298 = vrot.slane %v5287, 3
    %v5299 = vsel %vm293, %v5298, %v5297
    %v5300 = vrot.slane %v5288, 2
    %v5301 = vsel %vm295, %v5300, %v5299
    %v5302 = vrot.slane %v5289, 1
    %v5303 = vsel %vm297, %v5302, %v5301
    %v5304 = vpack.c.b16 %v5303, %v5303
    %v5338 = vunpack.c.l.b16 %v5242
    %v5339 = vunpack.c.h.b16 %v5242
    %v5340 = vunpack.c.l.b16 %v5243
    %v5341 = vunpack.c.h.b16 %v5243
    %v5342 = vunpack.c.l.b16 %v5244
    %v5343 = vunpack.c.h.b16 %v5244
    %v5344 = vunpack.c.l.b16 %v5245
    %v5345 = vunpack.c.h.b16 %v5245
    %v5346 = vunpack.c.l.b16 %v5246
    %v5347 = vunpack.c.h.b16 %v5246
    %v5348 = vunpack.c.l.b16 %v5247
    %v5349 = vunpack.c.h.b16 %v5247
    %v5350 = vunpack.c.l.b16 %v5248
    %v5351 = vunpack.c.h.b16 %v5248
    %v5352 = vunpack.c.l.b16 %v5249
    %v5353 = vunpack.c.h.b16 %v5249
    %v5354 = vunpack.c.l.b16 %v5250
    %v5355 = vunpack.c.h.b16 %v5250
    %v5356 = vunpack.c.l.b16 %v5251
    %v5357 = vunpack.c.h.b16 %v5251
    %v5358 = vunpack.c.l.b16 %v5252
    %v5359 = vunpack.c.h.b16 %v5252
    %v5360 = vunpack.c.l.b16 %v5253
    %v5361 = vunpack.c.h.b16 %v5253
    %v5362 = vunpack.c.l.b16 %v5254
    %v5363 = vunpack.c.h.b16 %v5254
    %v5364 = vunpack.c.l.b16 %v5255
    %v5365 = vunpack.c.h.b16 %v5255
    %v5366 = vunpack.c.l.b16 %v5256
    %v5367 = vunpack.c.h.b16 %v5256
    %v5368 = vunpack.c.l.b16 %v5257
    %v5369 = vunpack.c.h.b16 %v5257
    %v5370 = vunpack.c.l.b16 %v5258
    %v5371 = vunpack.c.h.b16 %v5258
    %v5372 = vunpack.c.l.b16 %v5259
    %v5373 = vunpack.c.h.b16 %v5259
    %v5374 = vunpack.c.l.b16 %v5260
    %v5375 = vunpack.c.h.b16 %v5260
    %v5376 = vunpack.c.l.b16 %v5261
    %v5377 = vunpack.c.h.b16 %v5261
    %v5378 = vunpack.c.l.b16 %v5262
    %v5379 = vunpack.c.h.b16 %v5262
    %v5380 = vunpack.c.l.b16 %v5263
    %v5381 = vunpack.c.h.b16 %v5263
    %v5382 = vunpack.c.l.b16 %v5264
    %v5383 = vunpack.c.h.b16 %v5264
    %v5384 = vunpack.c.l.b16 %v5265
    %v5385 = vunpack.c.h.b16 %v5265
    %v5386 = vunpack.c.l.b16 %v5266
    %v5387 = vunpack.c.h.b16 %v5266
    %v5388 = vunpack.c.l.b16 %v5267
    %v5389 = vunpack.c.h.b16 %v5267
    %v5390 = vunpack.c.l.b16 %v5268
    %v5391 = vunpack.c.h.b16 %v5268
    %v5392 = vunpack.c.l.b16 %v5269
    %v5393 = vunpack.c.h.b16 %v5269
    %v5394 = vunpack.c.l.b16 %v5270
    %v5395 = vunpack.c.h.b16 %v5270
    %v5396 = vunpack.c.l.b16 %v5271
    %v5397 = vunpack.c.h.b16 %v5271
    %v5398 = vunpack.c.l.b16 %v5272
    %v5399 = vunpack.c.h.b16 %v5272
    %v5400 = vunpack.c.l.b16 %v5273
    %v5401 = vunpack.c.h.b16 %v5273
    %v5402 = vpack.c.b16 %v5342, %v5338
    %v5403 = vpack.c.b16 %v5343, %v5339
    %v5404 = vpack.c.b16 %v5344, %v5340
    %v5405 = vpack.c.b16 %v5345, %v5341
    %v5406 = vpack.c.b16 %v5350, %v5346
    %v5407 = vpack.c.b16 %v5351, %v5347
    %v5408 = vpack.c.b16 %v5352, %v5348
    %v5409 = vpack.c.b16 %v5353, %v5349
    %v5410 = vpack.c.b16 %v5358, %v5354
    %v5411 = vpack.c.b16 %v5359, %v5355
    %v5412 = vpack.c.b16 %v5360, %v5356
    %v5413 = vpack.c.b16 %v5361, %v5357
    %v5414 = vpack.c.b16 %v5366, %v5362
    %v5415 = vpack.c.b16 %v5367, %v5363
    %v5416 = vpack.c.b16 %v5368, %v5364
    %v5417 = vpack.c.b16 %v5369, %v5365
    %v5418 = vpack.c.b16 %v5374, %v5370
    %v5419 = vpack.c.b16 %v5375, %v5371
    %v5420 = vpack.c.b16 %v5376, %v5372
    %v5421 = vpack.c.b16 %v5377, %v5373
    %v5422 = vpack.c.b16 %v5382, %v5378
    %v5423 = vpack.c.b16 %v5383, %v5379
    %v5424 = vpack.c.b16 %v5384, %v5380
    %v5425 = vpack.c.b16 %v5385, %v5381
    %v5426 = vpack.c.b16 %v5390, %v5386
    %v5427 = vpack.c.b16 %v5391, %v5387
    %v5428 = vpack.c.b16 %v5392, %v5388
    %v5429 = vpack.c.b16 %v5393, %v5389
    %v5430 = vpack.c.b16 %v5398, %v5394
    %v5431 = vpack.c.b16 %v5399, %v5395
    %v5432 = vpack.c.b16 %v5400, %v5396
    %v5433 = vpack.c.b16 %v5401, %v5397
    %5466 = vmatprep.subr.bf16.mxu0 %v5403
    %5467 = vmatpush1.bf16.msra.mxu0 %v5402
    %5468 = vmatprep.subr.bf16.mxu0 %v5407
    %5469 = vmatpush1.bf16.msra.mxu0 %v5406
    %5470 = vmatprep.subr.bf16.mxu0 %v5411
    %5471 = vmatpush1.bf16.msra.mxu0 %v5410
    %5472 = vmatprep.subr.bf16.mxu0 %v5415
    %5473 = vmatpush1.bf16.msra.mxu0 %v5414
    %5474 = vmatprep.subr.bf16.mxu0 %v5419
    %5475 = vmatpush1.bf16.msra.mxu0 %v5418
    %5476 = vmatprep.subr.bf16.mxu0 %v5423
    %5477 = vmatpush1.bf16.msra.mxu0 %v5422
    %5478 = vmatprep.subr.bf16.mxu0 %v5427
    %5479 = vmatpush1.bf16.msra.mxu0 %v5426
    %5480 = vmatprep.subr.bf16.mxu0 %v5431
    %5481 = vmatpush1.bf16.msra.mxu0 %v5430
    %5482 = vmatprep.subr.bf16.mxu0 0
    %5483 = vmatpush1.bf16.msra.mxu0 0
    %5484 = vmatprep.subr.bf16.mxu0 0
    %5485 = vmatpush1.bf16.msra.mxu0 0
    %5486 = vmatprep.subr.bf16.mxu0 0
    %5487 = vmatpush1.bf16.msra.mxu0 0
    %5488 = vmatprep.subr.bf16.mxu0 0
    %5489 = vmatpush1.bf16.msra.mxu0 0
    %5490 = vmatprep.subr.bf16.mxu0 0
    %5491 = vmatpush1.bf16.msra.mxu0 0
    %5492 = vmatprep.subr.bf16.mxu0 0
    %5493 = vmatpush1.bf16.msra.mxu0 0
    %5494 = vmatprep.subr.bf16.mxu0 0
    %5495 = vmatpush1.bf16.msra.mxu0 0
    %5496 = vmatprep.subr.bf16.mxu0 0
    %5497 = vmatpush1.bf16.msra.mxu0 0
    %5498 = vmatprep.mubr.bf16.mxu0 0
    %5499 = vmatmul.mubr.bf16.gmra.mrb[0].mxu0 %v5304
    %v5500 = vpop.f32.mrb[0].mxu0
    %v5501 = vadd.f32 0.0, %v5500
    %v5502 = vpop.f32.mrb[0].mxu0
    %v5503 = vadd.f32 0.0, %v5502
    %v5504 = vpop.f32.mrb[0].mxu0
    %v5505 = vpop.f32.mrb[0].mxu0
    %5506 = vdwg.mxu0
    %5507 = vmatprep.subr.bf16.mxu0 %v5405
    %5508 = vmatpush1.bf16.msra.mxu0 %v5404
    %5509 = vmatprep.subr.bf16.mxu0 %v5409
    %5510 = vmatpush1.bf16.msra.mxu0 %v5408
    %5511 = vmatprep.subr.bf16.mxu0 %v5413
    %5512 = vmatpush1.bf16.msra.mxu0 %v5412
    %5513 = vmatprep.subr.bf16.mxu0 %v5417
    %5514 = vmatpush1.bf16.msra.mxu0 %v5416
    %5515 = vmatprep.subr.bf16.mxu0 %v5421
    %5516 = vmatpush1.bf16.msra.mxu0 %v5420
    %5517 = vmatprep.subr.bf16.mxu0 %v5425
    %5518 = vmatpush1.bf16.msra.mxu0 %v5424
    %5519 = vmatprep.subr.bf16.mxu0 %v5429
    %5520 = vmatpush1.bf16.msra.mxu0 %v5428
    %5521 = vmatprep.subr.bf16.mxu0 %v5433
    %5522 = vmatpush1.bf16.msra.mxu0 %v5432
    %5523 = vmatprep.subr.bf16.mxu0 0
    %5524 = vmatpush1.bf16.msra.mxu0 0
    %5525 = vmatprep.subr.bf16.mxu0 0
    %5526 = vmatpush1.bf16.msra.mxu0 0
    %5527 = vmatprep.subr.bf16.mxu0 0
    %5528 = vmatpush1.bf16.msra.mxu0 0
    %5529 = vmatprep.subr.bf16.mxu0 0
    %5530 = vmatpush1.bf16.msra.mxu0 0
    %5531 = vmatprep.subr.bf16.mxu0 0
    %5532 = vmatpush1.bf16.msra.mxu0 0
    %5533 = vmatprep.subr.bf16.mxu0 0
    %5534 = vmatpush1.bf16.msra.mxu0 0
    %5535 = vmatprep.subr.bf16.mxu0 0
    %5536 = vmatpush1.bf16.msra.mxu0 0
    %5537 = vmatprep.subr.bf16.mxu0 0
    %5538 = vmatpush1.bf16.msra.mxu0 0
    %5539 = vmatprep.mubr.bf16.mxu0 0
    %5540 = vmatmul.mubr.bf16.gmra.mrb[0].mxu0 %v5304
    %v5541 = vpop.f32.mrb[0].mxu0
    %v5542 = vadd.f32 0.0, %v5541
    %v5543 = vpop.f32.mrb[0].mxu0
    %v5544 = vadd.f32 0.0, %v5543
    %v5545 = vpop.f32.mrb[0].mxu0
    %v5546 = vpop.f32.mrb[0].mxu0
    %5547 = vdwg.mxu0
    %v5548 = vadd.f32 %v5230, %v5501
    %v5549 = vadd.f32 %v5231, %v5503
    %v5550 = vadd.f32 %v5232, %v5542
    %v5551 = vadd.f32 %v5233, %v5544
    %v5552 = vpack.c.bf16 %v4425, %v4425
    %v5553 = vld [vmem:[#allocation13] sm:$0xff]
    %v5554 = vld [vmem:[#allocation13 + $0x8] sm:$0xff]
    %v5555 = vld [vmem:[#allocation13 + $0x10] sm:$0xff]
    %v5556 = vld [vmem:[#allocation13 + $0x18] sm:$0xff]
    %v5557 = vld [vmem:[#allocation13 + $0x20] sm:$0xff]
    %v5558 = vld [vmem:[#allocation13 + $0x28] sm:$0xff]
    %v5559 = vld [vmem:[#allocation13 + $0x30] sm:$0xff]
    %v5560 = vld [vmem:[#allocation13 + $0x38] sm:$0xff]
    %v5561 = vld [vmem:[#allocation13 + $0x40] sm:$0xff]
    %v5562 = vld [vmem:[#allocation13 + $0x48] sm:$0xff]
    %v5563 = vld [vmem:[#allocation13 + $0x50] sm:$0xff]
    %v5564 = vld [vmem:[#allocation13 + $0x58] sm:$0xff]
    %v5565 = vld [vmem:[#allocation13 + $0x60] sm:$0xff]
    %v5566 = vld [vmem:[#allocation13 + $0x68] sm:$0xff]
    %v5567 = vld [vmem:[#allocation13 + $0x70] sm:$0xff]
    %v5568 = vld [vmem:[#allocation13 + $0x78] sm:$0xff]
    %v5569 = vld [vmem:[#allocation13 + $0x80] sm:$0xff]
    %v5570 = vld [vmem:[#allocation13 + $0x88] sm:$0xff]
    %v5571 = vld [vmem:[#allocation13 + $0x90] sm:$0xff]
    %v5572 = vld [vmem:[#allocation13 + $0x98] sm:$0xff]
    %v5573 = vld [vmem:[#allocation13 + $0xa0] sm:$0xff]
    %v5574 = vld [vmem:[#allocation13 + $0xa8] sm:$0xff]
    %v5575 = vld [vmem:[#allocation13 + $0xb0] sm:$0xff]
    %v5576 = vld [vmem:[#allocation13 + $0xb8] sm:$0xff]
    %v5577 = vld [vmem:[#allocation13 + $0xc0] sm:$0xff]
    %v5578 = vld [vmem:[#allocation13 + $0xc8] sm:$0xff]
    %v5579 = vld [vmem:[#allocation13 + $0xd0] sm:$0xff]
    %v5580 = vld [vmem:[#allocation13 + $0xd8] sm:$0xff]
    %v5581 = vld [vmem:[#allocation13 + $0xe0] sm:$0xff]
    %v5582 = vld [vmem:[#allocation13 + $0xe8] sm:$0xff]
    %v5583 = vld [vmem:[#allocation13 + $0xf0] sm:$0xff]
    %v5584 = vld [vmem:[#allocation13 + $0xf8] sm:$0xff]
    %v5617 = vunpack.c.l.b16 %v5553
    %v5618 = vunpack.c.h.b16 %v5553
    %v5619 = vunpack.c.l.b16 %v5554
    %v5620 = vunpack.c.h.b16 %v5554
    %v5621 = vunpack.c.l.b16 %v5555
    %v5622 = vunpack.c.h.b16 %v5555
    %v5623 = vunpack.c.l.b16 %v5556
    %v5624 = vunpack.c.h.b16 %v5556
    %v5625 = vunpack.c.l.b16 %v5557
    %v5626 = vunpack.c.h.b16 %v5557
    %v5627 = vunpack.c.l.b16 %v5558
    %v5628 = vunpack.c.h.b16 %v5558
    %v5629 = vunpack.c.l.b16 %v5559
    %v5630 = vunpack.c.h.b16 %v5559
    %v5631 = vunpack.c.l.b16 %v5560
    %v5632 = vunpack.c.h.b16 %v5560
    %v5633 = vunpack.c.l.b16 %v5561
    %v5634 = vunpack.c.h.b16 %v5561
    %v5635 = vunpack.c.l.b16 %v5562
    %v5636 = vunpack.c.h.b16 %v5562
    %v5637 = vunpack.c.l.b16 %v5563
    %v5638 = vunpack.c.h.b16 %v5563
    %v5639 = vunpack.c.l.b16 %v5564
    %v5640 = vunpack.c.h.b16 %v5564
    %v5641 = vunpack.c.l.b16 %v5565
    %v5642 = vunpack.c.h.b16 %v5565
    %v5643 = vunpack.c.l.b16 %v5566
    %v5644 = vunpack.c.h.b16 %v5566
    %v5645 = vunpack.c.l.b16 %v5567
    %v5646 = vunpack.c.h.b16 %v5567
    %v5647 = vunpack.c.l.b16 %v5568
    %v5648 = vunpack.c.h.b16 %v5568
    %v5649 = vunpack.c.l.b16 %v5569
    %v5650 = vunpack.c.h.b16 %v5569
    %v5651 = vunpack.c.l.b16 %v5570
    %v5652 = vunpack.c.h.b16 %v5570
    %v5653 = vunpack.c.l.b16 %v5571
    %v5654 = vunpack.c.h.b16 %v5571
    %v5655 = vunpack.c.l.b16 %v5572
    %v5656 = vunpack.c.h.b16 %v5572
    %v5657 = vunpack.c.l.b16 %v5573
    %v5658 = vunpack.c.h.b16 %v5573
    %v5659 = vunpack.c.l.b16 %v5574
    %v5660 = vunpack.c.h.b16 %v5574
    %v5661 = vunpack.c.l.b16 %v5575
    %v5662 = vunpack.c.h.b16 %v5575
    %v5663 = vunpack.c.l.b16 %v5576
    %v5664 = vunpack.c.h.b16 %v5576
    %v5665 = vunpack.c.l.b16 %v5577
    %v5666 = vunpack.c.h.b16 %v5577
    %v5667 = vunpack.c.l.b16 %v5578
    %v5668 = vunpack.c.h.b16 %v5578
    %v5669 = vunpack.c.l.b16 %v5579
    %v5670 = vunpack.c.h.b16 %v5579
    %v5671 = vunpack.c.l.b16 %v5580
    %v5672 = vunpack.c.h.b16 %v5580
    %v5673 = vunpack.c.l.b16 %v5581
    %v5674 = vunpack.c.h.b16 %v5581
    %v5675 = vunpack.c.l.b16 %v5582
    %v5676 = vunpack.c.h.b16 %v5582
    %v5677 = vunpack.c.l.b16 %v5583
    %v5678 = vunpack.c.h.b16 %v5583
    %v5679 = vunpack.c.l.b16 %v5584
    %v5680 = vunpack.c.h.b16 %v5584
    %v5681 = vpack.c.b16 %v5621, %v5617
    %v5682 = vpack.c.b16 %v5622, %v5618
    %v5683 = vpack.c.b16 %v5623, %v5619
    %v5684 = vpack.c.b16 %v5624, %v5620
    %v5685 = vpack.c.b16 %v5629, %v5625
    %v5686 = vpack.c.b16 %v5630, %v5626
    %v5687 = vpack.c.b16 %v5631, %v5627
    %v5688 = vpack.c.b16 %v5632, %v5628
    %v5689 = vpack.c.b16 %v5637, %v5633
    %v5690 = vpack.c.b16 %v5638, %v5634
    %v5691 = vpack.c.b16 %v5639, %v5635
    %v5692 = vpack.c.b16 %v5640, %v5636
    %v5693 = vpack.c.b16 %v5645, %v5641
    %v5694 = vpack.c.b16 %v5646, %v5642
    %v5695 = vpack.c.b16 %v5647, %v5643
    %v5696 = vpack.c.b16 %v5648, %v5644
    %v5697 = vpack.c.b16 %v5653, %v5649
    %v5698 = vpack.c.b16 %v5654, %v5650
    %v5699 = vpack.c.b16 %v5655, %v5651
    %v5700 = vpack.c.b16 %v5656, %v5652
    %v5701 = vpack.c.b16 %v5661, %v5657
    %v5702 = vpack.c.b16 %v5662, %v5658
    %v5703 = vpack.c.b16 %v5663, %v5659
    %v5704 = vpack.c.b16 %v5664, %v5660
    %v5705 = vpack.c.b16 %v5669, %v5665
    %v5706 = vpack.c.b16 %v5670, %v5666
    %v5707 = vpack.c.b16 %v5671, %v5667
    %v5708 = vpack.c.b16 %v5672, %v5668
    %v5709 = vpack.c.b16 %v5677, %v5673
    %v5710 = vpack.c.b16 %v5678, %v5674
    %v5711 = vpack.c.b16 %v5679, %v5675
    %v5712 = vpack.c.b16 %v5680, %v5676
    %5745 = vmatprep.subr.bf16.mxu0 %v5682
    %5746 = vmatpush1.bf16.msra.mxu0 %v5681
    %5747 = vmatprep.subr.bf16.mxu0 %v5686
    %5748 = vmatpush1.bf16.msra.mxu0 %v5685
    %5749 = vmatprep.subr.bf16.mxu0 %v5690
    %5750 = vmatpush1.bf16.msra.mxu0 %v5689
    %5751 = vmatprep.subr.bf16.mxu0 %v5694
    %5752 = vmatpush1.bf16.msra.mxu0 %v5693
    %5753 = vmatprep.subr.bf16.mxu0 %v5698
    %5754 = vmatpush1.bf16.msra.mxu0 %v5697
    %5755 = vmatprep.subr.bf16.mxu0 %v5702
    %5756 = vmatpush1.bf16.msra.mxu0 %v5701
    %5757 = vmatprep.subr.bf16.mxu0 %v5706
    %5758 = vmatpush1.bf16.msra.mxu0 %v5705
    %5759 = vmatprep.subr.bf16.mxu0 %v5710
    %5760 = vmatpush1.bf16.msra.mxu0 %v5709
    %5761 = vmatprep.subr.bf16.mxu0 0
    %5762 = vmatpush1.bf16.msra.mxu0 0
    %5763 = vmatprep.subr.bf16.mxu0 0
    %5764 = vmatpush1.bf16.msra.mxu0 0
    %5765 = vmatprep.subr.bf16.mxu0 0
    %5766 = vmatpush1.bf16.msra.mxu0 0
    %5767 = vmatprep.subr.bf16.mxu0 0
    %5768 = vmatpush1.bf16.msra.mxu0 0
    %5769 = vmatprep.subr.bf16.mxu0 0
    %5770 = vmatpush1.bf16.msra.mxu0 0
    %5771 = vmatprep.subr.bf16.mxu0 0
    %5772 = vmatpush1.bf16.msra.mxu0 0
    %5773 = vmatprep.subr.bf16.mxu0 0
    %5774 = vmatpush1.bf16.msra.mxu0 0
    %5775 = vmatprep.subr.bf16.mxu0 0
    %5776 = vmatpush1.bf16.msra.mxu0 0
    %5777 = vmatprep.mubr.bf16.mxu0 0
    %5778 = vmatmul.mubr.bf16.gmra.mrb[0].mxu0 %v5552
    %v5779 = vpop.f32.mrb[0].mxu0
    %v5780 = vadd.f32 0.0, %v5779
    %v5781 = vpop.f32.mrb[0].mxu0
    %v5782 = vadd.f32 0.0, %v5781
    %v5783 = vpop.f32.mrb[0].mxu0
    %v5784 = vpop.f32.mrb[0].mxu0
    %5785 = vdwg.mxu0
    %5786 = vmatprep.subr.bf16.mxu0 %v5684
    %5787 = vmatpush1.bf16.msra.mxu0 %v5683
    %5788 = vmatprep.subr.bf16.mxu0 %v5688
    %5789 = vmatpush1.bf16.msra.mxu0 %v5687
    %5790 = vmatprep.subr.bf16.mxu0 %v5692
    %5791 = vmatpush1.bf16.msra.mxu0 %v5691
    %5792 = vmatprep.subr.bf16.mxu0 %v5696
    %5793 = vmatpush1.bf16.msra.mxu0 %v5695
    %5794 = vmatprep.subr.bf16.mxu0 %v5700
    %5795 = vmatpush1.bf16.msra.mxu0 %v5699
    %5796 = vmatprep.subr.bf16.mxu0 %v5704
    %5797 = vmatpush1.bf16.msra.mxu0 %v5703
    %5798 = vmatprep.subr.bf16.mxu0 %v5708
    %5799 = vmatpush1.bf16.msra.mxu0 %v5707
    %5800 = vmatprep.subr.bf16.mxu0 %v5712
    %5801 = vmatpush1.bf16.msra.mxu0 %v5711
    %5802 = vmatprep.subr.bf16.mxu0 0
    %5803 = vmatpush1.bf16.msra.mxu0 0
    %5804 = vmatprep.subr.bf16.mxu0 0
    %5805 = vmatpush1.bf16.msra.mxu0 0
    %5806 = vmatprep.subr.bf16.mxu0 0
    %5807 = vmatpush1.bf16.msra.mxu0 0
    %5808 = vmatprep.subr.bf16.mxu0 0
    %5809 = vmatpush1.bf16.msra.mxu0 0
    %5810 = vmatprep.subr.bf16.mxu0 0
    %5811 = vmatpush1.bf16.msra.mxu0 0
    %5812 = vmatprep.subr.bf16.mxu0 0
    %5813 = vmatpush1.bf16.msra.mxu0 0
    %5814 = vmatprep.subr.bf16.mxu0 0
    %5815 = vmatpush1.bf16.msra.mxu0 0
    %5816 = vmatprep.subr.bf16.mxu0 0
    %5817 = vmatpush1.bf16.msra.mxu0 0
    %5818 = vmatprep.mubr.bf16.mxu0 0
    %5819 = vmatmul.mubr.bf16.gmra.mrb[0].mxu0 %v5552
    %v5820 = vpop.f32.mrb[0].mxu0
    %v5821 = vadd.f32 0.0, %v5820
    %v5822 = vpop.f32.mrb[0].mxu0
    %v5823 = vadd.f32 0.0, %v5822
    %v5824 = vpop.f32.mrb[0].mxu0
    %v5825 = vpop.f32.mrb[0].mxu0
    %5826 = vdwg.mxu0
    %v5827 = vadd.f32 %v5548, %v5780
    %v5828 = vadd.f32 %v5549, %v5782
    %v5829 = vadd.f32 %v5550, %v5821
    %v5830 = vadd.f32 %v5551, %v5823
    %v5831 = vxor.u32 %v5827, 2147483648
    %v5832 = vmul.f32 %v5831, 1.442695
    %v5833 = vpow.pop %v5832
    %v5834 = vadd.f32 %v5833, 1.0
    %v5835 = vrcp.pop %v5834
    %v5836 = vmul.f32 1.0, %v5835
    %v5837 = vxor.u32 %v5828, 2147483648
    %v5838 = vmul.f32 %v5837, 1.442695
    %v5839 = vpow.pop %v5838
    %v5840 = vadd.f32 %v5839, 1.0
    %v5841 = vrcp.pop %v5840
    %v5842 = vmul.f32 1.0, %v5841
    %v5843 = vtanh.pop %v5829
    %v5844 = vxor.u32 %v5830, 2147483648
    %v5845 = vmul.f32 %v5844, 1.442695
    %v5846 = vpow.pop %v5845
    %v5847 = vadd.f32 %v5846, 1.0
    %v5848 = vrcp.pop %v5847
    %v5849 = vmul.f32 1.0, %v5848
    %v5850 = vmul.f32 %v5842, %v4426
    %v5851 = vmul.f32 %v5836, %v5843
    %v5852 = vadd.f32 %v5850, %v5851
    %v5853 = vtanh.pop %v5852
    %v5854 = vmul.f32 %v5849, %v5853
    %5855 = vst [vmem:[#allocation2] sm:$0xff] %v5854
    %5856 = vst [vmem:[#allocation3] sm:$0xff] %v5852
    %v5857 = vpack.c.bf16 %v5854, %v5854
    %s5858 = scalar_lea.vmem [#allocation15], 12
    %5859 = vst [vmem:[%s5858] sm:$0xf] %v5857
    // Predicated region
    $region54: #{decoder_forward.4} parent=1 // pred_check
      _
    $region55: #{decoder_forward.4} parent=1 // pred_check_branch
      %5861 = sbr.rel (0) target = $region57
    $region56: #{decoder_forward.4} parent=1 // pred_region
      %s5863 = ssub.s32 256, 256
      %5864 = vsyncadd [#allocation6], %s5863
      %s5865 = sshll.u32 [#allocation15], 4
      %s5866 = int_to_ptr.vmem [resolvable:$true] %s5865
      %5871 = dma.vmem_to_hbm [thread:$0]  %s5866, 256, %s6, [#allocation6], 64, 64, 4
    $region57: #{decoder_forward.4} parent=1 // pred_fallthru
      _
    // Predicated region
    $region58: #{decoder_forward.4} parent=1 // pred_check
      _
    $region59: #{decoder_forward.4} parent=1 // pred_check_branch
      %5873 = sbr.rel (0) target = $region61
    $region60: #{decoder_forward.4} parent=1 // pred_region
      %5874 = dma.done [#allocation6], 256
    $region61: #{decoder_forward.4} parent=1 // pred_fallthru
      _
    %5875 = vsyncpa [#allocation5], 1
    %5876 = vsyncpa [#allocation8], 1
    %5877 = vsyncpa [#allocation11], 1
    %5878 = vsyncpa [#allocation14], 1
    %5879 = vsyncpa [#allocation6], 1

</llo_original>
